<compile_context>
chip_gen: v5e
topology: v5e:2x2
jax: 0.10.0
libtpu: 0.0.40
codegen_flags: <defaults>
</compile_context>

<pallas_src>
import jax
import jax.numpy as jnp
from jax.experimental import pallas as pl
from jax.experimental.pallas import tpu as pltpu


def model_ias_kernel(emb_f_ref, emb_b_ref, mask_f_ref, mask_b_ref,
                     w_ih_f_ref, w_ih_b_ref, b_f_ref, b_b_ref,
                     w_hh_f_ref, w_hh_b_ref,
                     w_slot_f_ref, w_slot_b_ref, w_int_f_ref, w_int_b_ref,
                     slots_ref, intent_ref,
                     xp_f, xp_b, h_all_f, h_all_b):
    """Single program: both LSTM directions, fused-gate recurrence, concat-free heads."""
    T, B, E = emb_f_ref.shape
    H = w_hh_f_ref.shape[0]
    H4 = 4 * H
    Spad = slots_ref.shape[2]

    # ---- hoisted, fused input projections: one lane-dense matmul per direction ----
    emb_f2 = emb_f_ref[...].reshape(T * B, E)              # bf16
    emb_b2 = emb_b_ref[...].reshape(T * B, E)              # bf16 (time-reversed)
    xp_f[...] = (jnp.dot(emb_f2, w_ih_f_ref[...], preferred_element_type=jnp.float32)
                 + b_f_ref[...]).reshape(T, B, H4)
    xp_b[...] = (jnp.dot(emb_b2, w_ih_b_ref[...], preferred_element_type=jnp.float32)
                 + b_b_ref[...]).reshape(T, B, H4)

    # Recurrent weights loaded once (f32; the recurrence is latency-, not throughput-bound).
    w_hh_f = w_hh_f_ref[...]
    w_hh_b = w_hh_b_ref[...]

    h_f = jnp.zeros((B, H), jnp.float32)
    c_f = jnp.zeros((B, H), jnp.float32)
    h_b = jnp.zeros((B, H), jnp.float32)
    c_b = jnp.zeros((B, H), jnp.float32)

    def cell(z, c):
        # One sigmoid over all 4H lanes (EUP), one tanh for the g gate; static lane slices
        # realign gates [i, f, g, o] to the (B, H) state.
        zs = jax.nn.sigmoid(z)
        i_g = zs[:, 0 * H:1 * H]
        f_g = zs[:, 1 * H:2 * H]
        o_g = zs[:, 3 * H:4 * H]
        g_g = jnp.tanh(z[:, 2 * H:3 * H])
        c_new = f_g * c + i_g * g_g
        h_new = o_g * jnp.tanh(c_new)
        return h_new, c_new

    # ---- serial recurrence: fully unrolled, statically indexed (small T) ----
    for s in range(T):
        # forward direction, original time t = s
        z_f = xp_f[s] + jnp.dot(h_f, w_hh_f, preferred_element_type=jnp.float32)
        hn_f, cn_f = cell(z_f, c_f)
        m_f = mask_f_ref[s]                                # (B, 1): 1.0 while t < seq_len
        h_f = h_f + m_f * (hn_f - h_f)                     # state frozen past seq end
        c_f = c_f + m_f * (cn_f - c_f)
        h_all_f[s] = m_f * hn_f                            # padded positions -> 0

        # backward direction, original time t = T-1-s (inputs pre-reversed in the wrapper)
        z_b = xp_b[s] + jnp.dot(h_b, w_hh_b, preferred_element_type=jnp.float32)
        hn_b, cn_b = cell(z_b, c_b)
        m_b = mask_b_ref[s]
        h_b = h_b + m_b * (hn_b - h_b)
        c_b = c_b + m_b * (cn_b - c_b)
        h_all_b[T - 1 - s] = m_b * hn_b                    # store back in original time order

    # ---- heads: concat-free split-K matmuls, lane-padded (dense) output stores ----
    hf2 = h_all_f[...].reshape(T * B, H).astype(jnp.bfloat16)
    hb2 = h_all_b[...].reshape(T * B, H).astype(jnp.bfloat16)
    slots_ref[...] = (
        jnp.dot(hf2, w_slot_f_ref[...], preferred_element_type=jnp.float32)
        + jnp.dot(hb2, w_slot_b_ref[...], preferred_element_type=jnp.float32)
    ).reshape(T, B, Spad)
    intent_ref[...] = (
        jnp.dot(h_f.astype(jnp.bfloat16), w_int_f_ref[...],
                preferred_element_type=jnp.float32)
        + jnp.dot(h_b.astype(jnp.bfloat16), w_int_b_ref[...],
                  preferred_element_type=jnp.float32))


def model_ias_forward(utterance, seq_lengths, params):
    """utterance: (B, T) int32, seq_lengths: (B,) int32 (max == T).
    Returns (slots (B, S, T), intent (B, I))."""
    B0, T = utterance.shape
    emb_table = params["embedding"]                        # (V, E), row 0 (pad) is zero
    E = emb_table.shape[1]
    H = params["w_hh_f"].shape[0]
    S = params["w_slot"].shape[1]
    I = params["w_int"].shape[1]
    LANE = 128
    Spad = ((S + LANE - 1) // LANE) * LANE                 # lane-dense slot output
    Ipad = ((I + LANE - 1) // LANE) * LANE                 # lane-dense intent output

    # Pad batch to a sublane multiple (8).
    B = ((B0 + 7) // 8) * 8
    pad = B - B0
    utt = jnp.pad(utterance, ((0, pad), (0, 0)))           # pad token id 0 -> zero embedding
    lens = jnp.pad(seq_lengths, (0, pad))                  # length 0 -> fully masked rows

    # Glue: embedding gather + time-major layout + validity mask (bf16 MXU inputs).
    emb_tbe = jnp.transpose(emb_table[utt], (1, 0, 2)).astype(jnp.bfloat16)  # (T, B, E)
    emb_rev = emb_tbe[::-1]                                # backward direction, pre-reversed
    t_idx = jnp.arange(T, dtype=jnp.int32)[:, None]
    mask = (t_idx < lens[None, :]).astype(jnp.float32)[..., None]            # (T, B, 1)
    mask_rev = mask[::-1]

    # Weight prep: fused [i,f,g,o] layout is kept; heads split-K per direction, lane-padded.
    pad_cols = lambda w, P: jnp.pad(w, ((0, 0), (0, P - w.shape[1])))
    w_ih_f = params["w_ih_f"].astype(jnp.bfloat16)         # (E, 4H)
    w_ih_b = params["w_ih_b"].astype(jnp.bfloat16)
    w_slot_f = pad_cols(params["w_slot"][:H], Spad).astype(jnp.bfloat16)     # (H, Spad)
    w_slot_b = pad_cols(params["w_slot"][H:], Spad).astype(jnp.bfloat16)
    w_int_f = pad_cols(params["w_int"][:H], Ipad).astype(jnp.bfloat16)       # (H, Ipad)
    w_int_b = pad_cols(params["w_int"][H:], Ipad).astype(jnp.bfloat16)

    full = lambda shape: pl.BlockSpec(shape, lambda i: (0,) * len(shape))

    slots_pad, intent_pad = pl.pallas_call(
        model_ias_kernel,
        out_shape=(jax.ShapeDtypeStruct((T, B, Spad), jnp.float32),
                   jax.ShapeDtypeStruct((B, Ipad), jnp.float32)),
        grid=(1,),                                         # single program, both directions
        in_specs=[full((T, B, E)), full((T, B, E)),
                  full((T, B, 1)), full((T, B, 1)),
                  full((E, 4 * H)), full((E, 4 * H)),
                  full((1, 4 * H)), full((1, 4 * H)),
                  full((H, 4 * H)), full((H, 4 * H)),
                  full((H, Spad)), full((H, Spad)),
                  full((H, Ipad)), full((H, Ipad))],
        out_specs=(full((T, B, Spad)), full((B, Ipad))),
        scratch_shapes=[pltpu.VMEM((T, B, 4 * H), jnp.float32),   # xp_f
                        pltpu.VMEM((T, B, 4 * H), jnp.float32),   # xp_b
                        pltpu.VMEM((T, B, H), jnp.float32),       # h_all_f
                        pltpu.VMEM((T, B, H), jnp.float32)],      # h_all_b
        compiler_params=pltpu.CompilerParams(
            dimension_semantics=("arbitrary",),
            vmem_limit_bytes=32 * 1024 * 1024),            # fits v5e/v6e/v7x at these shapes
    )(emb_tbe, emb_rev, mask, mask_rev,
      w_ih_f, w_ih_b, params["b_f"], params["b_b"],
      params["w_hh_f"], params["w_hh_b"],
      w_slot_f, w_slot_b, w_int_f, w_int_b)

    # Slice the lane padding back off, add biases, restore (B, S, T) layout.
    slots_tbs = slots_pad[:, :B0, :S] + params["b_slot"][None]    # (T, B0, S)
    intent = intent_pad[:B0, :I] + params["b_int"]                # (B0, I)
    slots = jnp.transpose(slots_tbs, (1, 2, 0))                   # slots.permute(0, 2, 1)
    return slots, intent


def init_params(key, vocab_len, emb_size, hid_size, out_slot, out_int, pad_index=0):
    ks = jax.random.split(key, 12)
    u = lambda k, shape: jax.random.uniform(k, shape, jnp.float32, -0.1, 0.1)
    emb = u(ks[0], (vocab_len, emb_size))
    emb = emb.at[pad_index].set(0.0)                       # padding_idx=0 -> zero row
    H = hid_size
    return {
        "embedding": emb,
        # forward-direction LSTM (gate order i,f,g,o); bias = b_ih + b_hh combined
        "w_ih_f": u(ks[1], (emb_size, 4 * H)),
        "w_hh_f": u(ks[2], (H, 4 * H)),
        "b_f":    u(ks[3], (1, 4 * H)),
        # backward-direction LSTM
        "w_ih_b": u(ks[4], (emb_size, 4 * H)),
        "w_hh_b": u(ks[5], (H, 4 * H)),
        "b_b":    u(ks[6], (1, 4 * H)),
        # output heads
        "w_slot": u(ks[7], (2 * H, out_slot)),
        "b_slot": u(ks[8], (1, out_slot)),
        "w_int":  u(ks[9], (2 * H, out_int)),
        "b_int":  u(ks[10], (1, out_int)),
    }


def reference_forward(utterance, seq_lengths, params):
    """Pure-jnp f32 reference mirroring ModelIAS.forward (eval mode)."""
    B, T = utterance.shape
    H = params["w_hh_f"].shape[0]
    emb = params["embedding"][utterance]                   # (B, T, E)
    mask = (jnp.arange(T)[None, :] < seq_lengths[:, None]).astype(jnp.float32)  # (B, T)

    def run(ts, w_ih, w_hh, bias):
        h = jnp.zeros((B, H), jnp.float32)
        c = jnp.zeros((B, H), jnp.float32)
        outs = [None] * T
        for t in ts:
            g = emb[:, t] @ w_ih + h @ w_hh + bias
            i_g = jax.nn.sigmoid(g[:, :H])
            f_g = jax.nn.sigmoid(g[:, H:2 * H])
            g_g = jnp.tanh(g[:, 2 * H:3 * H])
            o_g = jax.nn.sigmoid(g[:, 3 * H:])
            c_new = f_g * c + i_g * g_g
            h_new = o_g * jnp.tanh(c_new)
            m = mask[:, t:t + 1]
            h = h + m * (h_new - h)
            c = c + m * (c_new - c)
            outs[t] = m * h_new
        return jnp.stack(outs, axis=1), h                  # (B, T, H), (B, H)

    hf, h_f = run(range(T), params["w_ih_f"], params["w_hh_f"], params["b_f"])
    hb, h_b = run(range(T - 1, -1, -1), params["w_ih_b"], params["w_hh_b"], params["b_b"])
    enc = jnp.concatenate([hf, hb], axis=-1)               # (B, T, 2H)
    slots = enc @ params["w_slot"] + params["b_slot"]      # (B, T, S)
    intent = jnp.concatenate([h_f, h_b], axis=-1) @ params["w_int"] + params["b_int"]
    return jnp.transpose(slots, (0, 2, 1)), intent


if __name__ == "__main__":
    key = jax.random.PRNGKey(0)
    vocab_len, emb_size, hid_size = 20, 32, 32
    out_slot, out_int = 10, 5
    B, T = 2, 8

    kp, ku = jax.random.split(key)
    params = init_params(kp, vocab_len, emb_size, hid_size, out_slot, out_int)

    utterance = jax.random.randint(ku, (B, T), 1, vocab_len, dtype=jnp.int32)
    # pack_padded_sequence expects descending lengths; max length == T so shapes match
    seq_lengths = jnp.array([8, 5], dtype=jnp.int32)
    t_idx = jnp.arange(T, dtype=jnp.int32)[None, :]
    utterance = jnp.where(t_idx < seq_lengths[:, None], utterance, 0)  # zero padded tokens

    fwd = jax.jit(model_ias_forward)
    slots, intent = fwd(utterance, seq_lengths, params)
    jax.block_until_ready((slots, intent))

    assert slots.shape == (B, out_slot, T)
    assert intent.shape == (B, out_int)

    ref_slots, ref_intent = reference_forward(utterance, seq_lengths, params)
    # Tolerance accounts for bf16 MXU inputs (embeddings / W_ih / head weights); the
    # recurrent state and all elementwise math stay in f32.
    assert jnp.allclose(slots, ref_slots, atol=1e-2, rtol=1e-2), \
        float(jnp.max(jnp.abs(slots - ref_slots)))
    assert jnp.allclose(intent, ref_intent, atol=1e-2, rtol=1e-2), \
        float(jnp.max(jnp.abs(intent - ref_intent)))
    print("KERNEL_OK")
</pallas_src>

<mosaic_0001>
module attributes {stable_mosaic.version = 11 : i64} {
  func.func @model_ias_kernel(%arg0: i32, %arg1: memref<8x8x32xbf16, #tpu.memory_space<vmem>>, %arg2: memref<8x8x32xbf16, #tpu.memory_space<vmem>>, %arg3: memref<8x8x1xf32, #tpu.memory_space<vmem>>, %arg4: memref<8x8x1xf32, #tpu.memory_space<vmem>>, %arg5: memref<32x128xbf16, #tpu.memory_space<vmem>>, %arg6: memref<32x128xbf16, #tpu.memory_space<vmem>>, %arg7: memref<1x128xf32, #tpu.memory_space<vmem>>, %arg8: memref<1x128xf32, #tpu.memory_space<vmem>>, %arg9: memref<32x128xf32, #tpu.memory_space<vmem>>, %arg10: memref<32x128xf32, #tpu.memory_space<vmem>>, %arg11: memref<32x128xbf16, #tpu.memory_space<vmem>>, %arg12: memref<32x128xbf16, #tpu.memory_space<vmem>>, %arg13: memref<32x128xbf16, #tpu.memory_space<vmem>>, %arg14: memref<32x128xbf16, #tpu.memory_space<vmem>>, %arg15: memref<8x8x128xf32, #tpu.memory_space<vmem>>, %arg16: memref<8x128xf32, #tpu.memory_space<vmem>>, %arg17: memref<8x8x128xf32, #tpu.memory_space<vmem>>, %arg18: memref<8x8x128xf32, #tpu.memory_space<vmem>>, %arg19: memref<8x8x32xf32, #tpu.memory_space<vmem>>, %arg20: memref<8x8x32xf32, #tpu.memory_space<vmem>>) attributes {dimension_semantics = [#tpu.dimension_semantics<arbitrary>], iteration_bounds = array<i64: 1>, scalar_prefetch = 0 : i64, scratch_operands = 4 : i64, tpu.core_type = #tpu.core_type<tc>, window_params = [{pipeline_mode = #tpu.pipeline_mode<synchronous>, transform_indices = @transform_0, window_bounds = array<i64: 8, 8, 32>}, {pipeline_mode = #tpu.pipeline_mode<synchronous>, transform_indices = @transform_1, window_bounds = array<i64: 8, 8, 32>}, {pipeline_mode = #tpu.pipeline_mode<synchronous>, transform_indices = @transform_2, window_bounds = array<i64: 8, 8, 1>}, {pipeline_mode = #tpu.pipeline_mode<synchronous>, transform_indices = @transform_3, window_bounds = array<i64: 8, 8, 1>}, {pipeline_mode = #tpu.pipeline_mode<synchronous>, transform_indices = @transform_4, window_bounds = array<i64: 32, 128>}, {pipeline_mode = #tpu.pipeline_mode<synchronous>, transform_indices = @transform_5, window_bounds = array<i64: 32, 128>}, {pipeline_mode = #tpu.pipeline_mode<synchronous>, transform_indices = @transform_6, window_bounds = array<i64: 1, 128>}, {pipeline_mode = #tpu.pipeline_mode<synchronous>, transform_indices = @transform_7, window_bounds = array<i64: 1, 128>}, {pipeline_mode = #tpu.pipeline_mode<synchronous>, transform_indices = @transform_8, window_bounds = array<i64: 32, 128>}, {pipeline_mode = #tpu.pipeline_mode<synchronous>, transform_indices = @transform_9, window_bounds = array<i64: 32, 128>}, {pipeline_mode = #tpu.pipeline_mode<synchronous>, transform_indices = @transform_10, window_bounds = array<i64: 32, 128>}, {pipeline_mode = #tpu.pipeline_mode<synchronous>, transform_indices = @transform_11, window_bounds = array<i64: 32, 128>}, {pipeline_mode = #tpu.pipeline_mode<synchronous>, transform_indices = @transform_12, window_bounds = array<i64: 32, 128>}, {pipeline_mode = #tpu.pipeline_mode<synchronous>, transform_indices = @transform_13, window_bounds = array<i64: 32, 128>}, {pipeline_mode = #tpu.pipeline_mode<synchronous>, transform_indices = @transform_14, window_bounds = array<i64: 8, 8, 128>}, {pipeline_mode = #tpu.pipeline_mode<synchronous>, transform_indices = @transform_15, window_bounds = array<i64: 8, 128>}]} {
    %c0 = arith.constant 0 : index
    %c0_0 = arith.constant 0 : index
    %c0_1 = arith.constant 0 : index
    %0 = vector.load %arg1[%c0, %c0_0, %c0_1] : memref<8x8x32xbf16, #tpu.memory_space<vmem>>, vector<8x8x32xbf16>
    %1 = vector.shape_cast %0 : vector<8x8x32xbf16> to vector<64x32xbf16>
    %c0_2 = arith.constant 0 : index
    %c0_3 = arith.constant 0 : index
    %c0_4 = arith.constant 0 : index
    %2 = vector.load %arg2[%c0_2, %c0_3, %c0_4] : memref<8x8x32xbf16, #tpu.memory_space<vmem>>, vector<8x8x32xbf16>
    %3 = vector.shape_cast %2 : vector<8x8x32xbf16> to vector<64x32xbf16>
    %c0_5 = arith.constant 0 : index
    %c0_6 = arith.constant 0 : index
    %4 = vector.load %arg5[%c0_5, %c0_6] : memref<32x128xbf16, #tpu.memory_space<vmem>>, vector<32x128xbf16>
    %cst = arith.constant dense<0.000000e+00> : vector<64x128xf32>
    %5 = tpu.matmul %1, %4, %cst {dimension_numbers = #tpu.dot_dimension_numbers<[1], [0], [0], [1], [0, 0, 1, 1], [], []>} : vector<64x32xbf16>, vector<32x128xbf16>, vector<64x128xf32> -> vector<64x128xf32>
    %c0_7 = arith.constant 0 : index
    %c0_8 = arith.constant 0 : index
    %6 = vector.load %arg7[%c0_7, %c0_8] : memref<1x128xf32, #tpu.memory_space<vmem>>, vector<1x128xf32>
    %7 = vector.broadcast %6 : vector<1x128xf32> to vector<64x128xf32>
    %8 = arith.addf %5, %7 : vector<64x128xf32>
    %9 = vector.shape_cast %8 : vector<64x128xf32> to vector<8x8x128xf32>
    %c0_9 = arith.constant 0 : index
    %c0_10 = arith.constant 0 : index
    %c0_11 = arith.constant 0 : index
    %10 = vector.load %arg17[%c0_9, %c0_10, %c0_11] : memref<8x8x128xf32, #tpu.memory_space<vmem>>, vector<8x8x128xf32>
    tpu.vector_store %arg17[%c0_9, %c0_10, %c0_11], %9 {strides = array<i32>} : memref<8x8x128xf32, #tpu.memory_space<vmem>>, vector<8x8x128xf32>,
    %c0_12 = arith.constant 0 : index
    %c0_13 = arith.constant 0 : index
    %11 = vector.load %arg6[%c0_12, %c0_13] : memref<32x128xbf16, #tpu.memory_space<vmem>>, vector<32x128xbf16>
    %cst_14 = arith.constant dense<0.000000e+00> : vector<64x128xf32>
    %12 = tpu.matmul %3, %11, %cst_14 {dimension_numbers = #tpu.dot_dimension_numbers<[1], [0], [0], [1], [0, 0, 1, 1], [], []>} : vector<64x32xbf16>, vector<32x128xbf16>, vector<64x128xf32> -> vector<64x128xf32>
    %c0_15 = arith.constant 0 : index
    %c0_16 = arith.constant 0 : index
    %13 = vector.load %arg8[%c0_15, %c0_16] : memref<1x128xf32, #tpu.memory_space<vmem>>, vector<1x128xf32>
    %14 = vector.broadcast %13 : vector<1x128xf32> to vector<64x128xf32>
    %15 = arith.addf %12, %14 : vector<64x128xf32>
    %16 = vector.shape_cast %15 : vector<64x128xf32> to vector<8x8x128xf32>
    %c0_17 = arith.constant 0 : index
    %c0_18 = arith.constant 0 : index
    %c0_19 = arith.constant 0 : index
    %17 = vector.load %arg18[%c0_17, %c0_18, %c0_19] : memref<8x8x128xf32, #tpu.memory_space<vmem>>, vector<8x8x128xf32>
    tpu.vector_store %arg18[%c0_17, %c0_18, %c0_19], %16 {strides = array<i32>} : memref<8x8x128xf32, #tpu.memory_space<vmem>>, vector<8x8x128xf32>,
    %c0_20 = arith.constant 0 : index
    %c0_21 = arith.constant 0 : index
    %18 = vector.load %arg9[%c0_20, %c0_21] : memref<32x128xf32, #tpu.memory_space<vmem>>, vector<32x128xf32>
    %c0_22 = arith.constant 0 : index
    %c0_23 = arith.constant 0 : index
    %19 = vector.load %arg10[%c0_22, %c0_23] : memref<32x128xf32, #tpu.memory_space<vmem>>, vector<32x128xf32>
    %cst_24 = arith.constant 0.000000e+00 : f32
    %20 = vector.broadcast %cst_24 : f32 to vector<8x32xf32>
    %cst_25 = arith.constant 0.000000e+00 : f32
    %21 = vector.broadcast %cst_25 : f32 to vector<8x32xf32>
    %cst_26 = arith.constant 0.000000e+00 : f32
    %22 = vector.broadcast %cst_26 : f32 to vector<8x32xf32>
    %cst_27 = arith.constant 0.000000e+00 : f32
    %23 = vector.broadcast %cst_27 : f32 to vector<8x32xf32>
    %c0_28 = arith.constant 0 : index
    %c0_29 = arith.constant 0 : index
    %c0_30 = arith.constant 0 : index
    %24 = vector.load %arg17[%c0_28, %c0_29, %c0_30] : memref<8x8x128xf32, #tpu.memory_space<vmem>>, vector<1x8x128xf32>
    %25 = vector.shape_cast %24 : vector<1x8x128xf32> to vector<8x128xf32>
    %cst_31 = arith.constant dense<0.000000e+00> : vector<8x128xf32>
    %26 = tpu.matmul %20, %18, %cst_31 {dimension_numbers = #tpu.dot_dimension_numbers<[1], [0], [0], [1], [0, 0, 1, 1], [], []>} : vector<8x32xf32>, vector<32x128xf32>, vector<8x128xf32> -> vector<8x128xf32>
    %27 = arith.addf %25, %26 : vector<8x128xf32>
    %28 = arith.negf %27 : vector<8x128xf32>
    %29 = math.exp %28 : vector<8x128xf32>
    %cst_32 = arith.constant 1.000000e+00 : f32
    %30 = vector.broadcast %cst_32 : f32 to vector<8x128xf32>
    %31 = arith.addf %30, %29 : vector<8x128xf32>
    %32 = arith.divf %30, %31 : vector<8x128xf32>
    %33 = vector.extract_strided_slice %32 {offsets = [0, 0], sizes = [8, 32], strides = [1, 1]} : vector<8x128xf32> to vector<8x32xf32>
    %34 = vector.extract_strided_slice %32 {offsets = [0, 32], sizes = [8, 32], strides = [1, 1]} : vector<8x128xf32> to vector<8x32xf32>
    %35 = vector.extract_strided_slice %32 {offsets = [0, 96], sizes = [8, 32], strides = [1, 1]} : vector<8x128xf32> to vector<8x32xf32>
    %36 = vector.extract_strided_slice %27 {offsets = [0, 64], sizes = [8, 32], strides = [1, 1]} : vector<8x128xf32> to vector<8x32xf32>
    %37 = math.tanh %36 : vector<8x32xf32>
    %38 = arith.mulf %34, %21 : vector<8x32xf32>
    %39 = arith.mulf %33, %37 : vector<8x32xf32>
    %40 = arith.addf %38, %39 : vector<8x32xf32>
    %41 = math.tanh %40 : vector<8x32xf32>
    %42 = arith.mulf %35, %41 : vector<8x32xf32>
    %c0_33 = arith.constant 0 : index
    %c0_34 = arith.constant 0 : index
    %c0_35 = arith.constant 0 : index
    %43 = vector.load %arg3[%c0_33, %c0_34, %c0_35] : memref<8x8x1xf32, #tpu.memory_space<vmem>>, vector<1x8x1xf32>
    %44 = vector.shape_cast %43 : vector<1x8x1xf32> to vector<8x1xf32>
    %45 = arith.subf %42, %20 : vector<8x32xf32>
    %46 = vector.broadcast %44 : vector<8x1xf32> to vector<8x32xf32>
    %47 = arith.mulf %46, %45 : vector<8x32xf32>
    %48 = arith.addf %20, %47 : vector<8x32xf32>
    %49 = arith.subf %40, %21 : vector<8x32xf32>
    %50 = vector.broadcast %44 : vector<8x1xf32> to vector<8x32xf32>
    %51 = arith.mulf %50, %49 : vector<8x32xf32>
    %52 = arith.addf %21, %51 : vector<8x32xf32>
    %53 = vector.broadcast %44 : vector<8x1xf32> to vector<8x32xf32>
    %54 = arith.mulf %53, %42 : vector<8x32xf32>
    %c0_36 = arith.constant 0 : index
    %c0_37 = arith.constant 0 : index
    %c0_38 = arith.constant 0 : index
    %55 = vector.load %arg19[%c0_36, %c0_37, %c0_38] : memref<8x8x32xf32, #tpu.memory_space<vmem>>, vector<1x8x32xf32>
    %56 = vector.shape_cast %55 : vector<1x8x32xf32> to vector<8x32xf32>
    %57 = vector.shape_cast %54 : vector<8x32xf32> to vector<1x8x32xf32>
    tpu.vector_store %arg19[%c0_36, %c0_37, %c0_38], %57 {strides = array<i32>} : memref<8x8x32xf32, #tpu.memory_space<vmem>>, vector<1x8x32xf32>,
    %c0_39 = arith.constant 0 : index
    %c0_40 = arith.constant 0 : index
    %c0_41 = arith.constant 0 : index
    %58 = vector.load %arg18[%c0_39, %c0_40, %c0_41] : memref<8x8x128xf32, #tpu.memory_space<vmem>>, vector<1x8x128xf32>
    %59 = vector.shape_cast %58 : vector<1x8x128xf32> to vector<8x128xf32>
    %cst_42 = arith.constant dense<0.000000e+00> : vector<8x128xf32>
    %60 = tpu.matmul %22, %19, %cst_42 {dimension_numbers = #tpu.dot_dimension_numbers<[1], [0], [0], [1], [0, 0, 1, 1], [], []>} : vector<8x32xf32>, vector<32x128xf32>, vector<8x128xf32> -> vector<8x128xf32>
    %61 = arith.addf %59, %60 : vector<8x128xf32>
    %62 = arith.negf %61 : vector<8x128xf32>
    %63 = math.exp %62 : vector<8x128xf32>
    %cst_43 = arith.constant 1.000000e+00 : f32
    %64 = vector.broadcast %cst_43 : f32 to vector<8x128xf32>
    %65 = arith.addf %64, %63 : vector<8x128xf32>
    %66 = arith.divf %64, %65 : vector<8x128xf32>
    %67 = vector.extract_strided_slice %66 {offsets = [0, 0], sizes = [8, 32], strides = [1, 1]} : vector<8x128xf32> to vector<8x32xf32>
    %68 = vector.extract_strided_slice %66 {offsets = [0, 32], sizes = [8, 32], strides = [1, 1]} : vector<8x128xf32> to vector<8x32xf32>
    %69 = vector.extract_strided_slice %66 {offsets = [0, 96], sizes = [8, 32], strides = [1, 1]} : vector<8x128xf32> to vector<8x32xf32>
    %70 = vector.extract_strided_slice %61 {offsets = [0, 64], sizes = [8, 32], strides = [1, 1]} : vector<8x128xf32> to vector<8x32xf32>
    %71 = math.tanh %70 : vector<8x32xf32>
    %72 = arith.mulf %68, %23 : vector<8x32xf32>
    %73 = arith.mulf %67, %71 : vector<8x32xf32>
    %74 = arith.addf %72, %73 : vector<8x32xf32>
    %75 = math.tanh %74 : vector<8x32xf32>
    %76 = arith.mulf %69, %75 : vector<8x32xf32>
    %c0_44 = arith.constant 0 : index
    %c0_45 = arith.constant 0 : index
    %c0_46 = arith.constant 0 : index
    %77 = vector.load %arg4[%c0_44, %c0_45, %c0_46] : memref<8x8x1xf32, #tpu.memory_space<vmem>>, vector<1x8x1xf32>
    %78 = vector.shape_cast %77 : vector<1x8x1xf32> to vector<8x1xf32>
    %79 = arith.subf %76, %22 : vector<8x32xf32>
    %80 = vector.broadcast %78 : vector<8x1xf32> to vector<8x32xf32>
    %81 = arith.mulf %80, %79 : vector<8x32xf32>
    %82 = arith.addf %22, %81 : vector<8x32xf32>
    %83 = arith.subf %74, %23 : vector<8x32xf32>
    %84 = vector.broadcast %78 : vector<8x1xf32> to vector<8x32xf32>
    %85 = arith.mulf %84, %83 : vector<8x32xf32>
    %86 = arith.addf %23, %85 : vector<8x32xf32>
    %87 = vector.broadcast %78 : vector<8x1xf32> to vector<8x32xf32>
    %88 = arith.mulf %87, %76 : vector<8x32xf32>
    %c7 = arith.constant 7 : index
    %c0_47 = arith.constant 0 : index
    %c0_48 = arith.constant 0 : index
    %89 = vector.load %arg20[%c7, %c0_47, %c0_48] : memref<8x8x32xf32, #tpu.memory_space<vmem>>, vector<1x8x32xf32>
    %90 = vector.shape_cast %89 : vector<1x8x32xf32> to vector<8x32xf32>
    %91 = vector.shape_cast %88 : vector<8x32xf32> to vector<1x8x32xf32>
    tpu.vector_store %arg20[%c7, %c0_47, %c0_48], %91 {strides = array<i32>} : memref<8x8x32xf32, #tpu.memory_space<vmem>>, vector<1x8x32xf32>,
    %c1 = arith.constant 1 : index
    %c0_49 = arith.constant 0 : index
    %c0_50 = arith.constant 0 : index
    %92 = vector.load %arg17[%c1, %c0_49, %c0_50] : memref<8x8x128xf32, #tpu.memory_space<vmem>>, vector<1x8x128xf32>
    %93 = vector.shape_cast %92 : vector<1x8x128xf32> to vector<8x128xf32>
    %cst_51 = arith.constant dense<0.000000e+00> : vector<8x128xf32>
    %94 = tpu.matmul %48, %18, %cst_51 {dimension_numbers = #tpu.dot_dimension_numbers<[1], [0], [0], [1], [0, 0, 1, 1], [], []>} : vector<8x32xf32>, vector<32x128xf32>, vector<8x128xf32> -> vector<8x128xf32>
    %95 = arith.addf %93, %94 : vector<8x128xf32>
    %96 = arith.negf %95 : vector<8x128xf32>
    %97 = math.exp %96 : vector<8x128xf32>
    %cst_52 = arith.constant 1.000000e+00 : f32
    %98 = vector.broadcast %cst_52 : f32 to vector<8x128xf32>
    %99 = arith.addf %98, %97 : vector<8x128xf32>
    %100 = arith.divf %98, %99 : vector<8x128xf32>
    %101 = vector.extract_strided_slice %100 {offsets = [0, 0], sizes = [8, 32], strides = [1, 1]} : vector<8x128xf32> to vector<8x32xf32>
    %102 = vector.extract_strided_slice %100 {offsets = [0, 32], sizes = [8, 32], strides = [1, 1]} : vector<8x128xf32> to vector<8x32xf32>
    %103 = vector.extract_strided_slice %100 {offsets = [0, 96], sizes = [8, 32], strides = [1, 1]} : vector<8x128xf32> to vector<8x32xf32>
    %104 = vector.extract_strided_slice %95 {offsets = [0, 64], sizes = [8, 32], strides = [1, 1]} : vector<8x128xf32> to vector<8x32xf32>
    %105 = math.tanh %104 : vector<8x32xf32>
    %106 = arith.mulf %102, %52 : vector<8x32xf32>
    %107 = arith.mulf %101, %105 : vector<8x32xf32>
    %108 = arith.addf %106, %107 : vector<8x32xf32>
    %109 = math.tanh %108 : vector<8x32xf32>
    %110 = arith.mulf %103, %109 : vector<8x32xf32>
    %c1_53 = arith.constant 1 : index
    %c0_54 = arith.constant 0 : index
    %c0_55 = arith.constant 0 : index
    %111 = vector.load %arg3[%c1_53, %c0_54, %c0_55] : memref<8x8x1xf32, #tpu.memory_space<vmem>>, vector<1x8x1xf32>
    %112 = vector.shape_cast %111 : vector<1x8x1xf32> to vector<8x1xf32>
    %113 = arith.subf %110, %48 : vector<8x32xf32>
    %114 = vector.broadcast %112 : vector<8x1xf32> to vector<8x32xf32>
    %115 = arith.mulf %114, %113 : vector<8x32xf32>
    %116 = arith.addf %48, %115 : vector<8x32xf32>
    %117 = arith.subf %108, %52 : vector<8x32xf32>
    %118 = vector.broadcast %112 : vector<8x1xf32> to vector<8x32xf32>
    %119 = arith.mulf %118, %117 : vector<8x32xf32>
    %120 = arith.addf %52, %119 : vector<8x32xf32>
    %121 = vector.broadcast %112 : vector<8x1xf32> to vector<8x32xf32>
    %122 = arith.mulf %121, %110 : vector<8x32xf32>
    %c1_56 = arith.constant 1 : index
    %c0_57 = arith.constant 0 : index
    %c0_58 = arith.constant 0 : index
    %123 = vector.load %arg19[%c1_56, %c0_57, %c0_58] : memref<8x8x32xf32, #tpu.memory_space<vmem>>, vector<1x8x32xf32>
    %124 = vector.shape_cast %123 : vector<1x8x32xf32> to vector<8x32xf32>
    %125 = vector.shape_cast %122 : vector<8x32xf32> to vector<1x8x32xf32>
    tpu.vector_store %arg19[%c1_56, %c0_57, %c0_58], %125 {strides = array<i32>} : memref<8x8x32xf32, #tpu.memory_space<vmem>>, vector<1x8x32xf32>,
    %c1_59 = arith.constant 1 : index
    %c0_60 = arith.constant 0 : index
    %c0_61 = arith.constant 0 : index
    %126 = vector.load %arg18[%c1_59, %c0_60, %c0_61] : memref<8x8x128xf32, #tpu.memory_space<vmem>>, vector<1x8x128xf32>
    %127 = vector.shape_cast %126 : vector<1x8x128xf32> to vector<8x128xf32>
    %cst_62 = arith.constant dense<0.000000e+00> : vector<8x128xf32>
    %128 = tpu.matmul %82, %19, %cst_62 {dimension_numbers = #tpu.dot_dimension_numbers<[1], [0], [0], [1], [0, 0, 1, 1], [], []>} : vector<8x32xf32>, vector<32x128xf32>, vector<8x128xf32> -> vector<8x128xf32>
    %129 = arith.addf %127, %128 : vector<8x128xf32>
    %130 = arith.negf %129 : vector<8x128xf32>
    %131 = math.exp %130 : vector<8x128xf32>
    %cst_63 = arith.constant 1.000000e+00 : f32
    %132 = vector.broadcast %cst_63 : f32 to vector<8x128xf32>
    %133 = arith.addf %132, %131 : vector<8x128xf32>
    %134 = arith.divf %132, %133 : vector<8x128xf32>
    %135 = vector.extract_strided_slice %134 {offsets = [0, 0], sizes = [8, 32], strides = [1, 1]} : vector<8x128xf32> to vector<8x32xf32>
    %136 = vector.extract_strided_slice %134 {offsets = [0, 32], sizes = [8, 32], strides = [1, 1]} : vector<8x128xf32> to vector<8x32xf32>
    %137 = vector.extract_strided_slice %134 {offsets = [0, 96], sizes = [8, 32], strides = [1, 1]} : vector<8x128xf32> to vector<8x32xf32>
    %138 = vector.extract_strided_slice %129 {offsets = [0, 64], sizes = [8, 32], strides = [1, 1]} : vector<8x128xf32> to vector<8x32xf32>
    %139 = math.tanh %138 : vector<8x32xf32>
    %140 = arith.mulf %136, %86 : vector<8x32xf32>
    %141 = arith.mulf %135, %139 : vector<8x32xf32>
    %142 = arith.addf %140, %141 : vector<8x32xf32>
    %143 = math.tanh %142 : vector<8x32xf32>
    %144 = arith.mulf %137, %143 : vector<8x32xf32>
    %c1_64 = arith.constant 1 : index
    %c0_65 = arith.constant 0 : index
    %c0_66 = arith.constant 0 : index
    %145 = vector.load %arg4[%c1_64, %c0_65, %c0_66] : memref<8x8x1xf32, #tpu.memory_space<vmem>>, vector<1x8x1xf32>
    %146 = vector.shape_cast %145 : vector<1x8x1xf32> to vector<8x1xf32>
    %147 = arith.subf %144, %82 : vector<8x32xf32>
    %148 = vector.broadcast %146 : vector<8x1xf32> to vector<8x32xf32>
    %149 = arith.mulf %148, %147 : vector<8x32xf32>
    %150 = arith.addf %82, %149 : vector<8x32xf32>
    %151 = arith.subf %142, %86 : vector<8x32xf32>
    %152 = vector.broadcast %146 : vector<8x1xf32> to vector<8x32xf32>
    %153 = arith.mulf %152, %151 : vector<8x32xf32>
    %154 = arith.addf %86, %153 : vector<8x32xf32>
    %155 = vector.broadcast %146 : vector<8x1xf32> to vector<8x32xf32>
    %156 = arith.mulf %155, %144 : vector<8x32xf32>
    %c6 = arith.constant 6 : index
    %c0_67 = arith.constant 0 : index
    %c0_68 = arith.constant 0 : index
    %157 = vector.load %arg20[%c6, %c0_67, %c0_68] : memref<8x8x32xf32, #tpu.memory_space<vmem>>, vector<1x8x32xf32>
    %158 = vector.shape_cast %157 : vector<1x8x32xf32> to vector<8x32xf32>
    %159 = vector.shape_cast %156 : vector<8x32xf32> to vector<1x8x32xf32>
    tpu.vector_store %arg20[%c6, %c0_67, %c0_68], %159 {strides = array<i32>} : memref<8x8x32xf32, #tpu.memory_space<vmem>>, vector<1x8x32xf32>,
    %c2 = arith.constant 2 : index
    %c0_69 = arith.constant 0 : index
    %c0_70 = arith.constant 0 : index
    %160 = vector.load %arg17[%c2, %c0_69, %c0_70] : memref<8x8x128xf32, #tpu.memory_space<vmem>>, vector<1x8x128xf32>
    %161 = vector.shape_cast %160 : vector<1x8x128xf32> to vector<8x128xf32>
    %cst_71 = arith.constant dense<0.000000e+00> : vector<8x128xf32>
    %162 = tpu.matmul %116, %18, %cst_71 {dimension_numbers = #tpu.dot_dimension_numbers<[1], [0], [0], [1], [0, 0, 1, 1], [], []>} : vector<8x32xf32>, vector<32x128xf32>, vector<8x128xf32> -> vector<8x128xf32>
    %163 = arith.addf %161, %162 : vector<8x128xf32>
    %164 = arith.negf %163 : vector<8x128xf32>
    %165 = math.exp %164 : vector<8x128xf32>
    %cst_72 = arith.constant 1.000000e+00 : f32
    %166 = vector.broadcast %cst_72 : f32 to vector<8x128xf32>
    %167 = arith.addf %166, %165 : vector<8x128xf32>
    %168 = arith.divf %166, %167 : vector<8x128xf32>
    %169 = vector.extract_strided_slice %168 {offsets = [0, 0], sizes = [8, 32], strides = [1, 1]} : vector<8x128xf32> to vector<8x32xf32>
    %170 = vector.extract_strided_slice %168 {offsets = [0, 32], sizes = [8, 32], strides = [1, 1]} : vector<8x128xf32> to vector<8x32xf32>
    %171 = vector.extract_strided_slice %168 {offsets = [0, 96], sizes = [8, 32], strides = [1, 1]} : vector<8x128xf32> to vector<8x32xf32>
    %172 = vector.extract_strided_slice %163 {offsets = [0, 64], sizes = [8, 32], strides = [1, 1]} : vector<8x128xf32> to vector<8x32xf32>
    %173 = math.tanh %172 : vector<8x32xf32>
    %174 = arith.mulf %170, %120 : vector<8x32xf32>
    %175 = arith.mulf %169, %173 : vector<8x32xf32>
    %176 = arith.addf %174, %175 : vector<8x32xf32>
    %177 = math.tanh %176 : vector<8x32xf32>
    %178 = arith.mulf %171, %177 : vector<8x32xf32>
    %c2_73 = arith.constant 2 : index
    %c0_74 = arith.constant 0 : index
    %c0_75 = arith.constant 0 : index
    %179 = vector.load %arg3[%c2_73, %c0_74, %c0_75] : memref<8x8x1xf32, #tpu.memory_space<vmem>>, vector<1x8x1xf32>
    %180 = vector.shape_cast %179 : vector<1x8x1xf32> to vector<8x1xf32>
    %181 = arith.subf %178, %116 : vector<8x32xf32>
    %182 = vector.broadcast %180 : vector<8x1xf32> to vector<8x32xf32>
    %183 = arith.mulf %182, %181 : vector<8x32xf32>
    %184 = arith.addf %116, %183 : vector<8x32xf32>
    %185 = arith.subf %176, %120 : vector<8x32xf32>
    %186 = vector.broadcast %180 : vector<8x1xf32> to vector<8x32xf32>
    %187 = arith.mulf %186, %185 : vector<8x32xf32>
    %188 = arith.addf %120, %187 : vector<8x32xf32>
    %189 = vector.broadcast %180 : vector<8x1xf32> to vector<8x32xf32>
    %190 = arith.mulf %189, %178 : vector<8x32xf32>
    %c2_76 = arith.constant 2 : index
    %c0_77 = arith.constant 0 : index
    %c0_78 = arith.constant 0 : index
    %191 = vector.load %arg19[%c2_76, %c0_77, %c0_78] : memref<8x8x32xf32, #tpu.memory_space<vmem>>, vector<1x8x32xf32>
    %192 = vector.shape_cast %191 : vector<1x8x32xf32> to vector<8x32xf32>
    %193 = vector.shape_cast %190 : vector<8x32xf32> to vector<1x8x32xf32>
    tpu.vector_store %arg19[%c2_76, %c0_77, %c0_78], %193 {strides = array<i32>} : memref<8x8x32xf32, #tpu.memory_space<vmem>>, vector<1x8x32xf32>,
    %c2_79 = arith.constant 2 : index
    %c0_80 = arith.constant 0 : index
    %c0_81 = arith.constant 0 : index
    %194 = vector.load %arg18[%c2_79, %c0_80, %c0_81] : memref<8x8x128xf32, #tpu.memory_space<vmem>>, vector<1x8x128xf32>
    %195 = vector.shape_cast %194 : vector<1x8x128xf32> to vector<8x128xf32>
    %cst_82 = arith.constant dense<0.000000e+00> : vector<8x128xf32>
    %196 = tpu.matmul %150, %19, %cst_82 {dimension_numbers = #tpu.dot_dimension_numbers<[1], [0], [0], [1], [0, 0, 1, 1], [], []>} : vector<8x32xf32>, vector<32x128xf32>, vector<8x128xf32> -> vector<8x128xf32>
    %197 = arith.addf %195, %196 : vector<8x128xf32>
    %198 = arith.negf %197 : vector<8x128xf32>
    %199 = math.exp %198 : vector<8x128xf32>
    %cst_83 = arith.constant 1.000000e+00 : f32
    %200 = vector.broadcast %cst_83 : f32 to vector<8x128xf32>
    %201 = arith.addf %200, %199 : vector<8x128xf32>
    %202 = arith.divf %200, %201 : vector<8x128xf32>
    %203 = vector.extract_strided_slice %202 {offsets = [0, 0], sizes = [8, 32], strides = [1, 1]} : vector<8x128xf32> to vector<8x32xf32>
    %204 = vector.extract_strided_slice %202 {offsets = [0, 32], sizes = [8, 32], strides = [1, 1]} : vector<8x128xf32> to vector<8x32xf32>
    %205 = vector.extract_strided_slice %202 {offsets = [0, 96], sizes = [8, 32], strides = [1, 1]} : vector<8x128xf32> to vector<8x32xf32>
    %206 = vector.extract_strided_slice %197 {offsets = [0, 64], sizes = [8, 32], strides = [1, 1]} : vector<8x128xf32> to vector<8x32xf32>
    %207 = math.tanh %206 : vector<8x32xf32>
    %208 = arith.mulf %204, %154 : vector<8x32xf32>
    %209 = arith.mulf %203, %207 : vector<8x32xf32>
    %210 = arith.addf %208, %209 : vector<8x32xf32>
    %211 = math.tanh %210 : vector<8x32xf32>
    %212 = arith.mulf %205, %211 : vector<8x32xf32>
    %c2_84 = arith.constant 2 : index
    %c0_85 = arith.constant 0 : index
    %c0_86 = arith.constant 0 : index
    %213 = vector.load %arg4[%c2_84, %c0_85, %c0_86] : memref<8x8x1xf32, #tpu.memory_space<vmem>>, vector<1x8x1xf32>
    %214 = vector.shape_cast %213 : vector<1x8x1xf32> to vector<8x1xf32>
    %215 = arith.subf %212, %150 : vector<8x32xf32>
    %216 = vector.broadcast %214 : vector<8x1xf32> to vector<8x32xf32>
    %217 = arith.mulf %216, %215 : vector<8x32xf32>
    %218 = arith.addf %150, %217 : vector<8x32xf32>
    %219 = arith.subf %210, %154 : vector<8x32xf32>
    %220 = vector.broadcast %214 : vector<8x1xf32> to vector<8x32xf32>
    %221 = arith.mulf %220, %219 : vector<8x32xf32>
    %222 = arith.addf %154, %221 : vector<8x32xf32>
    %223 = vector.broadcast %214 : vector<8x1xf32> to vector<8x32xf32>
    %224 = arith.mulf %223, %212 : vector<8x32xf32>
    %c5 = arith.constant 5 : index
    %c0_87 = arith.constant 0 : index
    %c0_88 = arith.constant 0 : index
    %225 = vector.load %arg20[%c5, %c0_87, %c0_88] : memref<8x8x32xf32, #tpu.memory_space<vmem>>, vector<1x8x32xf32>
    %226 = vector.shape_cast %225 : vector<1x8x32xf32> to vector<8x32xf32>
    %227 = vector.shape_cast %224 : vector<8x32xf32> to vector<1x8x32xf32>
    tpu.vector_store %arg20[%c5, %c0_87, %c0_88], %227 {strides = array<i32>} : memref<8x8x32xf32, #tpu.memory_space<vmem>>, vector<1x8x32xf32>,
    %c3 = arith.constant 3 : index
    %c0_89 = arith.constant 0 : index
    %c0_90 = arith.constant 0 : index
    %228 = vector.load %arg17[%c3, %c0_89, %c0_90] : memref<8x8x128xf32, #tpu.memory_space<vmem>>, vector<1x8x128xf32>
    %229 = vector.shape_cast %228 : vector<1x8x128xf32> to vector<8x128xf32>
    %cst_91 = arith.constant dense<0.000000e+00> : vector<8x128xf32>
    %230 = tpu.matmul %184, %18, %cst_91 {dimension_numbers = #tpu.dot_dimension_numbers<[1], [0], [0], [1], [0, 0, 1, 1], [], []>} : vector<8x32xf32>, vector<32x128xf32>, vector<8x128xf32> -> vector<8x128xf32>
    %231 = arith.addf %229, %230 : vector<8x128xf32>
    %232 = arith.negf %231 : vector<8x128xf32>
    %233 = math.exp %232 : vector<8x128xf32>
    %cst_92 = arith.constant 1.000000e+00 : f32
    %234 = vector.broadcast %cst_92 : f32 to vector<8x128xf32>
    %235 = arith.addf %234, %233 : vector<8x128xf32>
    %236 = arith.divf %234, %235 : vector<8x128xf32>
    %237 = vector.extract_strided_slice %236 {offsets = [0, 0], sizes = [8, 32], strides = [1, 1]} : vector<8x128xf32> to vector<8x32xf32>
    %238 = vector.extract_strided_slice %236 {offsets = [0, 32], sizes = [8, 32], strides = [1, 1]} : vector<8x128xf32> to vector<8x32xf32>
    %239 = vector.extract_strided_slice %236 {offsets = [0, 96], sizes = [8, 32], strides = [1, 1]} : vector<8x128xf32> to vector<8x32xf32>
    %240 = vector.extract_strided_slice %231 {offsets = [0, 64], sizes = [8, 32], strides = [1, 1]} : vector<8x128xf32> to vector<8x32xf32>
    %241 = math.tanh %240 : vector<8x32xf32>
    %242 = arith.mulf %238, %188 : vector<8x32xf32>
    %243 = arith.mulf %237, %241 : vector<8x32xf32>
    %244 = arith.addf %242, %243 : vector<8x32xf32>
    %245 = math.tanh %244 : vector<8x32xf32>
    %246 = arith.mulf %239, %245 : vector<8x32xf32>
    %c3_93 = arith.constant 3 : index
    %c0_94 = arith.constant 0 : index
    %c0_95 = arith.constant 0 : index
    %247 = vector.load %arg3[%c3_93, %c0_94, %c0_95] : memref<8x8x1xf32, #tpu.memory_space<vmem>>, vector<1x8x1xf32>
    %248 = vector.shape_cast %247 : vector<1x8x1xf32> to vector<8x1xf32>
    %249 = arith.subf %246, %184 : vector<8x32xf32>
    %250 = vector.broadcast %248 : vector<8x1xf32> to vector<8x32xf32>
    %251 = arith.mulf %250, %249 : vector<8x32xf32>
    %252 = arith.addf %184, %251 : vector<8x32xf32>
    %253 = arith.subf %244, %188 : vector<8x32xf32>
    %254 = vector.broadcast %248 : vector<8x1xf32> to vector<8x32xf32>
    %255 = arith.mulf %254, %253 : vector<8x32xf32>
    %256 = arith.addf %188, %255 : vector<8x32xf32>
    %257 = vector.broadcast %248 : vector<8x1xf32> to vector<8x32xf32>
    %258 = arith.mulf %257, %246 : vector<8x32xf32>
    %c3_96 = arith.constant 3 : index
    %c0_97 = arith.constant 0 : index
    %c0_98 = arith.constant 0 : index
    %259 = vector.load %arg19[%c3_96, %c0_97, %c0_98] : memref<8x8x32xf32, #tpu.memory_space<vmem>>, vector<1x8x32xf32>
    %260 = vector.shape_cast %259 : vector<1x8x32xf32> to vector<8x32xf32>
    %261 = vector.shape_cast %258 : vector<8x32xf32> to vector<1x8x32xf32>
    tpu.vector_store %arg19[%c3_96, %c0_97, %c0_98], %261 {strides = array<i32>} : memref<8x8x32xf32, #tpu.memory_space<vmem>>, vector<1x8x32xf32>,
    %c3_99 = arith.constant 3 : index
    %c0_100 = arith.constant 0 : index
    %c0_101 = arith.constant 0 : index
    %262 = vector.load %arg18[%c3_99, %c0_100, %c0_101] : memref<8x8x128xf32, #tpu.memory_space<vmem>>, vector<1x8x128xf32>
    %263 = vector.shape_cast %262 : vector<1x8x128xf32> to vector<8x128xf32>
    %cst_102 = arith.constant dense<0.000000e+00> : vector<8x128xf32>
    %264 = tpu.matmul %218, %19, %cst_102 {dimension_numbers = #tpu.dot_dimension_numbers<[1], [0], [0], [1], [0, 0, 1, 1], [], []>} : vector<8x32xf32>, vector<32x128xf32>, vector<8x128xf32> -> vector<8x128xf32>
    %265 = arith.addf %263, %264 : vector<8x128xf32>
    %266 = arith.negf %265 : vector<8x128xf32>
    %267 = math.exp %266 : vector<8x128xf32>
    %cst_103 = arith.constant 1.000000e+00 : f32
    %268 = vector.broadcast %cst_103 : f32 to vector<8x128xf32>
    %269 = arith.addf %268, %267 : vector<8x128xf32>
    %270 = arith.divf %268, %269 : vector<8x128xf32>
    %271 = vector.extract_strided_slice %270 {offsets = [0, 0], sizes = [8, 32], strides = [1, 1]} : vector<8x128xf32> to vector<8x32xf32>
    %272 = vector.extract_strided_slice %270 {offsets = [0, 32], sizes = [8, 32], strides = [1, 1]} : vector<8x128xf32> to vector<8x32xf32>
    %273 = vector.extract_strided_slice %270 {offsets = [0, 96], sizes = [8, 32], strides = [1, 1]} : vector<8x128xf32> to vector<8x32xf32>
    %274 = vector.extract_strided_slice %265 {offsets = [0, 64], sizes = [8, 32], strides = [1, 1]} : vector<8x128xf32> to vector<8x32xf32>
    %275 = math.tanh %274 : vector<8x32xf32>
    %276 = arith.mulf %272, %222 : vector<8x32xf32>
    %277 = arith.mulf %271, %275 : vector<8x32xf32>
    %278 = arith.addf %276, %277 : vector<8x32xf32>
    %279 = math.tanh %278 : vector<8x32xf32>
    %280 = arith.mulf %273, %279 : vector<8x32xf32>
    %c3_104 = arith.constant 3 : index
    %c0_105 = arith.constant 0 : index
    %c0_106 = arith.constant 0 : index
    %281 = vector.load %arg4[%c3_104, %c0_105, %c0_106] : memref<8x8x1xf32, #tpu.memory_space<vmem>>, vector<1x8x1xf32>
    %282 = vector.shape_cast %281 : vector<1x8x1xf32> to vector<8x1xf32>
    %283 = arith.subf %280, %218 : vector<8x32xf32>
    %284 = vector.broadcast %282 : vector<8x1xf32> to vector<8x32xf32>
    %285 = arith.mulf %284, %283 : vector<8x32xf32>
    %286 = arith.addf %218, %285 : vector<8x32xf32>
    %287 = arith.subf %278, %222 : vector<8x32xf32>
    %288 = vector.broadcast %282 : vector<8x1xf32> to vector<8x32xf32>
    %289 = arith.mulf %288, %287 : vector<8x32xf32>
    %290 = arith.addf %222, %289 : vector<8x32xf32>
    %291 = vector.broadcast %282 : vector<8x1xf32> to vector<8x32xf32>
    %292 = arith.mulf %291, %280 : vector<8x32xf32>
    %c4 = arith.constant 4 : index
    %c0_107 = arith.constant 0 : index
    %c0_108 = arith.constant 0 : index
    %293 = vector.load %arg20[%c4, %c0_107, %c0_108] : memref<8x8x32xf32, #tpu.memory_space<vmem>>, vector<1x8x32xf32>
    %294 = vector.shape_cast %293 : vector<1x8x32xf32> to vector<8x32xf32>
    %295 = vector.shape_cast %292 : vector<8x32xf32> to vector<1x8x32xf32>
    tpu.vector_store %arg20[%c4, %c0_107, %c0_108], %295 {strides = array<i32>} : memref<8x8x32xf32, #tpu.memory_space<vmem>>, vector<1x8x32xf32>,
    %c4_109 = arith.constant 4 : index
    %c0_110 = arith.constant 0 : index
    %c0_111 = arith.constant 0 : index
    %296 = vector.load %arg17[%c4_109, %c0_110, %c0_111] : memref<8x8x128xf32, #tpu.memory_space<vmem>>, vector<1x8x128xf32>
    %297 = vector.shape_cast %296 : vector<1x8x128xf32> to vector<8x128xf32>
    %cst_112 = arith.constant dense<0.000000e+00> : vector<8x128xf32>
    %298 = tpu.matmul %252, %18, %cst_112 {dimension_numbers = #tpu.dot_dimension_numbers<[1], [0], [0], [1], [0, 0, 1, 1], [], []>} : vector<8x32xf32>, vector<32x128xf32>, vector<8x128xf32> -> vector<8x128xf32>
    %299 = arith.addf %297, %298 : vector<8x128xf32>
    %300 = arith.negf %299 : vector<8x128xf32>
    %301 = math.exp %300 : vector<8x128xf32>
    %cst_113 = arith.constant 1.000000e+00 : f32
    %302 = vector.broadcast %cst_113 : f32 to vector<8x128xf32>
    %303 = arith.addf %302, %301 : vector<8x128xf32>
    %304 = arith.divf %302, %303 : vector<8x128xf32>
    %305 = vector.extract_strided_slice %304 {offsets = [0, 0], sizes = [8, 32], strides = [1, 1]} : vector<8x128xf32> to vector<8x32xf32>
    %306 = vector.extract_strided_slice %304 {offsets = [0, 32], sizes = [8, 32], strides = [1, 1]} : vector<8x128xf32> to vector<8x32xf32>
    %307 = vector.extract_strided_slice %304 {offsets = [0, 96], sizes = [8, 32], strides = [1, 1]} : vector<8x128xf32> to vector<8x32xf32>
    %308 = vector.extract_strided_slice %299 {offsets = [0, 64], sizes = [8, 32], strides = [1, 1]} : vector<8x128xf32> to vector<8x32xf32>
    %309 = math.tanh %308 : vector<8x32xf32>
    %310 = arith.mulf %306, %256 : vector<8x32xf32>
    %311 = arith.mulf %305, %309 : vector<8x32xf32>
    %312 = arith.addf %310, %311 : vector<8x32xf32>
    %313 = math.tanh %312 : vector<8x32xf32>
    %314 = arith.mulf %307, %313 : vector<8x32xf32>
    %c4_114 = arith.constant 4 : index
    %c0_115 = arith.constant 0 : index
    %c0_116 = arith.constant 0 : index
    %315 = vector.load %arg3[%c4_114, %c0_115, %c0_116] : memref<8x8x1xf32, #tpu.memory_space<vmem>>, vector<1x8x1xf32>
    %316 = vector.shape_cast %315 : vector<1x8x1xf32> to vector<8x1xf32>
    %317 = arith.subf %314, %252 : vector<8x32xf32>
    %318 = vector.broadcast %316 : vector<8x1xf32> to vector<8x32xf32>
    %319 = arith.mulf %318, %317 : vector<8x32xf32>
    %320 = arith.addf %252, %319 : vector<8x32xf32>
    %321 = arith.subf %312, %256 : vector<8x32xf32>
    %322 = vector.broadcast %316 : vector<8x1xf32> to vector<8x32xf32>
    %323 = arith.mulf %322, %321 : vector<8x32xf32>
    %324 = arith.addf %256, %323 : vector<8x32xf32>
    %325 = vector.broadcast %316 : vector<8x1xf32> to vector<8x32xf32>
    %326 = arith.mulf %325, %314 : vector<8x32xf32>
    %c4_117 = arith.constant 4 : index
    %c0_118 = arith.constant 0 : index
    %c0_119 = arith.constant 0 : index
    %327 = vector.load %arg19[%c4_117, %c0_118, %c0_119] : memref<8x8x32xf32, #tpu.memory_space<vmem>>, vector<1x8x32xf32>
    %328 = vector.shape_cast %327 : vector<1x8x32xf32> to vector<8x32xf32>
    %329 = vector.shape_cast %326 : vector<8x32xf32> to vector<1x8x32xf32>
    tpu.vector_store %arg19[%c4_117, %c0_118, %c0_119], %329 {strides = array<i32>} : memref<8x8x32xf32, #tpu.memory_space<vmem>>, vector<1x8x32xf32>,
    %c4_120 = arith.constant 4 : index
    %c0_121 = arith.constant 0 : index
    %c0_122 = arith.constant 0 : index
    %330 = vector.load %arg18[%c4_120, %c0_121, %c0_122] : memref<8x8x128xf32, #tpu.memory_space<vmem>>, vector<1x8x128xf32>
    %331 = vector.shape_cast %330 : vector<1x8x128xf32> to vector<8x128xf32>
    %cst_123 = arith.constant dense<0.000000e+00> : vector<8x128xf32>
    %332 = tpu.matmul %286, %19, %cst_123 {dimension_numbers = #tpu.dot_dimension_numbers<[1], [0], [0], [1], [0, 0, 1, 1], [], []>} : vector<8x32xf32>, vector<32x128xf32>, vector<8x128xf32> -> vector<8x128xf32>
    %333 = arith.addf %331, %332 : vector<8x128xf32>
    %334 = arith.negf %333 : vector<8x128xf32>
    %335 = math.exp %334 : vector<8x128xf32>
    %cst_124 = arith.constant 1.000000e+00 : f32
    %336 = vector.broadcast %cst_124 : f32 to vector<8x128xf32>
    %337 = arith.addf %336, %335 : vector<8x128xf32>
    %338 = arith.divf %336, %337 : vector<8x128xf32>
    %339 = vector.extract_strided_slice %338 {offsets = [0, 0], sizes = [8, 32], strides = [1, 1]} : vector<8x128xf32> to vector<8x32xf32>
    %340 = vector.extract_strided_slice %338 {offsets = [0, 32], sizes = [8, 32], strides = [1, 1]} : vector<8x128xf32> to vector<8x32xf32>
    %341 = vector.extract_strided_slice %338 {offsets = [0, 96], sizes = [8, 32], strides = [1, 1]} : vector<8x128xf32> to vector<8x32xf32>
    %342 = vector.extract_strided_slice %333 {offsets = [0, 64], sizes = [8, 32], strides = [1, 1]} : vector<8x128xf32> to vector<8x32xf32>
    %343 = math.tanh %342 : vector<8x32xf32>
    %344 = arith.mulf %340, %290 : vector<8x32xf32>
    %345 = arith.mulf %339, %343 : vector<8x32xf32>
    %346 = arith.addf %344, %345 : vector<8x32xf32>
    %347 = math.tanh %346 : vector<8x32xf32>
    %348 = arith.mulf %341, %347 : vector<8x32xf32>
    %c4_125 = arith.constant 4 : index
    %c0_126 = arith.constant 0 : index
    %c0_127 = arith.constant 0 : index
    %349 = vector.load %arg4[%c4_125, %c0_126, %c0_127] : memref<8x8x1xf32, #tpu.memory_space<vmem>>, vector<1x8x1xf32>
    %350 = vector.shape_cast %349 : vector<1x8x1xf32> to vector<8x1xf32>
    %351 = arith.subf %348, %286 : vector<8x32xf32>
    %352 = vector.broadcast %350 : vector<8x1xf32> to vector<8x32xf32>
    %353 = arith.mulf %352, %351 : vector<8x32xf32>
    %354 = arith.addf %286, %353 : vector<8x32xf32>
    %355 = arith.subf %346, %290 : vector<8x32xf32>
    %356 = vector.broadcast %350 : vector<8x1xf32> to vector<8x32xf32>
    %357 = arith.mulf %356, %355 : vector<8x32xf32>
    %358 = arith.addf %290, %357 : vector<8x32xf32>
    %359 = vector.broadcast %350 : vector<8x1xf32> to vector<8x32xf32>
    %360 = arith.mulf %359, %348 : vector<8x32xf32>
    %c3_128 = arith.constant 3 : index
    %c0_129 = arith.constant 0 : index
    %c0_130 = arith.constant 0 : index
    %361 = vector.load %arg20[%c3_128, %c0_129, %c0_130] : memref<8x8x32xf32, #tpu.memory_space<vmem>>, vector<1x8x32xf32>
    %362 = vector.shape_cast %361 : vector<1x8x32xf32> to vector<8x32xf32>
    %363 = vector.shape_cast %360 : vector<8x32xf32> to vector<1x8x32xf32>
    tpu.vector_store %arg20[%c3_128, %c0_129, %c0_130], %363 {strides = array<i32>} : memref<8x8x32xf32, #tpu.memory_space<vmem>>, vector<1x8x32xf32>,
    %c5_131 = arith.constant 5 : index
    %c0_132 = arith.constant 0 : index
    %c0_133 = arith.constant 0 : index
    %364 = vector.load %arg17[%c5_131, %c0_132, %c0_133] : memref<8x8x128xf32, #tpu.memory_space<vmem>>, vector<1x8x128xf32>
    %365 = vector.shape_cast %364 : vector<1x8x128xf32> to vector<8x128xf32>
    %cst_134 = arith.constant dense<0.000000e+00> : vector<8x128xf32>
    %366 = tpu.matmul %320, %18, %cst_134 {dimension_numbers = #tpu.dot_dimension_numbers<[1], [0], [0], [1], [0, 0, 1, 1], [], []>} : vector<8x32xf32>, vector<32x128xf32>, vector<8x128xf32> -> vector<8x128xf32>
    %367 = arith.addf %365, %366 : vector<8x128xf32>
    %368 = arith.negf %367 : vector<8x128xf32>
    %369 = math.exp %368 : vector<8x128xf32>
    %cst_135 = arith.constant 1.000000e+00 : f32
    %370 = vector.broadcast %cst_135 : f32 to vector<8x128xf32>
    %371 = arith.addf %370, %369 : vector<8x128xf32>
    %372 = arith.divf %370, %371 : vector<8x128xf32>
    %373 = vector.extract_strided_slice %372 {offsets = [0, 0], sizes = [8, 32], strides = [1, 1]} : vector<8x128xf32> to vector<8x32xf32>
    %374 = vector.extract_strided_slice %372 {offsets = [0, 32], sizes = [8, 32], strides = [1, 1]} : vector<8x128xf32> to vector<8x32xf32>
    %375 = vector.extract_strided_slice %372 {offsets = [0, 96], sizes = [8, 32], strides = [1, 1]} : vector<8x128xf32> to vector<8x32xf32>
    %376 = vector.extract_strided_slice %367 {offsets = [0, 64], sizes = [8, 32], strides = [1, 1]} : vector<8x128xf32> to vector<8x32xf32>
    %377 = math.tanh %376 : vector<8x32xf32>
    %378 = arith.mulf %374, %324 : vector<8x32xf32>
    %379 = arith.mulf %373, %377 : vector<8x32xf32>
    %380 = arith.addf %378, %379 : vector<8x32xf32>
    %381 = math.tanh %380 : vector<8x32xf32>
    %382 = arith.mulf %375, %381 : vector<8x32xf32>
    %c5_136 = arith.constant 5 : index
    %c0_137 = arith.constant 0 : index
    %c0_138 = arith.constant 0 : index
    %383 = vector.load %arg3[%c5_136, %c0_137, %c0_138] : memref<8x8x1xf32, #tpu.memory_space<vmem>>, vector<1x8x1xf32>
    %384 = vector.shape_cast %383 : vector<1x8x1xf32> to vector<8x1xf32>
    %385 = arith.subf %382, %320 : vector<8x32xf32>
    %386 = vector.broadcast %384 : vector<8x1xf32> to vector<8x32xf32>
    %387 = arith.mulf %386, %385 : vector<8x32xf32>
    %388 = arith.addf %320, %387 : vector<8x32xf32>
    %389 = arith.subf %380, %324 : vector<8x32xf32>
    %390 = vector.broadcast %384 : vector<8x1xf32> to vector<8x32xf32>
    %391 = arith.mulf %390, %389 : vector<8x32xf32>
    %392 = arith.addf %324, %391 : vector<8x32xf32>
    %393 = vector.broadcast %384 : vector<8x1xf32> to vector<8x32xf32>
    %394 = arith.mulf %393, %382 : vector<8x32xf32>
    %c5_139 = arith.constant 5 : index
    %c0_140 = arith.constant 0 : index
    %c0_141 = arith.constant 0 : index
    %395 = vector.load %arg19[%c5_139, %c0_140, %c0_141] : memref<8x8x32xf32, #tpu.memory_space<vmem>>, vector<1x8x32xf32>
    %396 = vector.shape_cast %395 : vector<1x8x32xf32> to vector<8x32xf32>
    %397 = vector.shape_cast %394 : vector<8x32xf32> to vector<1x8x32xf32>
    tpu.vector_store %arg19[%c5_139, %c0_140, %c0_141], %397 {strides = array<i32>} : memref<8x8x32xf32, #tpu.memory_space<vmem>>, vector<1x8x32xf32>,
    %c5_142 = arith.constant 5 : index
    %c0_143 = arith.constant 0 : index
    %c0_144 = arith.constant 0 : index
    %398 = vector.load %arg18[%c5_142, %c0_143, %c0_144] : memref<8x8x128xf32, #tpu.memory_space<vmem>>, vector<1x8x128xf32>
    %399 = vector.shape_cast %398 : vector<1x8x128xf32> to vector<8x128xf32>
    %cst_145 = arith.constant dense<0.000000e+00> : vector<8x128xf32>
    %400 = tpu.matmul %354, %19, %cst_145 {dimension_numbers = #tpu.dot_dimension_numbers<[1], [0], [0], [1], [0, 0, 1, 1], [], []>} : vector<8x32xf32>, vector<32x128xf32>, vector<8x128xf32> -> vector<8x128xf32>
    %401 = arith.addf %399, %400 : vector<8x128xf32>
    %402 = arith.negf %401 : vector<8x128xf32>
    %403 = math.exp %402 : vector<8x128xf32>
    %cst_146 = arith.constant 1.000000e+00 : f32
    %404 = vector.broadcast %cst_146 : f32 to vector<8x128xf32>
    %405 = arith.addf %404, %403 : vector<8x128xf32>
    %406 = arith.divf %404, %405 : vector<8x128xf32>
    %407 = vector.extract_strided_slice %406 {offsets = [0, 0], sizes = [8, 32], strides = [1, 1]} : vector<8x128xf32> to vector<8x32xf32>
    %408 = vector.extract_strided_slice %406 {offsets = [0, 32], sizes = [8, 32], strides = [1, 1]} : vector<8x128xf32> to vector<8x32xf32>
    %409 = vector.extract_strided_slice %406 {offsets = [0, 96], sizes = [8, 32], strides = [1, 1]} : vector<8x128xf32> to vector<8x32xf32>
    %410 = vector.extract_strided_slice %401 {offsets = [0, 64], sizes = [8, 32], strides = [1, 1]} : vector<8x128xf32> to vector<8x32xf32>
    %411 = math.tanh %410 : vector<8x32xf32>
    %412 = arith.mulf %408, %358 : vector<8x32xf32>
    %413 = arith.mulf %407, %411 : vector<8x32xf32>
    %414 = arith.addf %412, %413 : vector<8x32xf32>
    %415 = math.tanh %414 : vector<8x32xf32>
    %416 = arith.mulf %409, %415 : vector<8x32xf32>
    %c5_147 = arith.constant 5 : index
    %c0_148 = arith.constant 0 : index
    %c0_149 = arith.constant 0 : index
    %417 = vector.load %arg4[%c5_147, %c0_148, %c0_149] : memref<8x8x1xf32, #tpu.memory_space<vmem>>, vector<1x8x1xf32>
    %418 = vector.shape_cast %417 : vector<1x8x1xf32> to vector<8x1xf32>
    %419 = arith.subf %416, %354 : vector<8x32xf32>
    %420 = vector.broadcast %418 : vector<8x1xf32> to vector<8x32xf32>
    %421 = arith.mulf %420, %419 : vector<8x32xf32>
    %422 = arith.addf %354, %421 : vector<8x32xf32>
    %423 = arith.subf %414, %358 : vector<8x32xf32>
    %424 = vector.broadcast %418 : vector<8x1xf32> to vector<8x32xf32>
    %425 = arith.mulf %424, %423 : vector<8x32xf32>
    %426 = arith.addf %358, %425 : vector<8x32xf32>
    %427 = vector.broadcast %418 : vector<8x1xf32> to vector<8x32xf32>
    %428 = arith.mulf %427, %416 : vector<8x32xf32>
    %c2_150 = arith.constant 2 : index
    %c0_151 = arith.constant 0 : index
    %c0_152 = arith.constant 0 : index
    %429 = vector.load %arg20[%c2_150, %c0_151, %c0_152] : memref<8x8x32xf32, #tpu.memory_space<vmem>>, vector<1x8x32xf32>
    %430 = vector.shape_cast %429 : vector<1x8x32xf32> to vector<8x32xf32>
    %431 = vector.shape_cast %428 : vector<8x32xf32> to vector<1x8x32xf32>
    tpu.vector_store %arg20[%c2_150, %c0_151, %c0_152], %431 {strides = array<i32>} : memref<8x8x32xf32, #tpu.memory_space<vmem>>, vector<1x8x32xf32>,
    %c6_153 = arith.constant 6 : index
    %c0_154 = arith.constant 0 : index
    %c0_155 = arith.constant 0 : index
    %432 = vector.load %arg17[%c6_153, %c0_154, %c0_155] : memref<8x8x128xf32, #tpu.memory_space<vmem>>, vector<1x8x128xf32>
    %433 = vector.shape_cast %432 : vector<1x8x128xf32> to vector<8x128xf32>
    %cst_156 = arith.constant dense<0.000000e+00> : vector<8x128xf32>
    %434 = tpu.matmul %388, %18, %cst_156 {dimension_numbers = #tpu.dot_dimension_numbers<[1], [0], [0], [1], [0, 0, 1, 1], [], []>} : vector<8x32xf32>, vector<32x128xf32>, vector<8x128xf32> -> vector<8x128xf32>
    %435 = arith.addf %433, %434 : vector<8x128xf32>
    %436 = arith.negf %435 : vector<8x128xf32>
    %437 = math.exp %436 : vector<8x128xf32>
    %cst_157 = arith.constant 1.000000e+00 : f32
    %438 = vector.broadcast %cst_157 : f32 to vector<8x128xf32>
    %439 = arith.addf %438, %437 : vector<8x128xf32>
    %440 = arith.divf %438, %439 : vector<8x128xf32>
    %441 = vector.extract_strided_slice %440 {offsets = [0, 0], sizes = [8, 32], strides = [1, 1]} : vector<8x128xf32> to vector<8x32xf32>
    %442 = vector.extract_strided_slice %440 {offsets = [0, 32], sizes = [8, 32], strides = [1, 1]} : vector<8x128xf32> to vector<8x32xf32>
    %443 = vector.extract_strided_slice %440 {offsets = [0, 96], sizes = [8, 32], strides = [1, 1]} : vector<8x128xf32> to vector<8x32xf32>
    %444 = vector.extract_strided_slice %435 {offsets = [0, 64], sizes = [8, 32], strides = [1, 1]} : vector<8x128xf32> to vector<8x32xf32>
    %445 = math.tanh %444 : vector<8x32xf32>
    %446 = arith.mulf %442, %392 : vector<8x32xf32>
    %447 = arith.mulf %441, %445 : vector<8x32xf32>
    %448 = arith.addf %446, %447 : vector<8x32xf32>
    %449 = math.tanh %448 : vector<8x32xf32>
    %450 = arith.mulf %443, %449 : vector<8x32xf32>
    %c6_158 = arith.constant 6 : index
    %c0_159 = arith.constant 0 : index
    %c0_160 = arith.constant 0 : index
    %451 = vector.load %arg3[%c6_158, %c0_159, %c0_160] : memref<8x8x1xf32, #tpu.memory_space<vmem>>, vector<1x8x1xf32>
    %452 = vector.shape_cast %451 : vector<1x8x1xf32> to vector<8x1xf32>
    %453 = arith.subf %450, %388 : vector<8x32xf32>
    %454 = vector.broadcast %452 : vector<8x1xf32> to vector<8x32xf32>
    %455 = arith.mulf %454, %453 : vector<8x32xf32>
    %456 = arith.addf %388, %455 : vector<8x32xf32>
    %457 = arith.subf %448, %392 : vector<8x32xf32>
    %458 = vector.broadcast %452 : vector<8x1xf32> to vector<8x32xf32>
    %459 = arith.mulf %458, %457 : vector<8x32xf32>
    %460 = arith.addf %392, %459 : vector<8x32xf32>
    %461 = vector.broadcast %452 : vector<8x1xf32> to vector<8x32xf32>
    %462 = arith.mulf %461, %450 : vector<8x32xf32>
    %c6_161 = arith.constant 6 : index
    %c0_162 = arith.constant 0 : index
    %c0_163 = arith.constant 0 : index
    %463 = vector.load %arg19[%c6_161, %c0_162, %c0_163] : memref<8x8x32xf32, #tpu.memory_space<vmem>>, vector<1x8x32xf32>
    %464 = vector.shape_cast %463 : vector<1x8x32xf32> to vector<8x32xf32>
    %465 = vector.shape_cast %462 : vector<8x32xf32> to vector<1x8x32xf32>
    tpu.vector_store %arg19[%c6_161, %c0_162, %c0_163], %465 {strides = array<i32>} : memref<8x8x32xf32, #tpu.memory_space<vmem>>, vector<1x8x32xf32>,
    %c6_164 = arith.constant 6 : index
    %c0_165 = arith.constant 0 : index
    %c0_166 = arith.constant 0 : index
    %466 = vector.load %arg18[%c6_164, %c0_165, %c0_166] : memref<8x8x128xf32, #tpu.memory_space<vmem>>, vector<1x8x128xf32>
    %467 = vector.shape_cast %466 : vector<1x8x128xf32> to vector<8x128xf32>
    %cst_167 = arith.constant dense<0.000000e+00> : vector<8x128xf32>
    %468 = tpu.matmul %422, %19, %cst_167 {dimension_numbers = #tpu.dot_dimension_numbers<[1], [0], [0], [1], [0, 0, 1, 1], [], []>} : vector<8x32xf32>, vector<32x128xf32>, vector<8x128xf32> -> vector<8x128xf32>
    %469 = arith.addf %467, %468 : vector<8x128xf32>
    %470 = arith.negf %469 : vector<8x128xf32>
    %471 = math.exp %470 : vector<8x128xf32>
    %cst_168 = arith.constant 1.000000e+00 : f32
    %472 = vector.broadcast %cst_168 : f32 to vector<8x128xf32>
    %473 = arith.addf %472, %471 : vector<8x128xf32>
    %474 = arith.divf %472, %473 : vector<8x128xf32>
    %475 = vector.extract_strided_slice %474 {offsets = [0, 0], sizes = [8, 32], strides = [1, 1]} : vector<8x128xf32> to vector<8x32xf32>
    %476 = vector.extract_strided_slice %474 {offsets = [0, 32], sizes = [8, 32], strides = [1, 1]} : vector<8x128xf32> to vector<8x32xf32>
    %477 = vector.extract_strided_slice %474 {offsets = [0, 96], sizes = [8, 32], strides = [1, 1]} : vector<8x128xf32> to vector<8x32xf32>
    %478 = vector.extract_strided_slice %469 {offsets = [0, 64], sizes = [8, 32], strides = [1, 1]} : vector<8x128xf32> to vector<8x32xf32>
    %479 = math.tanh %478 : vector<8x32xf32>
    %480 = arith.mulf %476, %426 : vector<8x32xf32>
    %481 = arith.mulf %475, %479 : vector<8x32xf32>
    %482 = arith.addf %480, %481 : vector<8x32xf32>
    %483 = math.tanh %482 : vector<8x32xf32>
    %484 = arith.mulf %477, %483 : vector<8x32xf32>
    %c6_169 = arith.constant 6 : index
    %c0_170 = arith.constant 0 : index
    %c0_171 = arith.constant 0 : index
    %485 = vector.load %arg4[%c6_169, %c0_170, %c0_171] : memref<8x8x1xf32, #tpu.memory_space<vmem>>, vector<1x8x1xf32>
    %486 = vector.shape_cast %485 : vector<1x8x1xf32> to vector<8x1xf32>
    %487 = arith.subf %484, %422 : vector<8x32xf32>
    %488 = vector.broadcast %486 : vector<8x1xf32> to vector<8x32xf32>
    %489 = arith.mulf %488, %487 : vector<8x32xf32>
    %490 = arith.addf %422, %489 : vector<8x32xf32>
    %491 = arith.subf %482, %426 : vector<8x32xf32>
    %492 = vector.broadcast %486 : vector<8x1xf32> to vector<8x32xf32>
    %493 = arith.mulf %492, %491 : vector<8x32xf32>
    %494 = arith.addf %426, %493 : vector<8x32xf32>
    %495 = vector.broadcast %486 : vector<8x1xf32> to vector<8x32xf32>
    %496 = arith.mulf %495, %484 : vector<8x32xf32>
    %c1_172 = arith.constant 1 : index
    %c0_173 = arith.constant 0 : index
    %c0_174 = arith.constant 0 : index
    %497 = vector.load %arg20[%c1_172, %c0_173, %c0_174] : memref<8x8x32xf32, #tpu.memory_space<vmem>>, vector<1x8x32xf32>
    %498 = vector.shape_cast %497 : vector<1x8x32xf32> to vector<8x32xf32>
    %499 = vector.shape_cast %496 : vector<8x32xf32> to vector<1x8x32xf32>
    tpu.vector_store %arg20[%c1_172, %c0_173, %c0_174], %499 {strides = array<i32>} : memref<8x8x32xf32, #tpu.memory_space<vmem>>, vector<1x8x32xf32>,
    %c7_175 = arith.constant 7 : index
    %c0_176 = arith.constant 0 : index
    %c0_177 = arith.constant 0 : index
    %500 = vector.load %arg17[%c7_175, %c0_176, %c0_177] : memref<8x8x128xf32, #tpu.memory_space<vmem>>, vector<1x8x128xf32>
    %501 = vector.shape_cast %500 : vector<1x8x128xf32> to vector<8x128xf32>
    %cst_178 = arith.constant dense<0.000000e+00> : vector<8x128xf32>
    %502 = tpu.matmul %456, %18, %cst_178 {dimension_numbers = #tpu.dot_dimension_numbers<[1], [0], [0], [1], [0, 0, 1, 1], [], []>} : vector<8x32xf32>, vector<32x128xf32>, vector<8x128xf32> -> vector<8x128xf32>
    %503 = arith.addf %501, %502 : vector<8x128xf32>
    %504 = arith.negf %503 : vector<8x128xf32>
    %505 = math.exp %504 : vector<8x128xf32>
    %cst_179 = arith.constant 1.000000e+00 : f32
    %506 = vector.broadcast %cst_179 : f32 to vector<8x128xf32>
    %507 = arith.addf %506, %505 : vector<8x128xf32>
    %508 = arith.divf %506, %507 : vector<8x128xf32>
    %509 = vector.extract_strided_slice %508 {offsets = [0, 0], sizes = [8, 32], strides = [1, 1]} : vector<8x128xf32> to vector<8x32xf32>
    %510 = vector.extract_strided_slice %508 {offsets = [0, 32], sizes = [8, 32], strides = [1, 1]} : vector<8x128xf32> to vector<8x32xf32>
    %511 = vector.extract_strided_slice %508 {offsets = [0, 96], sizes = [8, 32], strides = [1, 1]} : vector<8x128xf32> to vector<8x32xf32>
    %512 = vector.extract_strided_slice %503 {offsets = [0, 64], sizes = [8, 32], strides = [1, 1]} : vector<8x128xf32> to vector<8x32xf32>
    %513 = math.tanh %512 : vector<8x32xf32>
    %514 = arith.mulf %510, %460 : vector<8x32xf32>
    %515 = arith.mulf %509, %513 : vector<8x32xf32>
    %516 = arith.addf %514, %515 : vector<8x32xf32>
    %517 = math.tanh %516 : vector<8x32xf32>
    %518 = arith.mulf %511, %517 : vector<8x32xf32>
    %c7_180 = arith.constant 7 : index
    %c0_181 = arith.constant 0 : index
    %c0_182 = arith.constant 0 : index
    %519 = vector.load %arg3[%c7_180, %c0_181, %c0_182] : memref<8x8x1xf32, #tpu.memory_space<vmem>>, vector<1x8x1xf32>
    %520 = vector.shape_cast %519 : vector<1x8x1xf32> to vector<8x1xf32>
    %521 = arith.subf %518, %456 : vector<8x32xf32>
    %522 = vector.broadcast %520 : vector<8x1xf32> to vector<8x32xf32>
    %523 = arith.mulf %522, %521 : vector<8x32xf32>
    %524 = arith.addf %456, %523 : vector<8x32xf32>
    %525 = vector.broadcast %520 : vector<8x1xf32> to vector<8x32xf32>
    %526 = arith.mulf %525, %518 : vector<8x32xf32>
    %c7_183 = arith.constant 7 : index
    %c0_184 = arith.constant 0 : index
    %c0_185 = arith.constant 0 : index
    %527 = vector.load %arg19[%c7_183, %c0_184, %c0_185] : memref<8x8x32xf32, #tpu.memory_space<vmem>>, vector<1x8x32xf32>
    %528 = vector.shape_cast %527 : vector<1x8x32xf32> to vector<8x32xf32>
    %529 = vector.shape_cast %526 : vector<8x32xf32> to vector<1x8x32xf32>
    tpu.vector_store %arg19[%c7_183, %c0_184, %c0_185], %529 {strides = array<i32>} : memref<8x8x32xf32, #tpu.memory_space<vmem>>, vector<1x8x32xf32>,
    %c7_186 = arith.constant 7 : index
    %c0_187 = arith.constant 0 : index
    %c0_188 = arith.constant 0 : index
    %530 = vector.load %arg18[%c7_186, %c0_187, %c0_188] : memref<8x8x128xf32, #tpu.memory_space<vmem>>, vector<1x8x128xf32>
    %531 = vector.shape_cast %530 : vector<1x8x128xf32> to vector<8x128xf32>
    %cst_189 = arith.constant dense<0.000000e+00> : vector<8x128xf32>
    %532 = tpu.matmul %490, %19, %cst_189 {dimension_numbers = #tpu.dot_dimension_numbers<[1], [0], [0], [1], [0, 0, 1, 1], [], []>} : vector<8x32xf32>, vector<32x128xf32>, vector<8x128xf32> -> vector<8x128xf32>
    %533 = arith.addf %531, %532 : vector<8x128xf32>
    %534 = arith.negf %533 : vector<8x128xf32>
    %535 = math.exp %534 : vector<8x128xf32>
    %cst_190 = arith.constant 1.000000e+00 : f32
    %536 = vector.broadcast %cst_190 : f32 to vector<8x128xf32>
    %537 = arith.addf %536, %535 : vector<8x128xf32>
    %538 = arith.divf %536, %537 : vector<8x128xf32>
    %539 = vector.extract_strided_slice %538 {offsets = [0, 0], sizes = [8, 32], strides = [1, 1]} : vector<8x128xf32> to vector<8x32xf32>
    %540 = vector.extract_strided_slice %538 {offsets = [0, 32], sizes = [8, 32], strides = [1, 1]} : vector<8x128xf32> to vector<8x32xf32>
    %541 = vector.extract_strided_slice %538 {offsets = [0, 96], sizes = [8, 32], strides = [1, 1]} : vector<8x128xf32> to vector<8x32xf32>
    %542 = vector.extract_strided_slice %533 {offsets = [0, 64], sizes = [8, 32], strides = [1, 1]} : vector<8x128xf32> to vector<8x32xf32>
    %543 = math.tanh %542 : vector<8x32xf32>
    %544 = arith.mulf %540, %494 : vector<8x32xf32>
    %545 = arith.mulf %539, %543 : vector<8x32xf32>
    %546 = arith.addf %544, %545 : vector<8x32xf32>
    %547 = math.tanh %546 : vector<8x32xf32>
    %548 = arith.mulf %541, %547 : vector<8x32xf32>
    %c7_191 = arith.constant 7 : index
    %c0_192 = arith.constant 0 : index
    %c0_193 = arith.constant 0 : index
    %549 = vector.load %arg4[%c7_191, %c0_192, %c0_193] : memref<8x8x1xf32, #tpu.memory_space<vmem>>, vector<1x8x1xf32>
    %550 = vector.shape_cast %549 : vector<1x8x1xf32> to vector<8x1xf32>
    %551 = arith.subf %548, %490 : vector<8x32xf32>
    %552 = vector.broadcast %550 : vector<8x1xf32> to vector<8x32xf32>
    %553 = arith.mulf %552, %551 : vector<8x32xf32>
    %554 = arith.addf %490, %553 : vector<8x32xf32>
    %555 = vector.broadcast %550 : vector<8x1xf32> to vector<8x32xf32>
    %556 = arith.mulf %555, %548 : vector<8x32xf32>
    %c0_194 = arith.constant 0 : index
    %c0_195 = arith.constant 0 : index
    %c0_196 = arith.constant 0 : index
    %557 = vector.load %arg20[%c0_194, %c0_195, %c0_196] : memref<8x8x32xf32, #tpu.memory_space<vmem>>, vector<1x8x32xf32>
    %558 = vector.shape_cast %557 : vector<1x8x32xf32> to vector<8x32xf32>
    %559 = vector.shape_cast %556 : vector<8x32xf32> to vector<1x8x32xf32>
    tpu.vector_store %arg20[%c0_194, %c0_195, %c0_196], %559 {strides = array<i32>} : memref<8x8x32xf32, #tpu.memory_space<vmem>>, vector<1x8x32xf32>,
    %c0_197 = arith.constant 0 : index
    %c0_198 = arith.constant 0 : index
    %c0_199 = arith.constant 0 : index
    %560 = vector.load %arg19[%c0_197, %c0_198, %c0_199] : memref<8x8x32xf32, #tpu.memory_space<vmem>>, vector<8x8x32xf32>
    %561 = vector.shape_cast %560 : vector<8x8x32xf32> to vector<64x32xf32>
    %562 = arith.truncf %561 : vector<64x32xf32> to vector<64x32xbf16>
    %c0_200 = arith.constant 0 : index
    %c0_201 = arith.constant 0 : index
    %c0_202 = arith.constant 0 : index
    %563 = vector.load %arg20[%c0_200, %c0_201, %c0_202] : memref<8x8x32xf32, #tpu.memory_space<vmem>>, vector<8x8x32xf32>
    %564 = vector.shape_cast %563 : vector<8x8x32xf32> to vector<64x32xf32>
    %565 = arith.truncf %564 : vector<64x32xf32> to vector<64x32xbf16>
    %c0_203 = arith.constant 0 : index
    %c0_204 = arith.constant 0 : index
    %566 = vector.load %arg11[%c0_203, %c0_204] : memref<32x128xbf16, #tpu.memory_space<vmem>>, vector<32x128xbf16>
    %cst_205 = arith.constant dense<0.000000e+00> : vector<64x128xf32>
    %567 = tpu.matmul %562, %566, %cst_205 {dimension_numbers = #tpu.dot_dimension_numbers<[1], [0], [0], [1], [0, 0, 1, 1], [], []>} : vector<64x32xbf16>, vector<32x128xbf16>, vector<64x128xf32> -> vector<64x128xf32>
    %c0_206 = arith.constant 0 : index
    %c0_207 = arith.constant 0 : index
    %568 = vector.load %arg12[%c0_206, %c0_207] : memref<32x128xbf16, #tpu.memory_space<vmem>>, vector<32x128xbf16>
    %cst_208 = arith.constant dense<0.000000e+00> : vector<64x128xf32>
    %569 = tpu.matmul %565, %568, %cst_208 {dimension_numbers = #tpu.dot_dimension_numbers<[1], [0], [0], [1], [0, 0, 1, 1], [], []>} : vector<64x32xbf16>, vector<32x128xbf16>, vector<64x128xf32> -> vector<64x128xf32>
    %570 = arith.addf %567, %569 : vector<64x128xf32>
    %571 = vector.shape_cast %570 : vector<64x128xf32> to vector<8x8x128xf32>
    %c0_209 = arith.constant 0 : index
    %c0_210 = arith.constant 0 : index
    %c0_211 = arith.constant 0 : index
    %572 = vector.load %arg15[%c0_209, %c0_210, %c0_211] : memref<8x8x128xf32, #tpu.memory_space<vmem>>, vector<8x8x128xf32>
    tpu.vector_store %arg15[%c0_209, %c0_210, %c0_211], %571 {strides = array<i32>} : memref<8x8x128xf32, #tpu.memory_space<vmem>>, vector<8x8x128xf32>,
    %573 = arith.truncf %524 : vector<8x32xf32> to vector<8x32xbf16>
    %c0_212 = arith.constant 0 : index
    %c0_213 = arith.constant 0 : index
    %574 = vector.load %arg13[%c0_212, %c0_213] : memref<32x128xbf16, #tpu.memory_space<vmem>>, vector<32x128xbf16>
    %cst_214 = arith.constant dense<0.000000e+00> : vector<8x128xf32>
    %575 = tpu.matmul %573, %574, %cst_214 {dimension_numbers = #tpu.dot_dimension_numbers<[1], [0], [0], [1], [0, 0, 1, 1], [], []>} : vector<8x32xbf16>, vector<32x128xbf16>, vector<8x128xf32> -> vector<8x128xf32>
    %576 = arith.truncf %554 : vector<8x32xf32> to vector<8x32xbf16>
    %c0_215 = arith.constant 0 : index
    %c0_216 = arith.constant 0 : index
    %577 = vector.load %arg14[%c0_215, %c0_216] : memref<32x128xbf16, #tpu.memory_space<vmem>>, vector<32x128xbf16>
    %cst_217 = arith.constant dense<0.000000e+00> : vector<8x128xf32>
    %578 = tpu.matmul %576, %577, %cst_217 {dimension_numbers = #tpu.dot_dimension_numbers<[1], [0], [0], [1], [0, 0, 1, 1], [], []>} : vector<8x32xbf16>, vector<32x128xbf16>, vector<8x128xf32> -> vector<8x128xf32>
    %579 = arith.addf %575, %578 : vector<8x128xf32>
    %c0_218 = arith.constant 0 : index
    %c0_219 = arith.constant 0 : index
    %580 = vector.load %arg16[%c0_218, %c0_219] : memref<8x128xf32, #tpu.memory_space<vmem>>, vector<8x128xf32>
    tpu.vector_store %arg16[%c0_218, %c0_219], %579 {strides = array<i32>} : memref<8x128xf32, #tpu.memory_space<vmem>>, vector<8x128xf32>,
    return
  }
  func.func @transform_0(%arg0: i32) -> (i32, i32, i32) {
    %c0_i32 = arith.constant 0 : i32
    %c0_i32_0 = arith.constant 0 : i32
    %c0_i32_1 = arith.constant 0 : i32
    %c0_i32_2 = arith.constant 0 : i32
    return %c0_i32, %c0_i32_0, %c0_i32_1 : i32, i32, i32
  }
  func.func @transform_1(%arg0: i32) -> (i32, i32, i32) {
    %c0_i32 = arith.constant 0 : i32
    %c0_i32_0 = arith.constant 0 : i32
    %c0_i32_1 = arith.constant 0 : i32
    %c0_i32_2 = arith.constant 0 : i32
    return %c0_i32, %c0_i32_0, %c0_i32_1 : i32, i32, i32
  }
  func.func @transform_2(%arg0: i32) -> (i32, i32, i32) {
    %c0_i32 = arith.constant 0 : i32
    %c0_i32_0 = arith.constant 0 : i32
    %c0_i32_1 = arith.constant 0 : i32
    %c0_i32_2 = arith.constant 0 : i32
    return %c0_i32, %c0_i32_0, %c0_i32_1 : i32, i32, i32
  }
  func.func @transform_3(%arg0: i32) -> (i32, i32, i32) {
    %c0_i32 = arith.constant 0 : i32
    %c0_i32_0 = arith.constant 0 : i32
    %c0_i32_1 = arith.constant 0 : i32
    %c0_i32_2 = arith.constant 0 : i32
    return %c0_i32, %c0_i32_0, %c0_i32_1 : i32, i32, i32
  }
  func.func @transform_4(%arg0: i32) -> (i32, i32) {
    %c0_i32 = arith.constant 0 : i32
    %c0_i32_0 = arith.constant 0 : i32
    %c0_i32_1 = arith.constant 0 : i32
    return %c0_i32, %c0_i32_0 : i32, i32
  }
  func.func @transform_5(%arg0: i32) -> (i32, i32) {
    %c0_i32 = arith.constant 0 : i32
    %c0_i32_0 = arith.constant 0 : i32
    %c0_i32_1 = arith.constant 0 : i32
    return %c0_i32, %c0_i32_0 : i32, i32
  }
  func.func @transform_6(%arg0: i32) -> (i32, i32) {
    %c0_i32 = arith.constant 0 : i32
    %c0_i32_0 = arith.constant 0 : i32
    %c0_i32_1 = arith.constant 0 : i32
    return %c0_i32, %c0_i32_0 : i32, i32
  }
  func.func @transform_7(%arg0: i32) -> (i32, i32) {
    %c0_i32 = arith.constant 0 : i32
    %c0_i32_0 = arith.constant 0 : i32
    %c0_i32_1 = arith.constant 0 : i32
    return %c0_i32, %c0_i32_0 : i32, i32
  }
  func.func @transform_8(%arg0: i32) -> (i32, i32) {
    %c0_i32 = arith.constant 0 : i32
    %c0_i32_0 = arith.constant 0 : i32
    %c0_i32_1 = arith.constant 0 : i32
    return %c0_i32, %c0_i32_0 : i32, i32
  }
  func.func @transform_9(%arg0: i32) -> (i32, i32) {
    %c0_i32 = arith.constant 0 : i32
    %c0_i32_0 = arith.constant 0 : i32
    %c0_i32_1 = arith.constant 0 : i32
    return %c0_i32, %c0_i32_0 : i32, i32
  }
  func.func @transform_10(%arg0: i32) -> (i32, i32) {
    %c0_i32 = arith.constant 0 : i32
    %c0_i32_0 = arith.constant 0 : i32
    %c0_i32_1 = arith.constant 0 : i32
    return %c0_i32, %c0_i32_0 : i32, i32
  }
  func.func @transform_11(%arg0: i32) -> (i32, i32) {
    %c0_i32 = arith.constant 0 : i32
    %c0_i32_0 = arith.constant 0 : i32
    %c0_i32_1 = arith.constant 0 : i32
    return %c0_i32, %c0_i32_0 : i32, i32
  }
  func.func @transform_12(%arg0: i32) -> (i32, i32) {
    %c0_i32 = arith.constant 0 : i32
    %c0_i32_0 = arith.constant 0 : i32
    %c0_i32_1 = arith.constant 0 : i32
    return %c0_i32, %c0_i32_0 : i32, i32
  }
  func.func @transform_13(%arg0: i32) -> (i32, i32) {
    %c0_i32 = arith.constant 0 : i32
    %c0_i32_0 = arith.constant 0 : i32
    %c0_i32_1 = arith.constant 0 : i32
    return %c0_i32, %c0_i32_0 : i32, i32
  }
  func.func @transform_14(%arg0: i32) -> (i32, i32, i32) {
    %c0_i32 = arith.constant 0 : i32
    %c0_i32_0 = arith.constant 0 : i32
    %c0_i32_1 = arith.constant 0 : i32
    %c0_i32_2 = arith.constant 0 : i32
    return %c0_i32, %c0_i32_0, %c0_i32_1 : i32, i32, i32
  }
  func.func @transform_15(%arg0: i32) -> (i32, i32) {
    %c0_i32 = arith.constant 0 : i32
    %c0_i32_0 = arith.constant 0 : i32
    %c0_i32_1 = arith.constant 0 : i32
    return %c0_i32, %c0_i32_0 : i32, i32
  }
}

</mosaic_0001>

<llo_original>
// kernel: reverse
$region0: #{reverse}
  %s0 = inlined_call_operand.vmem [shape: f32[8,8], index: 0, kind: input, shape index: {}]
  %s1 = inlined_call_operand.vmem [shape: f32[8,8], index: 1, kind: output, shape index: {}]
  $region1: #{reverse} parent=0
    #allocation0 [shape = 'u8[4096]{0}', space=vmem, size = 0x1000, scoped, tag = 'operand span for operand 0']
    #allocation1 [shape = 'u8[4096]{0}', space=vmem, size = 0x1000, scoped, tag = 'operand span for operand 1']
    // Predicated region
    $region2: #{reverse} parent=1 // pred_check
      _
    $region3: #{reverse} parent=1 // pred_check_branch
      %3 = sbr.rel (0) target = $region5
    $region4: #{reverse} parent=1 // pred_region
      // Predicated region
      $region6: #{reverse} parent=4 // pred_check
        _
      $region7: #{reverse} parent=4 // pred_check_branch
        %5 = sbr.rel (0) target = $region9
      $region8: #{reverse} parent=4 // pred_region
        // Predicated region
        $region21: #{reverse} parent=8 // pred_check
          _
        $region22: #{reverse} parent=8 // pred_check_branch
          %21 = sbr.rel (0) target = $region24
        $region23: #{reverse} parent=8 // pred_region
          loop: start=0, step=1, limit=1
          $region25: #{reverse} parent=23 // loop_pre_header
            _
          $region26: #{reverse} parent=23 // loop_header
            %s23 = sphi 0, %s27
            %p24 = scmp.ge.s32.totalorder %s23, 1
            %s28 = sphi %s0, %s0
            %s29 = sphi [#allocation0], [#allocation0]
          $region27: #{reverse} parent=23 // loop_header_branch
            %26 = sbr.rel (%p24) target = $region31
          $region28: #{reverse} parent=23 // loop_body
            %v30 = vld [vmem:[%s28] sm:$0xff]
            %31 = vst [vmem:[%s29] sm:$0xff] %v30
          $region29: #{reverse} parent=23 // loop_footer
            %s27 = sadd.s32 1, %s23
          $region30: #{reverse} parent=23 // loop_footer_branch
            %22 = sbr.rel target = $region26
          $region31: #{reverse} parent=23 // loop_exit
            _
        $region24: #{reverse} parent=8 // pred_fallthru
          _
        // Predicated region
        $region32: #{reverse} parent=8 // pred_check
          _
        $region33: #{reverse} parent=8 // pred_check_branch
          %33 = sbr.rel target = $region35
        $region34: #{reverse} parent=8 // pred_region
          _
        $region35: #{reverse} parent=8 // pred_fallthru
          _
      $region9: #{reverse} parent=4 // pred_fallthru
        _
      // Predicated region
      $region10: #{reverse} parent=4 // pred_check
        _
      $region11: #{reverse} parent=4 // pred_check_branch
        %7 = sbr.rel target = $region13
      $region12: #{reverse} parent=4 // pred_region
        %s9 = ssub.s32 256, 1
        loop: start=0, step=1, limit=1
        $region14: #{reverse} parent=12 // loop_pre_header
          _
        $region15: #{reverse} parent=12 // loop_header
          %s11 = sphi 0, %s15
          %p12 = scmp.ge.s32.totalorder %s11, 1
          %s16 = sphi %s0, %s0
          %s17 = sphi [#allocation0], [#allocation0]
        $region16: #{reverse} parent=12 // loop_header_branch
          %14 = sbr.rel (%p12) target = $region20
        $region17: #{reverse} parent=12 // loop_body
          %v18 = vld [vmem:[%s16] sm:%s9]
          %19 = vst [vmem:[%s17] sm:%s9] %v18
        $region18: #{reverse} parent=12 // loop_footer
          %s15 = sadd.s32 1, %s11
        $region19: #{reverse} parent=12 // loop_footer_branch
          %10 = sbr.rel target = $region15
        $region20: #{reverse} parent=12 // loop_exit
          _
      $region13: #{reverse} parent=4 // pred_fallthru
        _
    $region5: #{reverse} parent=1 // pred_fallthru
      _
    %34 = vnop
    %s35 = scalar_lea.vmem [#allocation0], 7
    %v36 = vld [vmem:[%s35] ss:$-1 sm:$0xff]
    %37 = vst [vmem:[#allocation1] sm:$0xff] %v36
    // Predicated region
    $region36: #{reverse} parent=1 // pred_check
      _
    $region37: #{reverse} parent=1 // pred_check_branch
      %39 = sbr.rel (0) target = $region39
    $region38: #{reverse} parent=1 // pred_region
      // Predicated region
      $region40: #{reverse} parent=38 // pred_check
        _
      $region41: #{reverse} parent=38 // pred_check_branch
        %41 = sbr.rel (0) target = $region43
      $region42: #{reverse} parent=38 // pred_region
        // Predicated region
        $region55: #{reverse} parent=42 // pred_check
          _
        $region56: #{reverse} parent=42 // pred_check_branch
          %57 = sbr.rel (0) target = $region58
        $region57: #{reverse} parent=42 // pred_region
          loop: start=0, step=1, limit=1
          $region59: #{reverse} parent=57 // loop_pre_header
            _
          $region60: #{reverse} parent=57 // loop_header
            %s59 = sphi 0, %s63
            %p60 = scmp.ge.s32.totalorder %s59, 1
            %s64 = sphi [#allocation1], [#allocation1]
            %s65 = sphi %s1, %s1
          $region61: #{reverse} parent=57 // loop_header_branch
            %62 = sbr.rel (%p60) target = $region65
          $region62: #{reverse} parent=57 // loop_body
            %v66 = vld [vmem:[%s64] sm:$0xff]
            %67 = vst [vmem:[%s65] sm:$0xff] %v66
          $region63: #{reverse} parent=57 // loop_footer
            %s63 = sadd.s32 1, %s59
          $region64: #{reverse} parent=57 // loop_footer_branch
            %58 = sbr.rel target = $region60
          $region65: #{reverse} parent=57 // loop_exit
            _
        $region58: #{reverse} parent=42 // pred_fallthru
          _
        // Predicated region
        $region66: #{reverse} parent=42 // pred_check
          _
        $region67: #{reverse} parent=42 // pred_check_branch
          %69 = sbr.rel target = $region69
        $region68: #{reverse} parent=42 // pred_region
          _
        $region69: #{reverse} parent=42 // pred_fallthru
          _
      $region43: #{reverse} parent=38 // pred_fallthru
        _
      // Predicated region
      $region44: #{reverse} parent=38 // pred_check
        _
      $region45: #{reverse} parent=38 // pred_check_branch
        %43 = sbr.rel target = $region47
      $region46: #{reverse} parent=38 // pred_region
        %s45 = ssub.s32 256, 1
        loop: start=0, step=1, limit=1
        $region48: #{reverse} parent=46 // loop_pre_header
          _
        $region49: #{reverse} parent=46 // loop_header
          %s47 = sphi 0, %s51
          %p48 = scmp.ge.s32.totalorder %s47, 1
          %s52 = sphi [#allocation1], [#allocation1]
          %s53 = sphi %s1, %s1
        $region50: #{reverse} parent=46 // loop_header_branch
          %50 = sbr.rel (%p48) target = $region54
        $region51: #{reverse} parent=46 // loop_body
          %v54 = vld [vmem:[%s52] sm:%s45]
          %55 = vst [vmem:[%s53] sm:%s45] %v54
        $region52: #{reverse} parent=46 // loop_footer
          %s51 = sadd.s32 1, %s47
        $region53: #{reverse} parent=46 // loop_footer_branch
          %46 = sbr.rel target = $region49
        $region54: #{reverse} parent=46 // loop_exit
          _
      $region47: #{reverse} parent=38 // pred_fallthru
        _
    $region39: #{reverse} parent=1 // pred_fallthru
      _
    %70 = vnop

// kernel: model_ias_forward.1
$region0: #{model_ias_forward.1}
  #allocation0 [shape = 'u32[]', space=smem, size = 0x4, offset = 0x4, fixed_abs, tag = 'smem constant byte address 0x4 - core index']
  #allocation1 [shape = 'u32[72,128]{1,0:T(1,128)}', space=vmem, size = 0x9000, scoped, tag = 'internal scratch']
  #allocation2 [shape = 'f32[8,8,128]{2,1,0:T(8,128)}', space=vmem, size = 0x8000, scoped, tag = 'scratch operand']
  #allocation3 [shape = 'f32[8,8,128]{2,1,0:T(8,128)}', space=vmem, size = 0x8000, scoped, tag = 'scratch operand']
  #allocation4 [shape = 'f32[8,8,32]{2,1,0:T(8,128)}', space=vmem, size = 0x8000, scoped, tag = 'scratch operand']
  #allocation5 [shape = 'f32[8,8,32]{2,1,0:T(8,128)}', space=vmem, size = 0x8000, scoped, tag = 'scratch operand']
  %s0 = inlined_call_operand.vmem [shape: bf16[8,8,32], index: 0, kind: input, shape index: {}]
  %s1 = inlined_call_operand.vmem [shape: bf16[8,8,32], index: 1, kind: input, shape index: {}]
  %s2 = inlined_call_operand.vmem [shape: f32[8,8,1], index: 2, kind: input, shape index: {}]
  %s3 = inlined_call_operand.vmem [shape: f32[8,8,1], index: 3, kind: input, shape index: {}]
  %s4 = inlined_call_operand.vmem [shape: bf16[32,128], index: 4, kind: input, shape index: {}]
  %s5 = inlined_call_operand.vmem [shape: bf16[32,128], index: 5, kind: input, shape index: {}]
  %s6 = inlined_call_operand.vmem [shape: f32[1,128], index: 6, kind: input, shape index: {}]
  %s7 = inlined_call_operand.vmem [shape: f32[1,128], index: 7, kind: input, shape index: {}]
  %s8 = inlined_call_operand.vmem [shape: f32[32,128], index: 8, kind: input, shape index: {}]
  %s9 = inlined_call_operand.vmem [shape: f32[32,128], index: 9, kind: input, shape index: {}]
  %s10 = inlined_call_operand.vmem [shape: bf16[32,128], index: 10, kind: input, shape index: {}]
  %s11 = inlined_call_operand.vmem [shape: bf16[32,128], index: 11, kind: input, shape index: {}]
  %s12 = inlined_call_operand.vmem [shape: bf16[32,128], index: 12, kind: input, shape index: {}]
  %s13 = inlined_call_operand.vmem [shape: bf16[32,128], index: 13, kind: input, shape index: {}]
  %s14 = inlined_call_operand.vmem [shape: f32[8,8,128], index: 14, kind: output, shape index: {0}]
  %s15 = inlined_call_operand.vmem [shape: f32[8,128], index: 15, kind: output, shape index: {1}]
  %16 = xla_tuple %s14, %s15
  %s17 = sld [smem:[#allocation0]]
  $region74: #{model_ias_forward.1} parent=0
    _
  %s19 = ssub.s32 1, %s17
  %s20 = scalar_select 0, %s19, %s17
  // Predicated region
  $region2: #{model_ias_forward.1} parent=0 // pred_check
    _
  $region3: #{model_ias_forward.1} parent=0 // pred_check_branch
    %22 = sbr.rel (0) target = $region5
  $region4: #{model_ias_forward.1} parent=0 // pred_region
    _
  $region5: #{model_ias_forward.1} parent=0 // pred_fallthru
    _
  // Predicated region
  $region6: #{model_ias_forward.1} parent=0 // pred_check
    _
  $region7: #{model_ias_forward.1} parent=0 // pred_check_branch
    %24 = sbr.rel (0) target = $region9
  $region8: #{model_ias_forward.1} parent=0 // pred_region
    _
  $region9: #{model_ias_forward.1} parent=0 // pred_fallthru
    _
  // Predicated region
  $region10: #{model_ias_forward.1} parent=0 // pred_check
    _
  $region11: #{model_ias_forward.1} parent=0 // pred_check_branch
    %26 = sbr.rel (0) target = $region13
  $region12: #{model_ias_forward.1} parent=0 // pred_region
    _
  $region13: #{model_ias_forward.1} parent=0 // pred_fallthru
    _
  // Predicated region
  $region14: #{model_ias_forward.1} parent=0 // pred_check
    _
  $region15: #{model_ias_forward.1} parent=0 // pred_check_branch
    %28 = sbr.rel (0) target = $region17
  $region16: #{model_ias_forward.1} parent=0 // pred_region
    _
  $region17: #{model_ias_forward.1} parent=0 // pred_fallthru
    _
  // Predicated region
  $region18: #{model_ias_forward.1} parent=0 // pred_check
    _
  $region19: #{model_ias_forward.1} parent=0 // pred_check_branch
    %30 = sbr.rel (0) target = $region21
  $region20: #{model_ias_forward.1} parent=0 // pred_region
    _
  $region21: #{model_ias_forward.1} parent=0 // pred_fallthru
    _
  // Predicated region
  $region22: #{model_ias_forward.1} parent=0 // pred_check
    _
  $region23: #{model_ias_forward.1} parent=0 // pred_check_branch
    %32 = sbr.rel (0) target = $region25
  $region24: #{model_ias_forward.1} parent=0 // pred_region
    _
  $region25: #{model_ias_forward.1} parent=0 // pred_fallthru
    _
  // Predicated region
  $region26: #{model_ias_forward.1} parent=0 // pred_check
    _
  $region27: #{model_ias_forward.1} parent=0 // pred_check_branch
    %34 = sbr.rel (0) target = $region29
  $region28: #{model_ias_forward.1} parent=0 // pred_region
    _
  $region29: #{model_ias_forward.1} parent=0 // pred_fallthru
    _
  // Predicated region
  $region30: #{model_ias_forward.1} parent=0 // pred_check
    _
  $region31: #{model_ias_forward.1} parent=0 // pred_check_branch
    %36 = sbr.rel (0) target = $region33
  $region32: #{model_ias_forward.1} parent=0 // pred_region
    _
  $region33: #{model_ias_forward.1} parent=0 // pred_fallthru
    _
  // Predicated region
  $region34: #{model_ias_forward.1} parent=0 // pred_check
    _
  $region35: #{model_ias_forward.1} parent=0 // pred_check_branch
    %38 = sbr.rel (0) target = $region37
  $region36: #{model_ias_forward.1} parent=0 // pred_region
    _
  $region37: #{model_ias_forward.1} parent=0 // pred_fallthru
    _
  // Predicated region
  $region38: #{model_ias_forward.1} parent=0 // pred_check
    _
  $region39: #{model_ias_forward.1} parent=0 // pred_check_branch
    %40 = sbr.rel (0) target = $region41
  $region40: #{model_ias_forward.1} parent=0 // pred_region
    _
  $region41: #{model_ias_forward.1} parent=0 // pred_fallthru
    _
  // Predicated region
  $region42: #{model_ias_forward.1} parent=0 // pred_check
    _
  $region43: #{model_ias_forward.1} parent=0 // pred_check_branch
    %42 = sbr.rel (0) target = $region45
  $region44: #{model_ias_forward.1} parent=0 // pred_region
    _
  $region45: #{model_ias_forward.1} parent=0 // pred_fallthru
    _
  // Predicated region
  $region46: #{model_ias_forward.1} parent=0 // pred_check
    _
  $region47: #{model_ias_forward.1} parent=0 // pred_check_branch
    %44 = sbr.rel (0) target = $region49
  $region48: #{model_ias_forward.1} parent=0 // pred_region
    _
  $region49: #{model_ias_forward.1} parent=0 // pred_fallthru
    _
  // Predicated region
  $region50: #{model_ias_forward.1} parent=0 // pred_check
    _
  $region51: #{model_ias_forward.1} parent=0 // pred_check_branch
    %46 = sbr.rel (0) target = $region53
  $region52: #{model_ias_forward.1} parent=0 // pred_region
    _
  $region53: #{model_ias_forward.1} parent=0 // pred_fallthru
    _
  // Predicated region
  $region54: #{model_ias_forward.1} parent=0 // pred_check
    _
  $region55: #{model_ias_forward.1} parent=0 // pred_check_branch
    %48 = sbr.rel (0) target = $region57
  $region56: #{model_ias_forward.1} parent=0 // pred_region
    _
  $region57: #{model_ias_forward.1} parent=0 // pred_fallthru
    _
  %v50 = vld [vmem:[%s0] sm:$0xf]
  %v51 = vld [vmem:[%s0 + $0x4] sm:$0xf]
  %v52 = vld [vmem:[%s0 + $0x8] sm:$0xf]
  %v53 = vld [vmem:[%s0 + $0xc] sm:$0xf]
  %v54 = vld [vmem:[%s0 + $0x10] sm:$0xf]
  %v55 = vld [vmem:[%s0 + $0x14] sm:$0xf]
  %v56 = vld [vmem:[%s0 + $0x18] sm:$0xf]
  %v57 = vld [vmem:[%s0 + $0x1c] sm:$0xf]
  %v58 = vld [vmem:[%s1] sm:$0xf]
  %v59 = vld [vmem:[%s1 + $0x4] sm:$0xf]
  %v60 = vld [vmem:[%s1 + $0x8] sm:$0xf]
  %v61 = vld [vmem:[%s1 + $0xc] sm:$0xf]
  %v62 = vld [vmem:[%s1 + $0x10] sm:$0xf]
  %v63 = vld [vmem:[%s1 + $0x14] sm:$0xf]
  %v64 = vld [vmem:[%s1 + $0x18] sm:$0xf]
  %v65 = vld [vmem:[%s1 + $0x1c] sm:$0xf]
  %v66 = vld [vmem:[%s4] sm:$0xf]
  %v67 = vld [vmem:[%s4 + $0x4] sm:$0xf]
  %v68 = vld [vmem:[%s4 + $0x8] sm:$0xf]
  %v69 = vld [vmem:[%s4 + $0xc] sm:$0xf]
  %v70 = vld [vmem:[%s6] sm:$0x1]
  %v72 = vperm.slane %v70, 0
  %v82 = vunpack.c.l.b16 %v50
  %v83 = vunpack.c.l.b16 %v51
  %v84 = vunpack.c.l.b16 %v52
  %v85 = vunpack.c.l.b16 %v53
  %v86 = vunpack.c.l.b16 %v54
  %v87 = vunpack.c.l.b16 %v55
  %v88 = vunpack.c.l.b16 %v56
  %v89 = vunpack.c.l.b16 %v57
  %v90 = vpack.c.b16 %v83, %v82
  %v91 = vpack.c.b16 %v85, %v84
  %v92 = vpack.c.b16 %v87, %v86
  %v93 = vpack.c.b16 %v89, %v88
  %v98 = vunpack.c.l.b16 %v66
  %v99 = vunpack.c.l.b16 %v67
  %v100 = vunpack.c.l.b16 %v68
  %v101 = vunpack.c.l.b16 %v69
  %v102 = vpack.c.b16 %v99, %v98
  %v103 = vpack.c.b16 %v101, %v100
  %vm106 = vcmask 261120
  %v108 = vsel %vm106, %v90, 0
  %v111 = vsel %vm106, %v91, 0
  %v114 = vsel %vm106, %v92, 0
  %v117 = vsel %vm106, %v93, 0
  %119 = vmatpush.bf16.msra.mxu0 0
  %120 = vmatpush.bf16.msra.mxu0 0
  %121 = vmatpush.bf16.msra.mxu0 0
  %122 = vmatpush.bf16.msra.mxu0 0
  %123 = vmatpush.bf16.msra.mxu0 0
  %124 = vmatpush.bf16.msra.mxu0 0
  %125 = vmatpush.bf16.msra.mxu0 %v103
  %126 = vmatpush.bf16.msra.mxu0 %v102
  %127 = vmatmul.bf16.gmra.mxu0 %v108
  %v128 = vpop.f32.mrf.mxu0
  %v129 = vadd.f32 %v72, %v128
  %v130 = vpop.f32.mrf.mxu0
  %v131 = vadd.f32 %v72, %v130
  %132 = vmatmul.bf16.gmra.mxu0 %v111
  %v133 = vpop.f32.mrf.mxu0
  %v134 = vadd.f32 %v72, %v133
  %v135 = vpop.f32.mrf.mxu0
  %v136 = vadd.f32 %v72, %v135
  %137 = vmatmul.bf16.gmra.mxu0 %v114
  %v138 = vpop.f32.mrf.mxu0
  %v139 = vadd.f32 %v72, %v138
  %v140 = vpop.f32.mrf.mxu0
  %v141 = vadd.f32 %v72, %v140
  %142 = vmatmul.bf16.gmra.mxu0 %v117
  %v143 = vpop.f32.mrf.mxu0
  %v144 = vadd.f32 %v72, %v143
  %v145 = vpop.f32.mrf.mxu0
  %v146 = vadd.f32 %v72, %v145
  %147 = vdwg.mxu0
  %148 = vst [vmem:[#allocation2] sm:$0xff] %v129
  %149 = vst [vmem:[#allocation2 + $0x8] sm:$0xff] %v131
  %150 = vst [vmem:[#allocation2 + $0x10] sm:$0xff] %v134
  %151 = vst [vmem:[#allocation2 + $0x18] sm:$0xff] %v136
  %152 = vst [vmem:[#allocation2 + $0x20] sm:$0xff] %v139
  %153 = vst [vmem:[#allocation2 + $0x28] sm:$0xff] %v141
  %154 = vst [vmem:[#allocation2 + $0x30] sm:$0xff] %v144
  %155 = vst [vmem:[#allocation2 + $0x38] sm:$0xff] %v146
  %v156 = vld [vmem:[%s5] sm:$0xf]
  %v157 = vld [vmem:[%s5 + $0x4] sm:$0xf]
  %v158 = vld [vmem:[%s5 + $0x8] sm:$0xf]
  %v159 = vld [vmem:[%s5 + $0xc] sm:$0xf]
  %v160 = vld [vmem:[%s7] sm:$0x1]
  %v162 = vperm.slane %v160, 0
  %v172 = vunpack.c.l.b16 %v58
  %v173 = vunpack.c.l.b16 %v59
  %v174 = vunpack.c.l.b16 %v60
  %v175 = vunpack.c.l.b16 %v61
  %v176 = vunpack.c.l.b16 %v62
  %v177 = vunpack.c.l.b16 %v63
  %v178 = vunpack.c.l.b16 %v64
  %v179 = vunpack.c.l.b16 %v65
  %v180 = vpack.c.b16 %v173, %v172
  %v181 = vpack.c.b16 %v175, %v174
  %v182 = vpack.c.b16 %v177, %v176
  %v183 = vpack.c.b16 %v179, %v178
  %v188 = vunpack.c.l.b16 %v156
  %v189 = vunpack.c.l.b16 %v157
  %v190 = vunpack.c.l.b16 %v158
  %v191 = vunpack.c.l.b16 %v159
  %v192 = vpack.c.b16 %v189, %v188
  %v193 = vpack.c.b16 %v191, %v190
  %v197 = vsel %vm106, %v180, 0
  %v200 = vsel %vm106, %v181, 0
  %v203 = vsel %vm106, %v182, 0
  %v206 = vsel %vm106, %v183, 0
  %208 = vmatpush.bf16.msra.mxu0 0
  %209 = vmatpush.bf16.msra.mxu0 0
  %210 = vmatpush.bf16.msra.mxu0 0
  %211 = vmatpush.bf16.msra.mxu0 0
  %212 = vmatpush.bf16.msra.mxu0 0
  %213 = vmatpush.bf16.msra.mxu0 0
  %214 = vmatpush.bf16.msra.mxu0 %v193
  %215 = vmatpush.bf16.msra.mxu0 %v192
  %216 = vmatmul.bf16.gmra.mxu0 %v197
  %v217 = vpop.f32.mrf.mxu0
  %v218 = vadd.f32 %v162, %v217
  %v219 = vpop.f32.mrf.mxu0
  %v220 = vadd.f32 %v162, %v219
  %221 = vmatmul.bf16.gmra.mxu0 %v200
  %v222 = vpop.f32.mrf.mxu0
  %v223 = vadd.f32 %v162, %v222
  %v224 = vpop.f32.mrf.mxu0
  %v225 = vadd.f32 %v162, %v224
  %226 = vmatmul.bf16.gmra.mxu0 %v203
  %v227 = vpop.f32.mrf.mxu0
  %v228 = vadd.f32 %v162, %v227
  %v229 = vpop.f32.mrf.mxu0
  %v230 = vadd.f32 %v162, %v229
  %231 = vmatmul.bf16.gmra.mxu0 %v206
  %v232 = vpop.f32.mrf.mxu0
  %v233 = vadd.f32 %v162, %v232
  %v234 = vpop.f32.mrf.mxu0
  %v235 = vadd.f32 %v162, %v234
  %236 = vdwg.mxu0
  %237 = vst [vmem:[#allocation3] sm:$0xff] %v218
  %238 = vst [vmem:[#allocation3 + $0x8] sm:$0xff] %v220
  %239 = vst [vmem:[#allocation3 + $0x10] sm:$0xff] %v223
  %240 = vst [vmem:[#allocation3 + $0x18] sm:$0xff] %v225
  %241 = vst [vmem:[#allocation3 + $0x20] sm:$0xff] %v228
  %242 = vst [vmem:[#allocation3 + $0x28] sm:$0xff] %v230
  %243 = vst [vmem:[#allocation3 + $0x30] sm:$0xff] %v233
  %244 = vst [vmem:[#allocation3 + $0x38] sm:$0xff] %v235
  %v245 = vld [vmem:[%s8] sm:$0xff]
  %v246 = vld [vmem:[%s8 + $0x8] sm:$0xff]
  %v247 = vld [vmem:[%s8 + $0x10] sm:$0xff]
  %v248 = vld [vmem:[%s8 + $0x18] sm:$0xff]
  %v249 = vld [vmem:[%s9] sm:$0xff]
  %v250 = vld [vmem:[%s9 + $0x8] sm:$0xff]
  %v251 = vld [vmem:[%s9 + $0x10] sm:$0xff]
  %v252 = vld [vmem:[%s9 + $0x18] sm:$0xff]
  %v253 = vld [vmem:[#allocation2] sm:$0xff]
  %v255 = vsel %vm106, 0.0, 0
  %257 = vmatpush.msra.mxu0 0.0
  %258 = vmatpush.msra.mxu0 0.0
  %259 = vmatpush.msra.mxu0 0.0
  %260 = vmatpush.msra.mxu0 0.0
  %261 = vmatpush.msra.mxu0 0.0
  %262 = vmatpush.msra.mxu0 0.0
  %263 = vmatpush.msra.mxu0 0.0
  %264 = vmatpush.msra.mxu0 0.0
  %265 = vmatpush.msra.mxu0 0.0
  %266 = vmatpush.msra.mxu0 0.0
  %267 = vmatpush.msra.mxu0 0.0
  %268 = vmatpush.msra.mxu0 0.0
  %269 = vmatpush.msra.mxu0 %v248
  %270 = vmatpush.msra.mxu0 %v247
  %271 = vmatpush.msra.mxu0 %v246
  %272 = vmatpush.msra.mxu0 %v245
  %273 = vmatmul.f32.gmra.mxu0 %v255
  %v274 = vpop.f32.mrf.mxu0
  %v275 = vadd.f32 0.0, %v274
  %276 = vdwg.mxu0
  %v277 = vadd.f32 %v253, %v275
  %v278 = vxor.u32 %v277, 2147483648
  %v279 = vmul.f32 %v278, 1.442695
  %v280 = vpow.pop %v279
  %v281 = vadd.f32 %v280, 1.0
  %v282 = vrcp.pop %v281
  %v283 = vmul.f32 %v281, %v282
  %v284 = vsub.f32 1.0, %v283
  %v285 = vmul.f32 %v282, %v284
  %v286 = vadd.f32 %v282, %v285
  %vm287 = vweird.f32 %v281
  %vm288 = vweird.f32 %v282
  %vm289 = vmor %vm287, %vm288
  %v290 = vsel %vm289, %v282, %v286
  %v291 = vand.u32 2147483647, %v281
  %vm292 = vcmp.eq.f32.partialorder %v291, 8.507059e+37
  %v293 = vand.u32 %v281, 2147483648
  %v294 = vor.u32 1.1754944e-38, %v293
  %v295 = vsel %vm292, %v294, %v290
  %v296 = vmul.f32 1.0, %v295
  %v297 = vtanh.pop %v277
  %v298 = vmul.f32 %v296, 0.0
  %300 = vrot.lane.b32.xlu0 %v297, 64
  %v301 = vpop.permute.xlu0 %300
  %v303 = vmul.f32 %v296, %v301
  %305 = vrot.lane.b32.xlu0 %v303, 32
  %v306 = vpop.permute.xlu0 %305
  %v308 = vadd.f32 %v298, %v306
  %v309 = vtanh.pop %v308
  %311 = vrot.lane.b32.xlu0 %v309, 64
  %v312 = vpop.permute.xlu0 %311
  %v314 = vmul.f32 %v296, %v312
  %v315 = vld [vmem:[%s2] sm:$0xff]
  %317 = vset.pattern.permute.xlu0 0
  %318 = vperm.xlu0 %317, %v315
  %v319 = vpop.permute.xlu0 %318
  %v321 = vmul.f32 %v319, %v314
  %v322 = vadd.f32 %v321, 0.0
  %v323 = vmul.f32 %v319, %v308
  %v324 = vadd.f32 %v323, 0.0
  %326 = vrot.lane.b32.xlu0 %v321, 32
  %v327 = vpop.permute.xlu0 %326
  %329 = vst.msk [vmem:[#allocation4] sm:$0xff] %vm106, %v327
  %v330 = vld [vmem:[#allocation3] sm:$0xff]
  %331 = vmatpush.msra.mxu0 0.0
  %332 = vmatpush.msra.mxu0 0.0
  %333 = vmatpush.msra.mxu0 0.0
  %334 = vmatpush.msra.mxu0 0.0
  %335 = vmatpush.msra.mxu0 0.0
  %336 = vmatpush.msra.mxu0 0.0
  %337 = vmatpush.msra.mxu0 0.0
  %338 = vmatpush.msra.mxu0 0.0
  %339 = vmatpush.msra.mxu0 0.0
  %340 = vmatpush.msra.mxu0 0.0
  %341 = vmatpush.msra.mxu0 0.0
  %342 = vmatpush.msra.mxu0 0.0
  %343 = vmatpush.msra.mxu0 %v252
  %344 = vmatpush.msra.mxu0 %v251
  %345 = vmatpush.msra.mxu0 %v250
  %346 = vmatpush.msra.mxu0 %v249
  %347 = vmatmul.f32.gmra.mxu0 %v255
  %v348 = vpop.f32.mrf.mxu0
  %v349 = vadd.f32 0.0, %v348
  %350 = vdwg.mxu0
  %v351 = vadd.f32 %v330, %v349
  %v352 = vxor.u32 %v351, 2147483648
  %v353 = vmul.f32 %v352, 1.442695
  %v354 = vpow.pop %v353
  %v355 = vadd.f32 %v354, 1.0
  %v356 = vrcp.pop %v355
  %v357 = vmul.f32 %v355, %v356
  %v358 = vsub.f32 1.0, %v357
  %v359 = vmul.f32 %v356, %v358
  %v360 = vadd.f32 %v356, %v359
  %vm361 = vweird.f32 %v355
  %vm362 = vweird.f32 %v356
  %vm363 = vmor %vm361, %vm362
  %v364 = vsel %vm363, %v356, %v360
  %v365 = vand.u32 2147483647, %v355
  %vm366 = vcmp.eq.f32.partialorder %v365, 8.507059e+37
  %v367 = vand.u32 %v355, 2147483648
  %v368 = vor.u32 1.1754944e-38, %v367
  %v369 = vsel %vm366, %v368, %v364
  %v370 = vmul.f32 1.0, %v369
  %v371 = vtanh.pop %v351
  %v372 = vmul.f32 %v370, 0.0
  %374 = vrot.lane.b32.xlu0 %v371, 64
  %v375 = vpop.permute.xlu0 %374
  %v377 = vmul.f32 %v370, %v375
  %379 = vrot.lane.b32.xlu0 %v377, 32
  %v380 = vpop.permute.xlu0 %379
  %v382 = vadd.f32 %v372, %v380
  %v383 = vtanh.pop %v382
  %385 = vrot.lane.b32.xlu0 %v383, 64
  %v386 = vpop.permute.xlu0 %385
  %v388 = vmul.f32 %v370, %v386
  %v389 = vld [vmem:[%s3] sm:$0xff]
  %391 = vset.pattern.permute.xlu0 0
  %392 = vperm.xlu0 %391, %v389
  %v393 = vpop.permute.xlu0 %392
  %v395 = vmul.f32 %v393, %v388
  %v396 = vadd.f32 %v395, 0.0
  %v397 = vmul.f32 %v393, %v382
  %v398 = vadd.f32 %v397, 0.0
  %400 = vrot.lane.b32.xlu0 %v395, 32
  %v401 = vpop.permute.xlu0 %400
  %s403 = scalar_lea.vmem [#allocation5], 56
  %404 = vst.msk [vmem:[%s403] sm:$0xff] %vm106, %v401
  %s405 = scalar_lea.vmem [#allocation2], 8
  %v406 = vld [vmem:[%s405] sm:$0xff]
  %408 = vrot.lane.b32.xlu0 %v322, 32
  %v409 = vpop.permute.xlu0 %408
  %v410 = vsel %vm106, %v409, 0
  %412 = vmatpush.msra.mxu0 0.0
  %413 = vmatpush.msra.mxu0 0.0
  %414 = vmatpush.msra.mxu0 0.0
  %415 = vmatpush.msra.mxu0 0.0
  %416 = vmatpush.msra.mxu0 0.0
  %417 = vmatpush.msra.mxu0 0.0
  %418 = vmatpush.msra.mxu0 0.0
  %419 = vmatpush.msra.mxu0 0.0
  %420 = vmatpush.msra.mxu0 0.0
  %421 = vmatpush.msra.mxu0 0.0
  %422 = vmatpush.msra.mxu0 0.0
  %423 = vmatpush.msra.mxu0 0.0
  %424 = vmatpush.msra.mxu0 %v248
  %425 = vmatpush.msra.mxu0 %v247
  %426 = vmatpush.msra.mxu0 %v246
  %427 = vmatpush.msra.mxu0 %v245
  %428 = vmatmul.f32.gmra.mxu0 %v410
  %v429 = vpop.f32.mrf.mxu0
  %v430 = vadd.f32 0.0, %v429
  %431 = vdwg.mxu0
  %v432 = vadd.f32 %v406, %v430
  %v433 = vxor.u32 %v432, 2147483648
  %v434 = vmul.f32 %v433, 1.442695
  %v435 = vpow.pop %v434
  %v436 = vadd.f32 %v435, 1.0
  %v437 = vrcp.pop %v436
  %v438 = vmul.f32 %v436, %v437
  %v439 = vsub.f32 1.0, %v438
  %v440 = vmul.f32 %v437, %v439
  %v441 = vadd.f32 %v437, %v440
  %vm442 = vweird.f32 %v436
  %vm443 = vweird.f32 %v437
  %vm444 = vmor %vm442, %vm443
  %v445 = vsel %vm444, %v437, %v441
  %v446 = vand.u32 2147483647, %v436
  %vm447 = vcmp.eq.f32.partialorder %v446, 8.507059e+37
  %v448 = vand.u32 %v436, 2147483648
  %v449 = vor.u32 1.1754944e-38, %v448
  %v450 = vsel %vm447, %v449, %v445
  %v451 = vmul.f32 1.0, %v450
  %v452 = vtanh.pop %v432
  %v453 = vmul.f32 %v451, %v324
  %455 = vrot.lane.b32.xlu0 %v452, 64
  %v456 = vpop.permute.xlu0 %455
  %v458 = vmul.f32 %v451, %v456
  %460 = vrot.lane.b32.xlu0 %v458, 32
  %v461 = vpop.permute.xlu0 %460
  %v463 = vadd.f32 %v453, %v461
  %v464 = vtanh.pop %v463
  %466 = vrot.lane.b32.xlu0 %v464, 64
  %v467 = vpop.permute.xlu0 %466
  %v469 = vmul.f32 %v451, %v467
  %s470 = scalar_lea.vmem %s2, 8
  %v471 = vld [vmem:[%s470] sm:$0xff]
  %v472 = vsub.f32 %v469, %v322
  %474 = vset.pattern.permute.xlu0 0
  %475 = vperm.xlu0 %474, %v471
  %v476 = vpop.permute.xlu0 %475
  %v478 = vmul.f32 %v476, %v472
  %v479 = vadd.f32 %v322, %v478
  %v480 = vsub.f32 %v463, %v324
  %v481 = vmul.f32 %v476, %v480
  %v482 = vadd.f32 %v324, %v481
  %v483 = vmul.f32 %v476, %v469
  %485 = vrot.lane.b32.xlu0 %v483, 32
  %v486 = vpop.permute.xlu0 %485
  %s488 = scalar_lea.vmem [#allocation4], 8
  %489 = vst.msk [vmem:[%s488] sm:$0xff] %vm106, %v486
  %s490 = scalar_lea.vmem [#allocation3], 8
  %v491 = vld [vmem:[%s490] sm:$0xff]
  %493 = vrot.lane.b32.xlu0 %v396, 32
  %v494 = vpop.permute.xlu0 %493
  %v495 = vsel %vm106, %v494, 0
  %497 = vmatpush.msra.mxu0 0.0
  %498 = vmatpush.msra.mxu0 0.0
  %499 = vmatpush.msra.mxu0 0.0
  %500 = vmatpush.msra.mxu0 0.0
  %501 = vmatpush.msra.mxu0 0.0
  %502 = vmatpush.msra.mxu0 0.0
  %503 = vmatpush.msra.mxu0 0.0
  %504 = vmatpush.msra.mxu0 0.0
  %505 = vmatpush.msra.mxu0 0.0
  %506 = vmatpush.msra.mxu0 0.0
  %507 = vmatpush.msra.mxu0 0.0
  %508 = vmatpush.msra.mxu0 0.0
  %509 = vmatpush.msra.mxu0 %v252
  %510 = vmatpush.msra.mxu0 %v251
  %511 = vmatpush.msra.mxu0 %v250
  %512 = vmatpush.msra.mxu0 %v249
  %513 = vmatmul.f32.gmra.mxu0 %v495
  %v514 = vpop.f32.mrf.mxu0
  %v515 = vadd.f32 0.0, %v514
  %516 = vdwg.mxu0
  %v517 = vadd.f32 %v491, %v515
  %v518 = vxor.u32 %v517, 2147483648
  %v519 = vmul.f32 %v518, 1.442695
  %v520 = vpow.pop %v519
  %v521 = vadd.f32 %v520, 1.0
  %v522 = vrcp.pop %v521
  %v523 = vmul.f32 %v521, %v522
  %v524 = vsub.f32 1.0, %v523
  %v525 = vmul.f32 %v522, %v524
  %v526 = vadd.f32 %v522, %v525
  %vm527 = vweird.f32 %v521
  %vm528 = vweird.f32 %v522
  %vm529 = vmor %vm527, %vm528
  %v530 = vsel %vm529, %v522, %v526
  %v531 = vand.u32 2147483647, %v521
  %vm532 = vcmp.eq.f32.partialorder %v531, 8.507059e+37
  %v533 = vand.u32 %v521, 2147483648
  %v534 = vor.u32 1.1754944e-38, %v533
  %v535 = vsel %vm532, %v534, %v530
  %v536 = vmul.f32 1.0, %v535
  %v537 = vtanh.pop %v517
  %v538 = vmul.f32 %v536, %v398
  %540 = vrot.lane.b32.xlu0 %v537, 64
  %v541 = vpop.permute.xlu0 %540
  %v543 = vmul.f32 %v536, %v541
  %545 = vrot.lane.b32.xlu0 %v543, 32
  %v546 = vpop.permute.xlu0 %545
  %v548 = vadd.f32 %v538, %v546
  %v549 = vtanh.pop %v548
  %551 = vrot.lane.b32.xlu0 %v549, 64
  %v552 = vpop.permute.xlu0 %551
  %v554 = vmul.f32 %v536, %v552
  %s555 = scalar_lea.vmem %s3, 8
  %v556 = vld [vmem:[%s555] sm:$0xff]
  %v557 = vsub.f32 %v554, %v396
  %559 = vset.pattern.permute.xlu0 0
  %560 = vperm.xlu0 %559, %v556
  %v561 = vpop.permute.xlu0 %560
  %v563 = vmul.f32 %v561, %v557
  %v564 = vadd.f32 %v396, %v563
  %v565 = vsub.f32 %v548, %v398
  %v566 = vmul.f32 %v561, %v565
  %v567 = vadd.f32 %v398, %v566
  %v568 = vmul.f32 %v561, %v554
  %570 = vrot.lane.b32.xlu0 %v568, 32
  %v571 = vpop.permute.xlu0 %570
  %s573 = scalar_lea.vmem [#allocation5], 48
  %574 = vst.msk [vmem:[%s573] sm:$0xff] %vm106, %v571
  %s575 = scalar_lea.vmem [#allocation2], 16
  %v576 = vld [vmem:[%s575] sm:$0xff]
  %578 = vrot.lane.b32.xlu0 %v479, 32
  %v579 = vpop.permute.xlu0 %578
  %v580 = vsel %vm106, %v579, 0
  %582 = vmatpush.msra.mxu0 0.0
  %583 = vmatpush.msra.mxu0 0.0
  %584 = vmatpush.msra.mxu0 0.0
  %585 = vmatpush.msra.mxu0 0.0
  %586 = vmatpush.msra.mxu0 0.0
  %587 = vmatpush.msra.mxu0 0.0
  %588 = vmatpush.msra.mxu0 0.0
  %589 = vmatpush.msra.mxu0 0.0
  %590 = vmatpush.msra.mxu0 0.0
  %591 = vmatpush.msra.mxu0 0.0
  %592 = vmatpush.msra.mxu0 0.0
  %593 = vmatpush.msra.mxu0 0.0
  %594 = vmatpush.msra.mxu0 %v248
  %595 = vmatpush.msra.mxu0 %v247
  %596 = vmatpush.msra.mxu0 %v246
  %597 = vmatpush.msra.mxu0 %v245
  %598 = vmatmul.f32.gmra.mxu0 %v580
  %v599 = vpop.f32.mrf.mxu0
  %v600 = vadd.f32 0.0, %v599
  %601 = vdwg.mxu0
  %v602 = vadd.f32 %v576, %v600
  %v603 = vxor.u32 %v602, 2147483648
  %v604 = vmul.f32 %v603, 1.442695
  %v605 = vpow.pop %v604
  %v606 = vadd.f32 %v605, 1.0
  %v607 = vrcp.pop %v606
  %v608 = vmul.f32 %v606, %v607
  %v609 = vsub.f32 1.0, %v608
  %v610 = vmul.f32 %v607, %v609
  %v611 = vadd.f32 %v607, %v610
  %vm612 = vweird.f32 %v606
  %vm613 = vweird.f32 %v607
  %vm614 = vmor %vm612, %vm613
  %v615 = vsel %vm614, %v607, %v611
  %v616 = vand.u32 2147483647, %v606
  %vm617 = vcmp.eq.f32.partialorder %v616, 8.507059e+37
  %v618 = vand.u32 %v606, 2147483648
  %v619 = vor.u32 1.1754944e-38, %v618
  %v620 = vsel %vm617, %v619, %v615
  %v621 = vmul.f32 1.0, %v620
  %v622 = vtanh.pop %v602
  %v623 = vmul.f32 %v621, %v482
  %625 = vrot.lane.b32.xlu0 %v622, 64
  %v626 = vpop.permute.xlu0 %625
  %v628 = vmul.f32 %v621, %v626
  %630 = vrot.lane.b32.xlu0 %v628, 32
  %v631 = vpop.permute.xlu0 %630
  %v633 = vadd.f32 %v623, %v631
  %v634 = vtanh.pop %v633
  %636 = vrot.lane.b32.xlu0 %v634, 64
  %v637 = vpop.permute.xlu0 %636
  %v639 = vmul.f32 %v621, %v637
  %s640 = scalar_lea.vmem %s2, 16
  %v641 = vld [vmem:[%s640] sm:$0xff]
  %v642 = vsub.f32 %v639, %v479
  %644 = vset.pattern.permute.xlu0 0
  %645 = vperm.xlu0 %644, %v641
  %v646 = vpop.permute.xlu0 %645
  %v648 = vmul.f32 %v646, %v642
  %v649 = vadd.f32 %v479, %v648
  %v650 = vsub.f32 %v633, %v482
  %v651 = vmul.f32 %v646, %v650
  %v652 = vadd.f32 %v482, %v651
  %v653 = vmul.f32 %v646, %v639
  %655 = vrot.lane.b32.xlu0 %v653, 32
  %v656 = vpop.permute.xlu0 %655
  %s658 = scalar_lea.vmem [#allocation4], 16
  %659 = vst.msk [vmem:[%s658] sm:$0xff] %vm106, %v656
  %s660 = scalar_lea.vmem [#allocation3], 16
  %v661 = vld [vmem:[%s660] sm:$0xff]
  %663 = vrot.lane.b32.xlu0 %v564, 32
  %v664 = vpop.permute.xlu0 %663
  %v665 = vsel %vm106, %v664, 0
  %667 = vmatpush.msra.mxu0 0.0
  %668 = vmatpush.msra.mxu0 0.0
  %669 = vmatpush.msra.mxu0 0.0
  %670 = vmatpush.msra.mxu0 0.0
  %671 = vmatpush.msra.mxu0 0.0
  %672 = vmatpush.msra.mxu0 0.0
  %673 = vmatpush.msra.mxu0 0.0
  %674 = vmatpush.msra.mxu0 0.0
  %675 = vmatpush.msra.mxu0 0.0
  %676 = vmatpush.msra.mxu0 0.0
  %677 = vmatpush.msra.mxu0 0.0
  %678 = vmatpush.msra.mxu0 0.0
  %679 = vmatpush.msra.mxu0 %v252
  %680 = vmatpush.msra.mxu0 %v251
  %681 = vmatpush.msra.mxu0 %v250
  %682 = vmatpush.msra.mxu0 %v249
  %683 = vmatmul.f32.gmra.mxu0 %v665
  %v684 = vpop.f32.mrf.mxu0
  %v685 = vadd.f32 0.0, %v684
  %686 = vdwg.mxu0
  %v687 = vadd.f32 %v661, %v685
  %v688 = vxor.u32 %v687, 2147483648
  %v689 = vmul.f32 %v688, 1.442695
  %v690 = vpow.pop %v689
  %v691 = vadd.f32 %v690, 1.0
  %v692 = vrcp.pop %v691
  %v693 = vmul.f32 %v691, %v692
  %v694 = vsub.f32 1.0, %v693
  %v695 = vmul.f32 %v692, %v694
  %v696 = vadd.f32 %v692, %v695
  %vm697 = vweird.f32 %v691
  %vm698 = vweird.f32 %v692
  %vm699 = vmor %vm697, %vm698
  %v700 = vsel %vm699, %v692, %v696
  %v701 = vand.u32 2147483647, %v691
  %vm702 = vcmp.eq.f32.partialorder %v701, 8.507059e+37
  %v703 = vand.u32 %v691, 2147483648
  %v704 = vor.u32 1.1754944e-38, %v703
  %v705 = vsel %vm702, %v704, %v700
  %v706 = vmul.f32 1.0, %v705
  %v707 = vtanh.pop %v687
  %v708 = vmul.f32 %v706, %v567
  %710 = vrot.lane.b32.xlu0 %v707, 64
  %v711 = vpop.permute.xlu0 %710
  %v713 = vmul.f32 %v706, %v711
  %715 = vrot.lane.b32.xlu0 %v713, 32
  %v716 = vpop.permute.xlu0 %715
  %v718 = vadd.f32 %v708, %v716
  %v719 = vtanh.pop %v718
  %721 = vrot.lane.b32.xlu0 %v719, 64
  %v722 = vpop.permute.xlu0 %721
  %v724 = vmul.f32 %v706, %v722
  %s725 = scalar_lea.vmem %s3, 16
  %v726 = vld [vmem:[%s725] sm:$0xff]
  %v727 = vsub.f32 %v724, %v564
  %729 = vset.pattern.permute.xlu0 0
  %730 = vperm.xlu0 %729, %v726
  %v731 = vpop.permute.xlu0 %730
  %v733 = vmul.f32 %v731, %v727
  %v734 = vadd.f32 %v564, %v733
  %v735 = vsub.f32 %v718, %v567
  %v736 = vmul.f32 %v731, %v735
  %v737 = vadd.f32 %v567, %v736
  %v738 = vmul.f32 %v731, %v724
  %740 = vrot.lane.b32.xlu0 %v738, 32
  %v741 = vpop.permute.xlu0 %740
  %s743 = scalar_lea.vmem [#allocation5], 40
  %744 = vst.msk [vmem:[%s743] sm:$0xff] %vm106, %v741
  %s745 = scalar_lea.vmem [#allocation2], 24
  %v746 = vld [vmem:[%s745] sm:$0xff]
  %748 = vrot.lane.b32.xlu0 %v649, 32
  %v749 = vpop.permute.xlu0 %748
  %v750 = vsel %vm106, %v749, 0
  %752 = vmatpush.msra.mxu0 0.0
  %753 = vmatpush.msra.mxu0 0.0
  %754 = vmatpush.msra.mxu0 0.0
  %755 = vmatpush.msra.mxu0 0.0
  %756 = vmatpush.msra.mxu0 0.0
  %757 = vmatpush.msra.mxu0 0.0
  %758 = vmatpush.msra.mxu0 0.0
  %759 = vmatpush.msra.mxu0 0.0
  %760 = vmatpush.msra.mxu0 0.0
  %761 = vmatpush.msra.mxu0 0.0
  %762 = vmatpush.msra.mxu0 0.0
  %763 = vmatpush.msra.mxu0 0.0
  %764 = vmatpush.msra.mxu0 %v248
  %765 = vmatpush.msra.mxu0 %v247
  %766 = vmatpush.msra.mxu0 %v246
  %767 = vmatpush.msra.mxu0 %v245
  %768 = vmatmul.f32.gmra.mxu0 %v750
  %v769 = vpop.f32.mrf.mxu0
  %v770 = vadd.f32 0.0, %v769
  %771 = vdwg.mxu0
  %v772 = vadd.f32 %v746, %v770
  %v773 = vxor.u32 %v772, 2147483648
  %v774 = vmul.f32 %v773, 1.442695
  %v775 = vpow.pop %v774
  %v776 = vadd.f32 %v775, 1.0
  %v777 = vrcp.pop %v776
  %v778 = vmul.f32 %v776, %v777
  %v779 = vsub.f32 1.0, %v778
  %v780 = vmul.f32 %v777, %v779
  %v781 = vadd.f32 %v777, %v780
  %vm782 = vweird.f32 %v776
  %vm783 = vweird.f32 %v777
  %vm784 = vmor %vm782, %vm783
  %v785 = vsel %vm784, %v777, %v781
  %v786 = vand.u32 2147483647, %v776
  %vm787 = vcmp.eq.f32.partialorder %v786, 8.507059e+37
  %v788 = vand.u32 %v776, 2147483648
  %v789 = vor.u32 1.1754944e-38, %v788
  %v790 = vsel %vm787, %v789, %v785
  %v791 = vmul.f32 1.0, %v790
  %v792 = vtanh.pop %v772
  %v793 = vmul.f32 %v791, %v652
  %795 = vrot.lane.b32.xlu0 %v792, 64
  %v796 = vpop.permute.xlu0 %795
  %v798 = vmul.f32 %v791, %v796
  %800 = vrot.lane.b32.xlu0 %v798, 32
  %v801 = vpop.permute.xlu0 %800
  %v803 = vadd.f32 %v793, %v801
  %v804 = vtanh.pop %v803
  %806 = vrot.lane.b32.xlu0 %v804, 64
  %v807 = vpop.permute.xlu0 %806
  %v809 = vmul.f32 %v791, %v807
  %s810 = scalar_lea.vmem %s2, 24
  %v811 = vld [vmem:[%s810] sm:$0xff]
  %v812 = vsub.f32 %v809, %v649
  %814 = vset.pattern.permute.xlu0 0
  %815 = vperm.xlu0 %814, %v811
  %v816 = vpop.permute.xlu0 %815
  %v818 = vmul.f32 %v816, %v812
  %v819 = vadd.f32 %v649, %v818
  %v820 = vsub.f32 %v803, %v652
  %v821 = vmul.f32 %v816, %v820
  %v822 = vadd.f32 %v652, %v821
  %v823 = vmul.f32 %v816, %v809
  %825 = vrot.lane.b32.xlu0 %v823, 32
  %v826 = vpop.permute.xlu0 %825
  %s828 = scalar_lea.vmem [#allocation4], 24
  %829 = vst.msk [vmem:[%s828] sm:$0xff] %vm106, %v826
  %s830 = scalar_lea.vmem [#allocation3], 24
  %v831 = vld [vmem:[%s830] sm:$0xff]
  %833 = vrot.lane.b32.xlu0 %v734, 32
  %v834 = vpop.permute.xlu0 %833
  %v835 = vsel %vm106, %v834, 0
  %837 = vmatpush.msra.mxu0 0.0
  %838 = vmatpush.msra.mxu0 0.0
  %839 = vmatpush.msra.mxu0 0.0
  %840 = vmatpush.msra.mxu0 0.0
  %841 = vmatpush.msra.mxu0 0.0
  %842 = vmatpush.msra.mxu0 0.0
  %843 = vmatpush.msra.mxu0 0.0
  %844 = vmatpush.msra.mxu0 0.0
  %845 = vmatpush.msra.mxu0 0.0
  %846 = vmatpush.msra.mxu0 0.0
  %847 = vmatpush.msra.mxu0 0.0
  %848 = vmatpush.msra.mxu0 0.0
  %849 = vmatpush.msra.mxu0 %v252
  %850 = vmatpush.msra.mxu0 %v251
  %851 = vmatpush.msra.mxu0 %v250
  %852 = vmatpush.msra.mxu0 %v249
  %853 = vmatmul.f32.gmra.mxu0 %v835
  %v854 = vpop.f32.mrf.mxu0
  %v855 = vadd.f32 0.0, %v854
  %856 = vdwg.mxu0
  %v857 = vadd.f32 %v831, %v855
  %v858 = vxor.u32 %v857, 2147483648
  %v859 = vmul.f32 %v858, 1.442695
  %v860 = vpow.pop %v859
  %v861 = vadd.f32 %v860, 1.0
  %v862 = vrcp.pop %v861
  %v863 = vmul.f32 %v861, %v862
  %v864 = vsub.f32 1.0, %v863
  %v865 = vmul.f32 %v862, %v864
  %v866 = vadd.f32 %v862, %v865
  %vm867 = vweird.f32 %v861
  %vm868 = vweird.f32 %v862
  %vm869 = vmor %vm867, %vm868
  %v870 = vsel %vm869, %v862, %v866
  %v871 = vand.u32 2147483647, %v861
  %vm872 = vcmp.eq.f32.partialorder %v871, 8.507059e+37
  %v873 = vand.u32 %v861, 2147483648
  %v874 = vor.u32 1.1754944e-38, %v873
  %v875 = vsel %vm872, %v874, %v870
  %v876 = vmul.f32 1.0, %v875
  %v877 = vtanh.pop %v857
  %v878 = vmul.f32 %v876, %v737
  %880 = vrot.lane.b32.xlu0 %v877, 64
  %v881 = vpop.permute.xlu0 %880
  %v883 = vmul.f32 %v876, %v881
  %885 = vrot.lane.b32.xlu0 %v883, 32
  %v886 = vpop.permute.xlu0 %885
  %v888 = vadd.f32 %v878, %v886
  %v889 = vtanh.pop %v888
  %891 = vrot.lane.b32.xlu0 %v889, 64
  %v892 = vpop.permute.xlu0 %891
  %v894 = vmul.f32 %v876, %v892
  %s895 = scalar_lea.vmem %s3, 24
  %v896 = vld [vmem:[%s895] sm:$0xff]
  %v897 = vsub.f32 %v894, %v734
  %899 = vset.pattern.permute.xlu0 0
  %900 = vperm.xlu0 %899, %v896
  %v901 = vpop.permute.xlu0 %900
  %v903 = vmul.f32 %v901, %v897
  %v904 = vadd.f32 %v734, %v903
  %v905 = vsub.f32 %v888, %v737
  %v906 = vmul.f32 %v901, %v905
  %v907 = vadd.f32 %v737, %v906
  %v908 = vmul.f32 %v901, %v894
  %910 = vrot.lane.b32.xlu0 %v908, 32
  %v911 = vpop.permute.xlu0 %910
  %s913 = scalar_lea.vmem [#allocation5], 32
  %914 = vst.msk [vmem:[%s913] sm:$0xff] %vm106, %v911
  %s915 = scalar_lea.vmem [#allocation2], 32
  %v916 = vld [vmem:[%s915] sm:$0xff]
  %918 = vrot.lane.b32.xlu0 %v819, 32
  %v919 = vpop.permute.xlu0 %918
  %v920 = vsel %vm106, %v919, 0
  %922 = vmatpush.msra.mxu0 0.0
  %923 = vmatpush.msra.mxu0 0.0
  %924 = vmatpush.msra.mxu0 0.0
  %925 = vmatpush.msra.mxu0 0.0
  %926 = vmatpush.msra.mxu0 0.0
  %927 = vmatpush.msra.mxu0 0.0
  %928 = vmatpush.msra.mxu0 0.0
  %929 = vmatpush.msra.mxu0 0.0
  %930 = vmatpush.msra.mxu0 0.0
  %931 = vmatpush.msra.mxu0 0.0
  %932 = vmatpush.msra.mxu0 0.0
  %933 = vmatpush.msra.mxu0 0.0
  %934 = vmatpush.msra.mxu0 %v248
  %935 = vmatpush.msra.mxu0 %v247
  %936 = vmatpush.msra.mxu0 %v246
  %937 = vmatpush.msra.mxu0 %v245
  %938 = vmatmul.f32.gmra.mxu0 %v920
  %v939 = vpop.f32.mrf.mxu0
  %v940 = vadd.f32 0.0, %v939
  %941 = vdwg.mxu0
  %v942 = vadd.f32 %v916, %v940
  %v943 = vxor.u32 %v942, 2147483648
  %v944 = vmul.f32 %v943, 1.442695
  %v945 = vpow.pop %v944
  %v946 = vadd.f32 %v945, 1.0
  %v947 = vrcp.pop %v946
  %v948 = vmul.f32 %v946, %v947
  %v949 = vsub.f32 1.0, %v948
  %v950 = vmul.f32 %v947, %v949
  %v951 = vadd.f32 %v947, %v950
  %vm952 = vweird.f32 %v946
  %vm953 = vweird.f32 %v947
  %vm954 = vmor %vm952, %vm953
  %v955 = vsel %vm954, %v947, %v951
  %v956 = vand.u32 2147483647, %v946
  %vm957 = vcmp.eq.f32.partialorder %v956, 8.507059e+37
  %v958 = vand.u32 %v946, 2147483648
  %v959 = vor.u32 1.1754944e-38, %v958
  %v960 = vsel %vm957, %v959, %v955
  %v961 = vmul.f32 1.0, %v960
  %v962 = vtanh.pop %v942
  %v963 = vmul.f32 %v961, %v822
  %965 = vrot.lane.b32.xlu0 %v962, 64
  %v966 = vpop.permute.xlu0 %965
  %v968 = vmul.f32 %v961, %v966
  %970 = vrot.lane.b32.xlu0 %v968, 32
  %v971 = vpop.permute.xlu0 %970
  %v973 = vadd.f32 %v963, %v971
  %v974 = vtanh.pop %v973
  %976 = vrot.lane.b32.xlu0 %v974, 64
  %v977 = vpop.permute.xlu0 %976
  %v979 = vmul.f32 %v961, %v977
  %s980 = scalar_lea.vmem %s2, 32
  %v981 = vld [vmem:[%s980] sm:$0xff]
  %v982 = vsub.f32 %v979, %v819
  %984 = vset.pattern.permute.xlu0 0
  %985 = vperm.xlu0 %984, %v981
  %v986 = vpop.permute.xlu0 %985
  %v988 = vmul.f32 %v986, %v982
  %v989 = vadd.f32 %v819, %v988
  %v990 = vsub.f32 %v973, %v822
  %v991 = vmul.f32 %v986, %v990
  %v992 = vadd.f32 %v822, %v991
  %v993 = vmul.f32 %v986, %v979
  %995 = vrot.lane.b32.xlu0 %v993, 32
  %v996 = vpop.permute.xlu0 %995
  %s998 = scalar_lea.vmem [#allocation4], 32
  %999 = vst.msk [vmem:[%s998] sm:$0xff] %vm106, %v996
  %s1000 = scalar_lea.vmem [#allocation3], 32
  %v1001 = vld [vmem:[%s1000] sm:$0xff]
  %1003 = vrot.lane.b32.xlu0 %v904, 32
  %v1004 = vpop.permute.xlu0 %1003
  %v1005 = vsel %vm106, %v1004, 0
  %1007 = vmatpush.msra.mxu0 0.0
  %1008 = vmatpush.msra.mxu0 0.0
  %1009 = vmatpush.msra.mxu0 0.0
  %1010 = vmatpush.msra.mxu0 0.0
  %1011 = vmatpush.msra.mxu0 0.0
  %1012 = vmatpush.msra.mxu0 0.0
  %1013 = vmatpush.msra.mxu0 0.0
  %1014 = vmatpush.msra.mxu0 0.0
  %1015 = vmatpush.msra.mxu0 0.0
  %1016 = vmatpush.msra.mxu0 0.0
  %1017 = vmatpush.msra.mxu0 0.0
  %1018 = vmatpush.msra.mxu0 0.0
  %1019 = vmatpush.msra.mxu0 %v252
  %1020 = vmatpush.msra.mxu0 %v251
  %1021 = vmatpush.msra.mxu0 %v250
  %1022 = vmatpush.msra.mxu0 %v249
  %1023 = vmatmul.f32.gmra.mxu0 %v1005
  %v1024 = vpop.f32.mrf.mxu0
  %v1025 = vadd.f32 0.0, %v1024
  %1026 = vdwg.mxu0
  %v1027 = vadd.f32 %v1001, %v1025
  %v1028 = vxor.u32 %v1027, 2147483648
  %v1029 = vmul.f32 %v1028, 1.442695
  %v1030 = vpow.pop %v1029
  %v1031 = vadd.f32 %v1030, 1.0
  %v1032 = vrcp.pop %v1031
  %v1033 = vmul.f32 %v1031, %v1032
  %v1034 = vsub.f32 1.0, %v1033
  %v1035 = vmul.f32 %v1032, %v1034
  %v1036 = vadd.f32 %v1032, %v1035
  %vm1037 = vweird.f32 %v1031
  %vm1038 = vweird.f32 %v1032
  %vm1039 = vmor %vm1037, %vm1038
  %v1040 = vsel %vm1039, %v1032, %v1036
  %v1041 = vand.u32 2147483647, %v1031
  %vm1042 = vcmp.eq.f32.partialorder %v1041, 8.507059e+37
  %v1043 = vand.u32 %v1031, 2147483648
  %v1044 = vor.u32 1.1754944e-38, %v1043
  %v1045 = vsel %vm1042, %v1044, %v1040
  %v1046 = vmul.f32 1.0, %v1045
  %v1047 = vtanh.pop %v1027
  %v1048 = vmul.f32 %v1046, %v907
  %1050 = vrot.lane.b32.xlu0 %v1047, 64
  %v1051 = vpop.permute.xlu0 %1050
  %v1053 = vmul.f32 %v1046, %v1051
  %1055 = vrot.lane.b32.xlu0 %v1053, 32
  %v1056 = vpop.permute.xlu0 %1055
  %v1058 = vadd.f32 %v1048, %v1056
  %v1059 = vtanh.pop %v1058
  %1061 = vrot.lane.b32.xlu0 %v1059, 64
  %v1062 = vpop.permute.xlu0 %1061
  %v1064 = vmul.f32 %v1046, %v1062
  %s1065 = scalar_lea.vmem %s3, 32
  %v1066 = vld [vmem:[%s1065] sm:$0xff]
  %v1067 = vsub.f32 %v1064, %v904
  %1069 = vset.pattern.permute.xlu0 0
  %1070 = vperm.xlu0 %1069, %v1066
  %v1071 = vpop.permute.xlu0 %1070
  %v1073 = vmul.f32 %v1071, %v1067
  %v1074 = vadd.f32 %v904, %v1073
  %v1075 = vsub.f32 %v1058, %v907
  %v1076 = vmul.f32 %v1071, %v1075
  %v1077 = vadd.f32 %v907, %v1076
  %v1078 = vmul.f32 %v1071, %v1064
  %1080 = vrot.lane.b32.xlu0 %v1078, 32
  %v1081 = vpop.permute.xlu0 %1080
  %s1083 = scalar_lea.vmem [#allocation5], 24
  %1084 = vst.msk [vmem:[%s1083] sm:$0xff] %vm106, %v1081
  %s1085 = scalar_lea.vmem [#allocation2], 40
  %v1086 = vld [vmem:[%s1085] sm:$0xff]
  %1088 = vrot.lane.b32.xlu0 %v989, 32
  %v1089 = vpop.permute.xlu0 %1088
  %v1090 = vsel %vm106, %v1089, 0
  %1092 = vmatpush.msra.mxu0 0.0
  %1093 = vmatpush.msra.mxu0 0.0
  %1094 = vmatpush.msra.mxu0 0.0
  %1095 = vmatpush.msra.mxu0 0.0
  %1096 = vmatpush.msra.mxu0 0.0
  %1097 = vmatpush.msra.mxu0 0.0
  %1098 = vmatpush.msra.mxu0 0.0
  %1099 = vmatpush.msra.mxu0 0.0
  %1100 = vmatpush.msra.mxu0 0.0
  %1101 = vmatpush.msra.mxu0 0.0
  %1102 = vmatpush.msra.mxu0 0.0
  %1103 = vmatpush.msra.mxu0 0.0
  %1104 = vmatpush.msra.mxu0 %v248
  %1105 = vmatpush.msra.mxu0 %v247
  %1106 = vmatpush.msra.mxu0 %v246
  %1107 = vmatpush.msra.mxu0 %v245
  %1108 = vmatmul.f32.gmra.mxu0 %v1090
  %v1109 = vpop.f32.mrf.mxu0
  %v1110 = vadd.f32 0.0, %v1109
  %1111 = vdwg.mxu0
  %v1112 = vadd.f32 %v1086, %v1110
  %v1113 = vxor.u32 %v1112, 2147483648
  %v1114 = vmul.f32 %v1113, 1.442695
  %v1115 = vpow.pop %v1114
  %v1116 = vadd.f32 %v1115, 1.0
  %v1117 = vrcp.pop %v1116
  %v1118 = vmul.f32 %v1116, %v1117
  %v1119 = vsub.f32 1.0, %v1118
  %v1120 = vmul.f32 %v1117, %v1119
  %v1121 = vadd.f32 %v1117, %v1120
  %vm1122 = vweird.f32 %v1116
  %vm1123 = vweird.f32 %v1117
  %vm1124 = vmor %vm1122, %vm1123
  %v1125 = vsel %vm1124, %v1117, %v1121
  %v1126 = vand.u32 2147483647, %v1116
  %vm1127 = vcmp.eq.f32.partialorder %v1126, 8.507059e+37
  %v1128 = vand.u32 %v1116, 2147483648
  %v1129 = vor.u32 1.1754944e-38, %v1128
  %v1130 = vsel %vm1127, %v1129, %v1125
  %v1131 = vmul.f32 1.0, %v1130
  %v1132 = vtanh.pop %v1112
  %v1133 = vmul.f32 %v1131, %v992
  %1135 = vrot.lane.b32.xlu0 %v1132, 64
  %v1136 = vpop.permute.xlu0 %1135
  %v1138 = vmul.f32 %v1131, %v1136
  %1140 = vrot.lane.b32.xlu0 %v1138, 32
  %v1141 = vpop.permute.xlu0 %1140
  %v1143 = vadd.f32 %v1133, %v1141
  %v1144 = vtanh.pop %v1143
  %1146 = vrot.lane.b32.xlu0 %v1144, 64
  %v1147 = vpop.permute.xlu0 %1146
  %v1149 = vmul.f32 %v1131, %v1147
  %s1150 = scalar_lea.vmem %s2, 40
  %v1151 = vld [vmem:[%s1150] sm:$0xff]
  %v1152 = vsub.f32 %v1149, %v989
  %1154 = vset.pattern.permute.xlu0 0
  %1155 = vperm.xlu0 %1154, %v1151
  %v1156 = vpop.permute.xlu0 %1155
  %v1158 = vmul.f32 %v1156, %v1152
  %v1159 = vadd.f32 %v989, %v1158
  %v1160 = vsub.f32 %v1143, %v992
  %v1161 = vmul.f32 %v1156, %v1160
  %v1162 = vadd.f32 %v992, %v1161
  %v1163 = vmul.f32 %v1156, %v1149
  %1165 = vrot.lane.b32.xlu0 %v1163, 32
  %v1166 = vpop.permute.xlu0 %1165
  %s1168 = scalar_lea.vmem [#allocation4], 40
  %1169 = vst.msk [vmem:[%s1168] sm:$0xff] %vm106, %v1166
  %s1170 = scalar_lea.vmem [#allocation3], 40
  %v1171 = vld [vmem:[%s1170] sm:$0xff]
  %1173 = vrot.lane.b32.xlu0 %v1074, 32
  %v1174 = vpop.permute.xlu0 %1173
  %v1175 = vsel %vm106, %v1174, 0
  %1177 = vmatpush.msra.mxu0 0.0
  %1178 = vmatpush.msra.mxu0 0.0
  %1179 = vmatpush.msra.mxu0 0.0
  %1180 = vmatpush.msra.mxu0 0.0
  %1181 = vmatpush.msra.mxu0 0.0
  %1182 = vmatpush.msra.mxu0 0.0
  %1183 = vmatpush.msra.mxu0 0.0
  %1184 = vmatpush.msra.mxu0 0.0
  %1185 = vmatpush.msra.mxu0 0.0
  %1186 = vmatpush.msra.mxu0 0.0
  %1187 = vmatpush.msra.mxu0 0.0
  %1188 = vmatpush.msra.mxu0 0.0
  %1189 = vmatpush.msra.mxu0 %v252
  %1190 = vmatpush.msra.mxu0 %v251
  %1191 = vmatpush.msra.mxu0 %v250
  %1192 = vmatpush.msra.mxu0 %v249
  %1193 = vmatmul.f32.gmra.mxu0 %v1175
  %v1194 = vpop.f32.mrf.mxu0
  %v1195 = vadd.f32 0.0, %v1194
  %1196 = vdwg.mxu0
  %v1197 = vadd.f32 %v1171, %v1195
  %v1198 = vxor.u32 %v1197, 2147483648
  %v1199 = vmul.f32 %v1198, 1.442695
  %v1200 = vpow.pop %v1199
  %v1201 = vadd.f32 %v1200, 1.0
  %v1202 = vrcp.pop %v1201
  %v1203 = vmul.f32 %v1201, %v1202
  %v1204 = vsub.f32 1.0, %v1203
  %v1205 = vmul.f32 %v1202, %v1204
  %v1206 = vadd.f32 %v1202, %v1205
  %vm1207 = vweird.f32 %v1201
  %vm1208 = vweird.f32 %v1202
  %vm1209 = vmor %vm1207, %vm1208
  %v1210 = vsel %vm1209, %v1202, %v1206
  %v1211 = vand.u32 2147483647, %v1201
  %vm1212 = vcmp.eq.f32.partialorder %v1211, 8.507059e+37
  %v1213 = vand.u32 %v1201, 2147483648
  %v1214 = vor.u32 1.1754944e-38, %v1213
  %v1215 = vsel %vm1212, %v1214, %v1210
  %v1216 = vmul.f32 1.0, %v1215
  %v1217 = vtanh.pop %v1197
  %v1218 = vmul.f32 %v1216, %v1077
  %1220 = vrot.lane.b32.xlu0 %v1217, 64
  %v1221 = vpop.permute.xlu0 %1220
  %v1223 = vmul.f32 %v1216, %v1221
  %1225 = vrot.lane.b32.xlu0 %v1223, 32
  %v1226 = vpop.permute.xlu0 %1225
  %v1228 = vadd.f32 %v1218, %v1226
  %v1229 = vtanh.pop %v1228
  %1231 = vrot.lane.b32.xlu0 %v1229, 64
  %v1232 = vpop.permute.xlu0 %1231
  %v1234 = vmul.f32 %v1216, %v1232
  %s1235 = scalar_lea.vmem %s3, 40
  %v1236 = vld [vmem:[%s1235] sm:$0xff]
  %v1237 = vsub.f32 %v1234, %v1074
  %1239 = vset.pattern.permute.xlu0 0
  %1240 = vperm.xlu0 %1239, %v1236
  %v1241 = vpop.permute.xlu0 %1240
  %v1243 = vmul.f32 %v1241, %v1237
  %v1244 = vadd.f32 %v1074, %v1243
  %v1245 = vsub.f32 %v1228, %v1077
  %v1246 = vmul.f32 %v1241, %v1245
  %v1247 = vadd.f32 %v1077, %v1246
  %v1248 = vmul.f32 %v1241, %v1234
  %1250 = vrot.lane.b32.xlu0 %v1248, 32
  %v1251 = vpop.permute.xlu0 %1250
  %s1253 = scalar_lea.vmem [#allocation5], 16
  %1254 = vst.msk [vmem:[%s1253] sm:$0xff] %vm106, %v1251
  %s1255 = scalar_lea.vmem [#allocation2], 48
  %v1256 = vld [vmem:[%s1255] sm:$0xff]
  %1258 = vrot.lane.b32.xlu0 %v1159, 32
  %v1259 = vpop.permute.xlu0 %1258
  %v1260 = vsel %vm106, %v1259, 0
  %1262 = vmatpush.msra.mxu0 0.0
  %1263 = vmatpush.msra.mxu0 0.0
  %1264 = vmatpush.msra.mxu0 0.0
  %1265 = vmatpush.msra.mxu0 0.0
  %1266 = vmatpush.msra.mxu0 0.0
  %1267 = vmatpush.msra.mxu0 0.0
  %1268 = vmatpush.msra.mxu0 0.0
  %1269 = vmatpush.msra.mxu0 0.0
  %1270 = vmatpush.msra.mxu0 0.0
  %1271 = vmatpush.msra.mxu0 0.0
  %1272 = vmatpush.msra.mxu0 0.0
  %1273 = vmatpush.msra.mxu0 0.0
  %1274 = vmatpush.msra.mxu0 %v248
  %1275 = vmatpush.msra.mxu0 %v247
  %1276 = vmatpush.msra.mxu0 %v246
  %1277 = vmatpush.msra.mxu0 %v245
  %1278 = vmatmul.f32.gmra.mxu0 %v1260
  %v1279 = vpop.f32.mrf.mxu0
  %v1280 = vadd.f32 0.0, %v1279
  %1281 = vdwg.mxu0
  %v1282 = vadd.f32 %v1256, %v1280
  %v1283 = vxor.u32 %v1282, 2147483648
  %v1284 = vmul.f32 %v1283, 1.442695
  %v1285 = vpow.pop %v1284
  %v1286 = vadd.f32 %v1285, 1.0
  %v1287 = vrcp.pop %v1286
  %v1288 = vmul.f32 %v1286, %v1287
  %v1289 = vsub.f32 1.0, %v1288
  %v1290 = vmul.f32 %v1287, %v1289
  %v1291 = vadd.f32 %v1287, %v1290
  %vm1292 = vweird.f32 %v1286
  %vm1293 = vweird.f32 %v1287
  %vm1294 = vmor %vm1292, %vm1293
  %v1295 = vsel %vm1294, %v1287, %v1291
  %v1296 = vand.u32 2147483647, %v1286
  %vm1297 = vcmp.eq.f32.partialorder %v1296, 8.507059e+37
  %v1298 = vand.u32 %v1286, 2147483648
  %v1299 = vor.u32 1.1754944e-38, %v1298
  %v1300 = vsel %vm1297, %v1299, %v1295
  %v1301 = vmul.f32 1.0, %v1300
  %v1302 = vtanh.pop %v1282
  %v1303 = vmul.f32 %v1301, %v1162
  %1305 = vrot.lane.b32.xlu0 %v1302, 64
  %v1306 = vpop.permute.xlu0 %1305
  %v1308 = vmul.f32 %v1301, %v1306
  %1310 = vrot.lane.b32.xlu0 %v1308, 32
  %v1311 = vpop.permute.xlu0 %1310
  %v1313 = vadd.f32 %v1303, %v1311
  %v1314 = vtanh.pop %v1313
  %1316 = vrot.lane.b32.xlu0 %v1314, 64
  %v1317 = vpop.permute.xlu0 %1316
  %v1319 = vmul.f32 %v1301, %v1317
  %s1320 = scalar_lea.vmem %s2, 48
  %v1321 = vld [vmem:[%s1320] sm:$0xff]
  %v1322 = vsub.f32 %v1319, %v1159
  %1324 = vset.pattern.permute.xlu0 0
  %1325 = vperm.xlu0 %1324, %v1321
  %v1326 = vpop.permute.xlu0 %1325
  %v1328 = vmul.f32 %v1326, %v1322
  %v1329 = vadd.f32 %v1159, %v1328
  %v1330 = vsub.f32 %v1313, %v1162
  %v1331 = vmul.f32 %v1326, %v1330
  %v1332 = vadd.f32 %v1162, %v1331
  %v1333 = vmul.f32 %v1326, %v1319
  %1335 = vrot.lane.b32.xlu0 %v1333, 32
  %v1336 = vpop.permute.xlu0 %1335
  %s1338 = scalar_lea.vmem [#allocation4], 48
  %1339 = vst.msk [vmem:[%s1338] sm:$0xff] %vm106, %v1336
  %s1340 = scalar_lea.vmem [#allocation3], 48
  %v1341 = vld [vmem:[%s1340] sm:$0xff]
  %1343 = vrot.lane.b32.xlu0 %v1244, 32
  %v1344 = vpop.permute.xlu0 %1343
  %v1345 = vsel %vm106, %v1344, 0
  %1347 = vmatpush.msra.mxu0 0.0
  %1348 = vmatpush.msra.mxu0 0.0
  %1349 = vmatpush.msra.mxu0 0.0
  %1350 = vmatpush.msra.mxu0 0.0
  %1351 = vmatpush.msra.mxu0 0.0
  %1352 = vmatpush.msra.mxu0 0.0
  %1353 = vmatpush.msra.mxu0 0.0
  %1354 = vmatpush.msra.mxu0 0.0
  %1355 = vmatpush.msra.mxu0 0.0
  %1356 = vmatpush.msra.mxu0 0.0
  %1357 = vmatpush.msra.mxu0 0.0
  %1358 = vmatpush.msra.mxu0 0.0
  %1359 = vmatpush.msra.mxu0 %v252
  %1360 = vmatpush.msra.mxu0 %v251
  %1361 = vmatpush.msra.mxu0 %v250
  %1362 = vmatpush.msra.mxu0 %v249
  %1363 = vmatmul.f32.gmra.mxu0 %v1345
  %v1364 = vpop.f32.mrf.mxu0
  %v1365 = vadd.f32 0.0, %v1364
  %1366 = vdwg.mxu0
  %v1367 = vadd.f32 %v1341, %v1365
  %v1368 = vxor.u32 %v1367, 2147483648
  %v1369 = vmul.f32 %v1368, 1.442695
  %v1370 = vpow.pop %v1369
  %v1371 = vadd.f32 %v1370, 1.0
  %v1372 = vrcp.pop %v1371
  %v1373 = vmul.f32 %v1371, %v1372
  %v1374 = vsub.f32 1.0, %v1373
  %v1375 = vmul.f32 %v1372, %v1374
  %v1376 = vadd.f32 %v1372, %v1375
  %vm1377 = vweird.f32 %v1371
  %vm1378 = vweird.f32 %v1372
  %vm1379 = vmor %vm1377, %vm1378
  %v1380 = vsel %vm1379, %v1372, %v1376
  %v1381 = vand.u32 2147483647, %v1371
  %vm1382 = vcmp.eq.f32.partialorder %v1381, 8.507059e+37
  %v1383 = vand.u32 %v1371, 2147483648
  %v1384 = vor.u32 1.1754944e-38, %v1383
  %v1385 = vsel %vm1382, %v1384, %v1380
  %v1386 = vmul.f32 1.0, %v1385
  %v1387 = vtanh.pop %v1367
  %v1388 = vmul.f32 %v1386, %v1247
  %1390 = vrot.lane.b32.xlu0 %v1387, 64
  %v1391 = vpop.permute.xlu0 %1390
  %v1393 = vmul.f32 %v1386, %v1391
  %1395 = vrot.lane.b32.xlu0 %v1393, 32
  %v1396 = vpop.permute.xlu0 %1395
  %v1398 = vadd.f32 %v1388, %v1396
  %v1399 = vtanh.pop %v1398
  %1401 = vrot.lane.b32.xlu0 %v1399, 64
  %v1402 = vpop.permute.xlu0 %1401
  %v1404 = vmul.f32 %v1386, %v1402
  %s1405 = scalar_lea.vmem %s3, 48
  %v1406 = vld [vmem:[%s1405] sm:$0xff]
  %v1407 = vsub.f32 %v1404, %v1244
  %1409 = vset.pattern.permute.xlu0 0
  %1410 = vperm.xlu0 %1409, %v1406
  %v1411 = vpop.permute.xlu0 %1410
  %v1413 = vmul.f32 %v1411, %v1407
  %v1414 = vadd.f32 %v1244, %v1413
  %v1415 = vsub.f32 %v1398, %v1247
  %v1416 = vmul.f32 %v1411, %v1415
  %v1417 = vadd.f32 %v1247, %v1416
  %v1418 = vmul.f32 %v1411, %v1404
  %1420 = vrot.lane.b32.xlu0 %v1418, 32
  %v1421 = vpop.permute.xlu0 %1420
  %s1423 = scalar_lea.vmem [#allocation5], 8
  %1424 = vst.msk [vmem:[%s1423] sm:$0xff] %vm106, %v1421
  %s1425 = scalar_lea.vmem [#allocation2], 56
  %v1426 = vld [vmem:[%s1425] sm:$0xff]
  %1428 = vrot.lane.b32.xlu0 %v1329, 32
  %v1429 = vpop.permute.xlu0 %1428
  %v1430 = vsel %vm106, %v1429, 0
  %1432 = vmatpush.msra.mxu0 0.0
  %1433 = vmatpush.msra.mxu0 0.0
  %1434 = vmatpush.msra.mxu0 0.0
  %1435 = vmatpush.msra.mxu0 0.0
  %1436 = vmatpush.msra.mxu0 0.0
  %1437 = vmatpush.msra.mxu0 0.0
  %1438 = vmatpush.msra.mxu0 0.0
  %1439 = vmatpush.msra.mxu0 0.0
  %1440 = vmatpush.msra.mxu0 0.0
  %1441 = vmatpush.msra.mxu0 0.0
  %1442 = vmatpush.msra.mxu0 0.0
  %1443 = vmatpush.msra.mxu0 0.0
  %1444 = vmatpush.msra.mxu0 %v248
  %1445 = vmatpush.msra.mxu0 %v247
  %1446 = vmatpush.msra.mxu0 %v246
  %1447 = vmatpush.msra.mxu0 %v245
  %1448 = vmatmul.f32.gmra.mxu0 %v1430
  %v1449 = vpop.f32.mrf.mxu0
  %v1450 = vadd.f32 0.0, %v1449
  %1451 = vdwg.mxu0
  %v1452 = vadd.f32 %v1426, %v1450
  %v1453 = vxor.u32 %v1452, 2147483648
  %v1454 = vmul.f32 %v1453, 1.442695
  %v1455 = vpow.pop %v1454
  %v1456 = vadd.f32 %v1455, 1.0
  %v1457 = vrcp.pop %v1456
  %v1458 = vmul.f32 %v1456, %v1457
  %v1459 = vsub.f32 1.0, %v1458
  %v1460 = vmul.f32 %v1457, %v1459
  %v1461 = vadd.f32 %v1457, %v1460
  %vm1462 = vweird.f32 %v1456
  %vm1463 = vweird.f32 %v1457
  %vm1464 = vmor %vm1462, %vm1463
  %v1465 = vsel %vm1464, %v1457, %v1461
  %v1466 = vand.u32 2147483647, %v1456
  %vm1467 = vcmp.eq.f32.partialorder %v1466, 8.507059e+37
  %v1468 = vand.u32 %v1456, 2147483648
  %v1469 = vor.u32 1.1754944e-38, %v1468
  %v1470 = vsel %vm1467, %v1469, %v1465
  %v1471 = vmul.f32 1.0, %v1470
  %v1472 = vtanh.pop %v1452
  %v1473 = vmul.f32 %v1471, %v1332
  %1475 = vrot.lane.b32.xlu0 %v1472, 64
  %v1476 = vpop.permute.xlu0 %1475
  %v1478 = vmul.f32 %v1471, %v1476
  %1480 = vrot.lane.b32.xlu0 %v1478, 32
  %v1481 = vpop.permute.xlu0 %1480
  %v1483 = vadd.f32 %v1473, %v1481
  %v1484 = vtanh.pop %v1483
  %1486 = vrot.lane.b32.xlu0 %v1484, 64
  %v1487 = vpop.permute.xlu0 %1486
  %v1489 = vmul.f32 %v1471, %v1487
  %s1490 = scalar_lea.vmem %s2, 56
  %v1491 = vld [vmem:[%s1490] sm:$0xff]
  %v1492 = vsub.f32 %v1489, %v1329
  %1494 = vset.pattern.permute.xlu0 0
  %1495 = vperm.xlu0 %1494, %v1491
  %v1496 = vpop.permute.xlu0 %1495
  %v1498 = vmul.f32 %v1496, %v1492
  %v1499 = vadd.f32 %v1329, %v1498
  %v1500 = vmul.f32 %v1496, %v1489
  %1502 = vrot.lane.b32.xlu0 %v1500, 32
  %v1503 = vpop.permute.xlu0 %1502
  %s1505 = scalar_lea.vmem [#allocation4], 56
  %1506 = vst.msk [vmem:[%s1505] sm:$0xff] %vm106, %v1503
  %s1507 = scalar_lea.vmem [#allocation3], 56
  %v1508 = vld [vmem:[%s1507] sm:$0xff]
  %1510 = vrot.lane.b32.xlu0 %v1414, 32
  %v1511 = vpop.permute.xlu0 %1510
  %v1512 = vsel %vm106, %v1511, 0
  %1514 = vmatpush.msra.mxu0 0.0
  %1515 = vmatpush.msra.mxu0 0.0
  %1516 = vmatpush.msra.mxu0 0.0
  %1517 = vmatpush.msra.mxu0 0.0
  %1518 = vmatpush.msra.mxu0 0.0
  %1519 = vmatpush.msra.mxu0 0.0
  %1520 = vmatpush.msra.mxu0 0.0
  %1521 = vmatpush.msra.mxu0 0.0
  %1522 = vmatpush.msra.mxu0 0.0
  %1523 = vmatpush.msra.mxu0 0.0
  %1524 = vmatpush.msra.mxu0 0.0
  %1525 = vmatpush.msra.mxu0 0.0
  %1526 = vmatpush.msra.mxu0 %v252
  %1527 = vmatpush.msra.mxu0 %v251
  %1528 = vmatpush.msra.mxu0 %v250
  %1529 = vmatpush.msra.mxu0 %v249
  %1530 = vmatmul.f32.gmra.mxu0 %v1512
  %v1531 = vpop.f32.mrf.mxu0
  %v1532 = vadd.f32 0.0, %v1531
  %1533 = vdwg.mxu0
  %v1534 = vadd.f32 %v1508, %v1532
  %v1535 = vxor.u32 %v1534, 2147483648
  %v1536 = vmul.f32 %v1535, 1.442695
  %v1537 = vpow.pop %v1536
  %v1538 = vadd.f32 %v1537, 1.0
  %v1539 = vrcp.pop %v1538
  %v1540 = vmul.f32 %v1538, %v1539
  %v1541 = vsub.f32 1.0, %v1540
  %v1542 = vmul.f32 %v1539, %v1541
  %v1543 = vadd.f32 %v1539, %v1542
  %vm1544 = vweird.f32 %v1538
  %vm1545 = vweird.f32 %v1539
  %vm1546 = vmor %vm1544, %vm1545
  %v1547 = vsel %vm1546, %v1539, %v1543
  %v1548 = vand.u32 2147483647, %v1538
  %vm1549 = vcmp.eq.f32.partialorder %v1548, 8.507059e+37
  %v1550 = vand.u32 %v1538, 2147483648
  %v1551 = vor.u32 1.1754944e-38, %v1550
  %v1552 = vsel %vm1549, %v1551, %v1547
  %v1553 = vmul.f32 1.0, %v1552
  %v1554 = vtanh.pop %v1534
  %v1555 = vmul.f32 %v1553, %v1417
  %1557 = vrot.lane.b32.xlu0 %v1554, 64
  %v1558 = vpop.permute.xlu0 %1557
  %v1560 = vmul.f32 %v1553, %v1558
  %1562 = vrot.lane.b32.xlu0 %v1560, 32
  %v1563 = vpop.permute.xlu0 %1562
  %v1565 = vadd.f32 %v1555, %v1563
  %v1566 = vtanh.pop %v1565
  %1568 = vrot.lane.b32.xlu0 %v1566, 64
  %v1569 = vpop.permute.xlu0 %1568
  %v1571 = vmul.f32 %v1553, %v1569
  %s1572 = scalar_lea.vmem %s3, 56
  %v1573 = vld [vmem:[%s1572] sm:$0xff]
  %v1574 = vsub.f32 %v1571, %v1414
  %1576 = vset.pattern.permute.xlu0 0
  %1577 = vperm.xlu0 %1576, %v1573
  %v1578 = vpop.permute.xlu0 %1577
  %v1580 = vmul.f32 %v1578, %v1574
  %v1581 = vadd.f32 %v1414, %v1580
  %v1582 = vmul.f32 %v1578, %v1571
  %1584 = vrot.lane.b32.xlu0 %v1582, 32
  %v1585 = vpop.permute.xlu0 %1584
  %1587 = vst.msk [vmem:[#allocation5] sm:$0xff] %vm106, %v1585
  %v1588 = vld [vmem:[#allocation4] sm:$0xff]
  %v1589 = vld [vmem:[#allocation4 + $0x8] sm:$0xff]
  %v1590 = vld [vmem:[#allocation4 + $0x10] sm:$0xff]
  %v1591 = vld [vmem:[#allocation4 + $0x18] sm:$0xff]
  %v1592 = vld [vmem:[#allocation4 + $0x20] sm:$0xff]
  %v1593 = vld [vmem:[#allocation4 + $0x28] sm:$0xff]
  %v1594 = vld [vmem:[#allocation4 + $0x30] sm:$0xff]
  %v1595 = vld [vmem:[#allocation4 + $0x38] sm:$0xff]
  %v1596 = vpack.c.bf16 %v1589, %v1588
  %v1597 = vpack.c.bf16 %v1591, %v1590
  %v1598 = vpack.c.bf16 %v1593, %v1592
  %v1599 = vpack.c.bf16 %v1595, %v1594
  %v1600 = vld [vmem:[#allocation5] sm:$0xff]
  %v1601 = vld [vmem:[#allocation5 + $0x8] sm:$0xff]
  %v1602 = vld [vmem:[#allocation5 + $0x10] sm:$0xff]
  %v1603 = vld [vmem:[#allocation5 + $0x18] sm:$0xff]
  %v1604 = vld [vmem:[#allocation5 + $0x20] sm:$0xff]
  %v1605 = vld [vmem:[#allocation5 + $0x28] sm:$0xff]
  %v1606 = vld [vmem:[#allocation5 + $0x30] sm:$0xff]
  %v1607 = vld [vmem:[#allocation5 + $0x38] sm:$0xff]
  %v1608 = vpack.c.bf16 %v1601, %v1600
  %v1609 = vpack.c.bf16 %v1603, %v1602
  %v1610 = vpack.c.bf16 %v1605, %v1604
  %v1611 = vpack.c.bf16 %v1607, %v1606
  %v1612 = vld [vmem:[%s10] sm:$0xf]
  %v1613 = vld [vmem:[%s10 + $0x4] sm:$0xf]
  %v1614 = vld [vmem:[%s10 + $0x8] sm:$0xf]
  %v1615 = vld [vmem:[%s10 + $0xc] sm:$0xf]
  %v1616 = vld [vmem:[%s11] sm:$0xf]
  %v1617 = vld [vmem:[%s11 + $0x4] sm:$0xf]
  %v1618 = vld [vmem:[%s11 + $0x8] sm:$0xf]
  %v1619 = vld [vmem:[%s11 + $0xc] sm:$0xf]
  %v1624 = vunpack.c.l.b16 %v1616
  %v1625 = vunpack.c.l.b16 %v1617
  %v1626 = vunpack.c.l.b16 %v1618
  %v1627 = vunpack.c.l.b16 %v1619
  %v1628 = vpack.c.b16 %v1625, %v1624
  %v1629 = vpack.c.b16 %v1627, %v1626
  %v1633 = vsel %vm106, %v1608, 0
  %v1636 = vsel %vm106, %v1609, 0
  %v1639 = vsel %vm106, %v1610, 0
  %v1642 = vsel %vm106, %v1611, 0
  %1644 = vmatpush.bf16.msra.mxu0 0
  %1645 = vmatpush.bf16.msra.mxu0 0
  %1646 = vmatpush.bf16.msra.mxu0 0
  %1647 = vmatpush.bf16.msra.mxu0 0
  %1648 = vmatpush.bf16.msra.mxu0 0
  %1649 = vmatpush.bf16.msra.mxu0 0
  %1650 = vmatpush.bf16.msra.mxu0 %v1629
  %1651 = vmatpush.bf16.msra.mxu0 %v1628
  %1652 = vmatmul.bf16.gmra.mxu0 %v1633
  %v1653 = vpop.f32.mrf.mxu0
  %v1654 = vadd.f32 0.0, %v1653
  %v1655 = vpop.f32.mrf.mxu0
  %v1656 = vadd.f32 0.0, %v1655
  %1657 = vmatmul.bf16.gmra.mxu0 %v1636
  %v1658 = vpop.f32.mrf.mxu0
  %v1659 = vadd.f32 0.0, %v1658
  %v1660 = vpop.f32.mrf.mxu0
  %v1661 = vadd.f32 0.0, %v1660
  %1662 = vmatmul.bf16.gmra.mxu0 %v1639
  %v1663 = vpop.f32.mrf.mxu0
  %v1664 = vadd.f32 0.0, %v1663
  %v1665 = vpop.f32.mrf.mxu0
  %v1666 = vadd.f32 0.0, %v1665
  %1667 = vmatmul.bf16.gmra.mxu0 %v1642
  %v1668 = vpop.f32.mrf.mxu0
  %v1669 = vadd.f32 0.0, %v1668
  %v1670 = vpop.f32.mrf.mxu0
  %v1671 = vadd.f32 0.0, %v1670
  %1672 = vdwg.mxu0
  %v1677 = vunpack.c.l.b16 %v1612
  %v1678 = vunpack.c.l.b16 %v1613
  %v1679 = vunpack.c.l.b16 %v1614
  %v1680 = vunpack.c.l.b16 %v1615
  %v1681 = vpack.c.b16 %v1678, %v1677
  %v1682 = vpack.c.b16 %v1680, %v1679
  %v1686 = vsel %vm106, %v1596, 0
  %v1689 = vsel %vm106, %v1597, 0
  %v1692 = vsel %vm106, %v1598, 0
  %v1695 = vsel %vm106, %v1599, 0
  %1697 = vmatpush.bf16.msra.mxu0 0
  %1698 = vmatpush.bf16.msra.mxu0 0
  %1699 = vmatpush.bf16.msra.mxu0 0
  %1700 = vmatpush.bf16.msra.mxu0 0
  %1701 = vmatpush.bf16.msra.mxu0 0
  %1702 = vmatpush.bf16.msra.mxu0 0
  %1703 = vmatpush.bf16.msra.mxu0 %v1682
  %1704 = vmatpush.bf16.msra.mxu0 %v1681
  %1705 = vmatmul.bf16.gmra.mxu0 %v1686
  %v1706 = vpop.f32.mrf.mxu0
  %v1707 = vadd.f32 %v1654, %v1706
  %v1708 = vpop.f32.mrf.mxu0
  %v1709 = vadd.f32 %v1656, %v1708
  %1710 = vmatmul.bf16.gmra.mxu0 %v1689
  %v1711 = vpop.f32.mrf.mxu0
  %v1712 = vadd.f32 %v1659, %v1711
  %v1713 = vpop.f32.mrf.mxu0
  %v1714 = vadd.f32 %v1661, %v1713
  %1715 = vmatmul.bf16.gmra.mxu0 %v1692
  %v1716 = vpop.f32.mrf.mxu0
  %v1717 = vadd.f32 %v1664, %v1716
  %v1718 = vpop.f32.mrf.mxu0
  %v1719 = vadd.f32 %v1666, %v1718
  %1720 = vmatmul.bf16.gmra.mxu0 %v1695
  %v1721 = vpop.f32.mrf.mxu0
  %v1722 = vadd.f32 %v1669, %v1721
  %v1723 = vpop.f32.mrf.mxu0
  %v1724 = vadd.f32 %v1671, %v1723
  %1725 = vdwg.mxu0
  %1726 = vst [vmem:[%s14] sm:$0xff] %v1707
  %1727 = vst [vmem:[%s14 + $0x8] sm:$0xff] %v1709
  %1728 = vst [vmem:[%s14 + $0x10] sm:$0xff] %v1712
  %1729 = vst [vmem:[%s14 + $0x18] sm:$0xff] %v1714
  %1730 = vst [vmem:[%s14 + $0x20] sm:$0xff] %v1717
  %1731 = vst [vmem:[%s14 + $0x28] sm:$0xff] %v1719
  %1732 = vst [vmem:[%s14 + $0x30] sm:$0xff] %v1722
  %1733 = vst [vmem:[%s14 + $0x38] sm:$0xff] %v1724
  %v1734 = vpack.c.bf16 %v1499, %v1499
  %v1735 = vld [vmem:[%s12] sm:$0xf]
  %v1736 = vld [vmem:[%s12 + $0x4] sm:$0xf]
  %v1737 = vld [vmem:[%s12 + $0x8] sm:$0xf]
  %v1738 = vld [vmem:[%s12 + $0xc] sm:$0xf]
  %v1739 = vpack.c.bf16 %v1581, %v1581
  %v1740 = vld [vmem:[%s13] sm:$0xf]
  %v1741 = vld [vmem:[%s13 + $0x4] sm:$0xf]
  %v1742 = vld [vmem:[%s13 + $0x8] sm:$0xf]
  %v1743 = vld [vmem:[%s13 + $0xc] sm:$0xf]
  %1745 = vrot.lane.b32.xlu0 %v1739, 32
  %v1746 = vpop.permute.xlu0 %1745
  %v1751 = vunpack.c.l.b16 %v1740
  %v1752 = vunpack.c.l.b16 %v1741
  %v1753 = vunpack.c.l.b16 %v1742
  %v1754 = vunpack.c.l.b16 %v1743
  %v1755 = vpack.c.b16 %v1752, %v1751
  %v1756 = vpack.c.b16 %v1754, %v1753
  %v1760 = vsel %vm106, %v1746, 0
  %1762 = vmatpush.bf16.msra.mxu0 0
  %1763 = vmatpush.bf16.msra.mxu0 0
  %1764 = vmatpush.bf16.msra.mxu0 0
  %1765 = vmatpush.bf16.msra.mxu0 0
  %1766 = vmatpush.bf16.msra.mxu0 0
  %1767 = vmatpush.bf16.msra.mxu0 0
  %1768 = vmatpush.bf16.msra.mxu0 %v1756
  %1769 = vmatpush.bf16.msra.mxu0 %v1755
  %1770 = vmatmul.bf16.gmra.mxu0 %v1760
  %v1771 = vpop.f32.mrf.mxu0
  %v1772 = vadd.f32 0.0, %v1771
  %v1773 = vpop.f32.mrf.mxu0
  %1774 = vdwg.mxu0
  %1776 = vrot.lane.b32.xlu0 %v1734, 32
  %v1777 = vpop.permute.xlu0 %1776
  %v1782 = vunpack.c.l.b16 %v1735
  %v1783 = vunpack.c.l.b16 %v1736
  %v1784 = vunpack.c.l.b16 %v1737
  %v1785 = vunpack.c.l.b16 %v1738
  %v1786 = vpack.c.b16 %v1783, %v1782
  %v1787 = vpack.c.b16 %v1785, %v1784
  %v1791 = vsel %vm106, %v1777, 0
  %1793 = vmatpush.bf16.msra.mxu0 0
  %1794 = vmatpush.bf16.msra.mxu0 0
  %1795 = vmatpush.bf16.msra.mxu0 0
  %1796 = vmatpush.bf16.msra.mxu0 0
  %1797 = vmatpush.bf16.msra.mxu0 0
  %1798 = vmatpush.bf16.msra.mxu0 0
  %1799 = vmatpush.bf16.msra.mxu0 %v1787
  %1800 = vmatpush.bf16.msra.mxu0 %v1786
  %1801 = vmatmul.bf16.gmra.mxu0 %v1791
  %v1802 = vpop.f32.mrf.mxu0
  %v1803 = vadd.f32 %v1772, %v1802
  %v1804 = vpop.f32.mrf.mxu0
  %1805 = vdwg.mxu0
  %1806 = vst [vmem:[%s15] sm:$0xff] %v1803
  // Predicated region
  $region58: #{model_ias_forward.1} parent=0 // pred_check
    _
  $region59: #{model_ias_forward.1} parent=0 // pred_check_branch
    %1808 = sbr.rel (0) target = $region61
  $region60: #{model_ias_forward.1} parent=0 // pred_region
    _
  $region61: #{model_ias_forward.1} parent=0 // pred_fallthru
    _
  // Predicated region
  $region62: #{model_ias_forward.1} parent=0 // pred_check
    _
  $region63: #{model_ias_forward.1} parent=0 // pred_check_branch
    %1810 = sbr.rel (0) target = $region65
  $region64: #{model_ias_forward.1} parent=0 // pred_region
    _
  $region65: #{model_ias_forward.1} parent=0 // pred_fallthru
    _
  // Predicated region
  $region66: #{model_ias_forward.1} parent=0 // pred_check
    _
  $region67: #{model_ias_forward.1} parent=0 // pred_check_branch
    %1812 = sbr.rel (0) target = $region69
  $region68: #{model_ias_forward.1} parent=0 // pred_region
    _
  $region69: #{model_ias_forward.1} parent=0 // pred_fallthru
    _
  // Predicated region
  $region70: #{model_ias_forward.1} parent=0 // pred_check
    _
  $region71: #{model_ias_forward.1} parent=0 // pred_check_branch
    %1814 = sbr.rel (0) target = $region73
  $region72: #{model_ias_forward.1} parent=0 // pred_region
    _
  $region73: #{model_ias_forward.1} parent=0 // pred_fallthru
    _

</llo_original>
